<compile_context>
chip_gen: v5e
topology: v5e:2x2
jax: 0.10.0
libtpu: 0.0.40
codegen_flags: <defaults>
</compile_context>

<pallas_src>
import jax
import jax.numpy as jnp
import numpy as np
from jax.experimental import pallas as pl
from jax.experimental.pallas import tpu as pltpu


# ----------------------------------------------------------------------------
# Static network geometry (MNIST Net: 1x28x28 input) and dense-grid constants
# ----------------------------------------------------------------------------
H_IN, W_IN = 28, 28
K = 5                         # conv kernel size
C1, C2 = 10, 20               # conv1 / conv2 output channels

HP, WPP = 36, 32              # padded input rows / cols per image
U1, V1 = 32, 25               # dense conv1 rows / cols computed
N1 = V1 * C1                  # 250 real conv1 lanes (v*10 + c)
N1P = 256                     # conv1 output lanes (padded to 128-multiple)
K1 = K * WPP                  # 160: folded conv1 contraction (5 row taps)
K1P = 256                     # padded folded K (128-multiple)
UM, VM = 24, 24               # dense pool1 rows / cols kept
NM = VM * C1                  # 240 pool1 lanes
U2, V2 = 16, 16               # dense (dilation-2) conv2 rows / cols
N2 = V2 * C2                  # 320 real conv2 lanes (q*20 + c)
N2P = 384                     # conv2 output lanes (padded to 128-multiple)
K2 = K * NM                   # 1200: folded conv2 contraction
K2P = 1280                    # padded folded K
KT = 280                      # per-s fc1 lanes after the t-fold (14 blocks x 20)
KF = 4 * KT                   # 1120: fc1 folded K (4 s-rows stacked)
NH = 50                       # fc1 hidden size
NOUT = 128                    # lane-dense output width (log-probs in lanes 0..9)
NEG_PAD = -1e30               # bias for padding logits lanes

TB_MAX_DEFAULT = 32           # batch tile (tunable); grid axis is "parallel"
MATMUL_DTYPE = jnp.bfloat16   # MXU operand dtype; accumulation stays float32


# ----------------------------------------------------------------------------
# Fused Pallas kernel: whole forward pass for one batch tile, all in VMEM
# ----------------------------------------------------------------------------
def _net_kernel(x_ref, m1_ref, b1_ref, m2_ref, b2_ref, w1_ref, bf1_ref,
                w2_ref, bf2_ref, o_ref):
    """conv1 -> pool -> relu -> conv2 -> pool -> relu -> fc1 -> relu -> fc2
    -> log_softmax for a TB-image tile.

    Activations are [TB, rows, width*channels] with the (width, channel) pair
    flattened into lanes; every conv is a single K-folded MXU matmul, every
    pool is unit-stride slice maxes on the dense grid (stride-2 sub-sampling
    is absorbed into later tap offsets / final row picks), and the fc tail is
    two lane-dense matmuls.  Garbage dense positions are finite by
    construction and multiply only zero weight rows downstream.
    """
    tb = x_ref.shape[0]
    x = x_ref[...]                                            # [tb, 36, 32] bf16

    # ---- conv1, K-folded: one matmul [tb*32, 256] x [256, 256] --------------
    slabs1 = [x[:, di:di + U1, :] for di in range(K)]
    slabs1.append(jnp.zeros((tb, U1, K1P - K1), MATMUL_DTYPE))
    lhs1 = jnp.concatenate(slabs1, axis=-1).reshape(tb * U1, K1P)
    y1 = jnp.dot(lhs1, m1_ref[...], preferred_element_type=jnp.float32)
    y1 = (y1 + b1_ref[...]).reshape(tb, U1, N1P)              # [tb, 32, 256] f32

    # ---- maxpool1(2x2) + relu, dense, unit-stride slices ---------------------
    a00 = y1[:, 0:UM,     0:NM]
    a01 = y1[:, 0:UM,     C1:C1 + NM]          # (u, v+1): +1 col = +C1 lanes
    a10 = y1[:, 1:UM + 1, 0:NM]                # (u+1, v)
    a11 = y1[:, 1:UM + 1, C1:C1 + NM]          # (u+1, v+1)
    p1 = jnp.maximum(jnp.maximum(a00, a01), jnp.maximum(a10, a11))
    p1 = jnp.maximum(p1, 0.0).astype(MATMUL_DTYPE)            # [tb, 24, 240]

    # ---- conv2, K-folded dilation-2: one matmul [tb*16, 1280] x [1280, 384] --
    slabs2 = [p1[:, 2 * di:2 * di + U2, :] for di in range(K)]
    slabs2.append(jnp.zeros((tb, U2, K2P - K2), MATMUL_DTYPE))
    lhs2 = jnp.concatenate(slabs2, axis=-1).reshape(tb * U2, K2P)
    y2 = jnp.dot(lhs2, m2_ref[...], preferred_element_type=jnp.float32)
    y2 = (y2 + b2_ref[...]).reshape(tb, U2, N2P)               # [tb, 16, 384] f32

    # ---- maxpool2 + relu + NCHW flatten + fc1: one lane-dense matmul ---------
    # Real conv2 output lives at even dense coords; pool2(s,t,c) =
    # relu(max over dense rows {4s,4s+2}, lane blocks {4t,4t+2}).
    rows = []
    for s in range(4):
        rmax = jnp.maximum(y2[:, 4 * s, :], y2[:, 4 * s + 2, :])        # [tb, 384]
        tmax = jnp.maximum(rmax[:, 0:KT], rmax[:, 2 * C2:2 * C2 + KT])  # [tb, 280]
        rows.append(jnp.maximum(tmax, 0.0).astype(MATMUL_DTYPE))
    hl = jnp.concatenate(rows, axis=-1)                                 # [tb, 1120]
    # w1_ref has nonzero rows only at lanes s*280 + 80*t + c, pre-permuted to
    # match torch's x.view(-1, 320) NCHW flatten; garbage lanes hit zero rows.
    h = jnp.dot(hl, w1_ref[...], preferred_element_type=jnp.float32) + bf1_ref[...]
    h = jnp.maximum(h, 0.0).astype(MATMUL_DTYPE)                        # [tb, 50]

    # ---- fc2 + log_softmax, lane-dense 128 (pad lanes biased to -1e30) -------
    logits = jnp.dot(h, w2_ref[...],
                     preferred_element_type=jnp.float32) + bf2_ref[...]  # [tb, 128]
    z = logits - jnp.max(logits, axis=-1, keepdims=True)
    out = z - jnp.log(jnp.sum(jnp.exp(z), axis=-1, keepdims=True))
    o_ref[...] = out.astype(o_ref.dtype)


# ----------------------------------------------------------------------------
# One-time host-side parameter relayout (folded banded conv mats, permuted fc1)
# ----------------------------------------------------------------------------
def prepare_params(params):
    w1 = np.asarray(params["conv1_w"], np.float32)      # [10, 1, 5, 5]
    b1 = np.asarray(params["conv1_b"], np.float32)      # [10]
    w2 = np.asarray(params["conv2_w"], np.float32)      # [20, 10, 5, 5]
    b2 = np.asarray(params["conv2_b"], np.float32)      # [20]
    fc1_w = np.asarray(params["fc1_w"], np.float32)     # [50, 320]
    fc1_b = np.asarray(params["fc1_b"], np.float32)     # [50]
    fc2_w = np.asarray(params["fc2_w"], np.float32)     # [10, 50]
    fc2_b = np.asarray(params["fc2_b"], np.float32)     # [10]

    # conv1 folded banded weights: M1[di*32 + (v+dj), v*10 + c] = w1[c,0,di,dj]
    m1w = np.zeros((K1P, N1P), np.float32)
    for di in range(K):
        for v in range(V1):
            for dj in range(K):
                m1w[di * WPP + v + dj, v * C1:(v + 1) * C1] = w1[:, 0, di, dj]
    b1t = np.zeros((1, N1P), np.float32)
    b1t[0, :N1] = np.tile(b1, V1)

    # conv2 folded banded (dilation-2) weights:
    #   M2[di*240 + (q+2*dj)*10 + ci, q*20 + co] = w2[co, ci, di, dj]
    m2w = np.zeros((K2P, N2P), np.float32)
    for di in range(K):
        for q in range(V2):
            for dj in range(K):
                v = q + 2 * dj                       # always < VM = 24
                m2w[di * NM + v * C1:di * NM + (v + 1) * C1,
                    q * C2:(q + 1) * C2] = w2[:, :, di, dj].T
    b2t = np.zeros((1, N2P), np.float32)
    b2t[0, :N2] = np.tile(b2, V2)

    # fc1: zero-padded / permuted so one [tb,1120]x[1120,50] matmul performs
    # pool2's t-selection + torch's NCHW view(-1,320) flatten + fc1.
    #   kernel lane s*280 + 80*t + c  <->  torch feature index c*16 + s*4 + t
    w1p = np.zeros((KF, NH), np.float32)
    for s in range(4):
        for t in range(4):
            for c in range(C2):
                w1p[s * KT + 80 * t + c, :] = fc1_w[:, c * 16 + s * 4 + t]
    b1f = fc1_b[None, :]

    # fc2 padded to 128 lanes; pad-lane bias very negative so log_softmax
    # over all 128 lanes equals log_softmax over the real 10.
    w2p = np.zeros((NH, NOUT), np.float32)
    w2p[:, :10] = fc2_w.T
    b2f = np.full((1, NOUT), NEG_PAD, np.float32)
    b2f[0, :10] = fc2_b

    return {
        "m1w": jnp.asarray(m1w, MATMUL_DTYPE),     # [256, 256]
        "b1t": jnp.asarray(b1t, jnp.float32),      # [1, 256]
        "m2w": jnp.asarray(m2w, MATMUL_DTYPE),     # [1280, 384]
        "b2t": jnp.asarray(b2t, jnp.float32),      # [1, 384]
        "w1p": jnp.asarray(w1p, MATMUL_DTYPE),     # [1120, 50]
        "b1f": jnp.asarray(b1f, jnp.float32),      # [1, 50]
        "w2p": jnp.asarray(w2p, MATMUL_DTYPE),     # [50, 128]
        "b2f": jnp.asarray(b2f, jnp.float32),      # [1, 128]
    }


def init_params(key):
    """Deterministic params, PyTorch-default-style uniform(-1/sqrt(fan_in), +)."""
    ks = jax.random.split(key, 8)

    def u(k, shape, fan_in):
        bound = 1.0 / jnp.sqrt(float(fan_in))
        return jax.random.uniform(k, shape, jnp.float32, -bound, bound)

    return {
        "conv1_w": u(ks[0], (10, 1, 5, 5), 1 * 5 * 5),
        "conv1_b": u(ks[1], (10,), 1 * 5 * 5),
        "conv2_w": u(ks[2], (20, 10, 5, 5), 10 * 5 * 5),
        "conv2_b": u(ks[3], (20,), 10 * 5 * 5),
        "fc1_w": u(ks[4], (50, 320), 320),
        "fc1_b": u(ks[5], (50,), 320),
        "fc2_w": u(ks[6], (10, 50), 50),
        "fc2_b": u(ks[7], (10,), 50),
    }


# ----------------------------------------------------------------------------
# Forward pass wrapper (inference semantics: dropout layers are identity)
# ----------------------------------------------------------------------------
def _pick_tb(batch, tb_max):
    """Batch tile: multiple of 8, <= tb_max, and (when possible) grid >= 2
    so the parallel grid axis can split across v7x's two TensorCores."""
    tb_max = max(8, (int(tb_max) // 8) * 8)
    half = -(-batch // 2)                        # cdiv(batch, 2)
    tb = ((half + 7) // 8) * 8
    return max(8, min(tb_max, tb))


def net_forward(x_nchw, prep, tb_max=TB_MAX_DEFAULT):
    """x_nchw: [B, 1, 28, 28] float32 -> [B, 10] log-probabilities."""
    # TODO(synk): Dropout2d / Dropout are identity (eval mode); training-mode
    # RNG masking is not modeled.
    B = x_nchw.shape[0]
    assert x_nchw.shape[1:] == (1, H_IN, W_IN), x_nchw.shape
    tb = _pick_tb(B, tb_max)
    bp = pl.cdiv(B, tb) * tb

    # Single pre-kernel pass over the images: cast to bf16, then pad.
    x = x_nchw.reshape(B, H_IN, W_IN).astype(MATMUL_DTYPE)
    x = jnp.pad(x, ((0, bp - B), (0, HP - H_IN), (0, WPP - W_IN)))

    def full(shape):
        return pl.BlockSpec(shape, lambda i, _n=len(shape): (0,) * _n)

    flops = 2 * bp * (U1 * K1P * N1P + U2 * K2P * N2P + KF * NH + NH * NOUT)
    bytes_accessed = (x.size * x.dtype.itemsize + bp * NOUT * 4
                      + sum(int(np.prod(v.shape)) * v.dtype.itemsize
                            for v in prep.values()))

    out = pl.pallas_call(
        _net_kernel,
        out_shape=jax.ShapeDtypeStruct((bp, NOUT), jnp.float32),
        grid=(bp // tb,),
        in_specs=[
            pl.BlockSpec((tb, HP, WPP), lambda i: (i, 0, 0)),   # images
            full((K1P, N1P)),      # conv1 folded banded weights
            full((1, N1P)),        # conv1 bias (tiled over width)
            full((K2P, N2P)),      # conv2 folded banded weights
            full((1, N2P)),        # conv2 bias (tiled over width)
            full((KF, NH)),        # fc1 weights, flatten-permuted + zero-padded
            full((1, NH)),         # fc1 bias
            full((NH, NOUT)),      # fc2 weights, lane-padded to 128
            full((1, NOUT)),       # fc2 bias (-1e30 on pad lanes)
        ],
        out_specs=pl.BlockSpec((tb, NOUT), lambda i: (i, 0)),
        compiler_params=pltpu.CompilerParams(
            dimension_semantics=("parallel",),
            vmem_limit_bytes=40 * 1024 * 1024,   # fits v7x's 64 MiB physical
        ),
        cost_estimate=pl.CostEstimate(flops=flops,
                                      transcendentals=bp * (NOUT + 1),
                                      bytes_accessed=bytes_accessed),
    )(x, prep["m1w"], prep["b1t"], prep["m2w"], prep["b2t"],
      prep["w1p"], prep["b1f"], prep["w2p"], prep["b2f"])
    return out[:B, :10]


# ----------------------------------------------------------------------------
# Pure-JAX (XLA) reference, f32 throughout, PyTorch eval semantics
# ----------------------------------------------------------------------------
def net_forward_ref(x_nchw, params):
    x = x_nchw.astype(jnp.float32)
    dn = ("NCHW", "OIHW", "NCHW")

    def conv(v, w, b):
        v = jax.lax.conv_general_dilated(v, w, (1, 1), "VALID",
                                         dimension_numbers=dn)
        return v + b[None, :, None, None]

    def pool_relu(v):
        v = jax.lax.reduce_window(v, -jnp.inf, jax.lax.max,
                                  (1, 1, 2, 2), (1, 1, 2, 2), "VALID")
        return jnp.maximum(v, 0.0)

    y = pool_relu(conv(x, params["conv1_w"], params["conv1_b"]))
    y = pool_relu(conv(y, params["conv2_w"], params["conv2_b"]))
    y = y.reshape(y.shape[0], 320)
    y = jnp.maximum(y @ params["fc1_w"].T + params["fc1_b"], 0.0)
    y = y @ params["fc2_w"].T + params["fc2_b"]
    return jax.nn.log_softmax(y, axis=-1)


# ----------------------------------------------------------------------------
if __name__ == "__main__":
    key = jax.random.PRNGKey(0)
    k_params, k_x = jax.random.split(key)

    params = init_params(k_params)
    prep = prepare_params(params)
    x = jax.random.normal(k_x, (2, 1, 28, 28), dtype=jnp.float32)   # NCHW

    fwd = jax.jit(net_forward)
    out = jax.block_until_ready(fwd(x, prep))

    assert out.shape == (2, 10), out.shape
    assert bool(jnp.all(jnp.isfinite(out)))
    # log_softmax rows should sum to ~1 in probability space
    assert bool(jnp.allclose(jnp.sum(jnp.exp(out), axis=-1), 1.0, atol=1e-3))

    # Cross-check against the pure-JAX f32 reference (kernel uses bf16 MXU
    # operands, so allow a loose-but-meaningful tolerance).
    ref = jax.block_until_ready(jax.jit(net_forward_ref)(x, params))
    err = float(jnp.max(jnp.abs(out - ref)))
    assert err < 1e-1, f"kernel/reference mismatch: max|diff|={err}"

    print("KERNEL_OK")
</pallas_src>

<mosaic_0001>
module attributes {stable_mosaic.version = 11 : i64} {
  func.func @_net_kernel(%arg0: i32, %arg1: memref<8x36x32xbf16, #tpu.memory_space<vmem>>, %arg2: memref<256x256xbf16, #tpu.memory_space<vmem>>, %arg3: memref<1x256xf32, #tpu.memory_space<vmem>>, %arg4: memref<1280x384xbf16, #tpu.memory_space<vmem>>, %arg5: memref<1x384xf32, #tpu.memory_space<vmem>>, %arg6: memref<1120x50xbf16, #tpu.memory_space<vmem>>, %arg7: memref<1x50xf32, #tpu.memory_space<vmem>>, %arg8: memref<50x128xbf16, #tpu.memory_space<vmem>>, %arg9: memref<1x128xf32, #tpu.memory_space<vmem>>, %arg10: memref<8x128xf32, #tpu.memory_space<vmem>>) attributes {dimension_semantics = [#tpu.dimension_semantics<parallel>], iteration_bounds = array<i64: 1>, scalar_prefetch = 0 : i64, scratch_operands = 0 : i64, tpu.core_type = #tpu.core_type<tc>, window_params = [{transform_indices = @transform_0, window_bounds = array<i64: 8, 36, 32>}, {pipeline_mode = #tpu.pipeline_mode<synchronous>, transform_indices = @transform_1, window_bounds = array<i64: 256, 256>}, {pipeline_mode = #tpu.pipeline_mode<synchronous>, transform_indices = @transform_2, window_bounds = array<i64: 1, 256>}, {pipeline_mode = #tpu.pipeline_mode<synchronous>, transform_indices = @transform_3, window_bounds = array<i64: 1280, 384>}, {pipeline_mode = #tpu.pipeline_mode<synchronous>, transform_indices = @transform_4, window_bounds = array<i64: 1, 384>}, {pipeline_mode = #tpu.pipeline_mode<synchronous>, transform_indices = @transform_5, window_bounds = array<i64: 1120, 50>}, {pipeline_mode = #tpu.pipeline_mode<synchronous>, transform_indices = @transform_6, window_bounds = array<i64: 1, 50>}, {pipeline_mode = #tpu.pipeline_mode<synchronous>, transform_indices = @transform_7, window_bounds = array<i64: 50, 128>}, {pipeline_mode = #tpu.pipeline_mode<synchronous>, transform_indices = @transform_8, window_bounds = array<i64: 1, 128>}, {transform_indices = @transform_9, window_bounds = array<i64: 8, 128>}]} {
    %c0 = arith.constant 0 : index
    %c0_0 = arith.constant 0 : index
    %c0_1 = arith.constant 0 : index
    %0 = vector.load %arg1[%c0, %c0_0, %c0_1] : memref<8x36x32xbf16, #tpu.memory_space<vmem>>, vector<8x36x32xbf16>
    %1 = vector.extract_strided_slice %0 {offsets = [0, 0, 0], sizes = [8, 32, 32], strides = [1, 1, 1]} : vector<8x36x32xbf16> to vector<8x32x32xbf16>
    %2 = vector.extract_strided_slice %0 {offsets = [0, 1, 0], sizes = [8, 32, 32], strides = [1, 1, 1]} : vector<8x36x32xbf16> to vector<8x32x32xbf16>
    %3 = vector.extract_strided_slice %0 {offsets = [0, 2, 0], sizes = [8, 32, 32], strides = [1, 1, 1]} : vector<8x36x32xbf16> to vector<8x32x32xbf16>
    %4 = vector.extract_strided_slice %0 {offsets = [0, 3, 0], sizes = [8, 32, 32], strides = [1, 1, 1]} : vector<8x36x32xbf16> to vector<8x32x32xbf16>
    %5 = vector.extract_strided_slice %0 {offsets = [0, 4, 0], sizes = [8, 32, 32], strides = [1, 1, 1]} : vector<8x36x32xbf16> to vector<8x32x32xbf16>
    %cst = arith.constant 0.000000e+00 : bf16
    %6 = vector.broadcast %cst : bf16 to vector<8x32x96xbf16>
    %7 = tpu.concatenate %1, %2, %3, %4, %5, %6 in 2 : vector<8x32x32xbf16>, vector<8x32x32xbf16>, vector<8x32x32xbf16>, vector<8x32x32xbf16>, vector<8x32x32xbf16>, vector<8x32x96xbf16> -> vector<8x32x256xbf16>
    %8 = vector.shape_cast %7 : vector<8x32x256xbf16> to vector<256x256xbf16>
    %c0_2 = arith.constant 0 : index
    %c0_3 = arith.constant 0 : index
    %9 = vector.load %arg2[%c0_2, %c0_3] : memref<256x256xbf16, #tpu.memory_space<vmem>>, vector<256x256xbf16>
    %cst_4 = arith.constant dense<0.000000e+00> : vector<256x256xf32>
    %10 = tpu.matmul %8, %9, %cst_4 {dimension_numbers = #tpu.dot_dimension_numbers<[1], [0], [0], [1], [0, 0, 1, 1], [], []>} : vector<256x256xbf16>, vector<256x256xbf16>, vector<256x256xf32> -> vector<256x256xf32>
    %c0_5 = arith.constant 0 : index
    %c0_6 = arith.constant 0 : index
    %11 = vector.load %arg3[%c0_5, %c0_6] : memref<1x256xf32, #tpu.memory_space<vmem>>, vector<1x256xf32>
    %12 = vector.broadcast %11 : vector<1x256xf32> to vector<256x256xf32>
    %13 = arith.addf %10, %12 : vector<256x256xf32>
    %14 = vector.shape_cast %13 : vector<256x256xf32> to vector<8x32x256xf32>
    %15 = vector.extract_strided_slice %14 {offsets = [0, 0, 0], sizes = [8, 24, 240], strides = [1, 1, 1]} : vector<8x32x256xf32> to vector<8x24x240xf32>
    %16 = vector.extract_strided_slice %14 {offsets = [0, 0, 10], sizes = [8, 24, 240], strides = [1, 1, 1]} : vector<8x32x256xf32> to vector<8x24x240xf32>
    %17 = vector.extract_strided_slice %14 {offsets = [0, 1, 0], sizes = [8, 24, 240], strides = [1, 1, 1]} : vector<8x32x256xf32> to vector<8x24x240xf32>
    %18 = vector.extract_strided_slice %14 {offsets = [0, 1, 10], sizes = [8, 24, 240], strides = [1, 1, 1]} : vector<8x32x256xf32> to vector<8x24x240xf32>
    %19 = arith.maximumf %15, %16 : vector<8x24x240xf32>
    %20 = arith.maximumf %17, %18 : vector<8x24x240xf32>
    %21 = arith.maximumf %19, %20 : vector<8x24x240xf32>
    %cst_7 = arith.constant 0.000000e+00 : f32
    %22 = vector.broadcast %cst_7 : f32 to vector<8x24x240xf32>
    %23 = arith.maximumf %21, %22 : vector<8x24x240xf32>
    %24 = arith.truncf %23 : vector<8x24x240xf32> to vector<8x24x240xbf16>
    %25 = vector.extract_strided_slice %24 {offsets = [0, 0, 0], sizes = [8, 16, 240], strides = [1, 1, 1]} : vector<8x24x240xbf16> to vector<8x16x240xbf16>
    %26 = vector.extract_strided_slice %24 {offsets = [0, 2, 0], sizes = [8, 16, 240], strides = [1, 1, 1]} : vector<8x24x240xbf16> to vector<8x16x240xbf16>
    %27 = vector.extract_strided_slice %24 {offsets = [0, 4, 0], sizes = [8, 16, 240], strides = [1, 1, 1]} : vector<8x24x240xbf16> to vector<8x16x240xbf16>
    %28 = vector.extract_strided_slice %24 {offsets = [0, 6, 0], sizes = [8, 16, 240], strides = [1, 1, 1]} : vector<8x24x240xbf16> to vector<8x16x240xbf16>
    %29 = vector.extract_strided_slice %24 {offsets = [0, 8, 0], sizes = [8, 16, 240], strides = [1, 1, 1]} : vector<8x24x240xbf16> to vector<8x16x240xbf16>
    %cst_8 = arith.constant 0.000000e+00 : bf16
    %30 = vector.broadcast %cst_8 : bf16 to vector<8x16x80xbf16>
    %31 = tpu.concatenate %25, %26, %27, %28, %29, %30 in 2 : vector<8x16x240xbf16>, vector<8x16x240xbf16>, vector<8x16x240xbf16>, vector<8x16x240xbf16>, vector<8x16x240xbf16>, vector<8x16x80xbf16> -> vector<8x16x1280xbf16>
    %32 = vector.shape_cast %31 : vector<8x16x1280xbf16> to vector<128x1280xbf16>
    %c0_9 = arith.constant 0 : index
    %c0_10 = arith.constant 0 : index
    %33 = vector.load %arg4[%c0_9, %c0_10] : memref<1280x384xbf16, #tpu.memory_space<vmem>>, vector<1280x384xbf16>
    %cst_11 = arith.constant dense<0.000000e+00> : vector<128x384xf32>
    %34 = tpu.matmul %32, %33, %cst_11 {dimension_numbers = #tpu.dot_dimension_numbers<[1], [0], [0], [1], [0, 0, 1, 1], [], []>} : vector<128x1280xbf16>, vector<1280x384xbf16>, vector<128x384xf32> -> vector<128x384xf32>
    %c0_12 = arith.constant 0 : index
    %c0_13 = arith.constant 0 : index
    %35 = vector.load %arg5[%c0_12, %c0_13] : memref<1x384xf32, #tpu.memory_space<vmem>>, vector<1x384xf32>
    %36 = vector.broadcast %35 : vector<1x384xf32> to vector<128x384xf32>
    %37 = arith.addf %34, %36 : vector<128x384xf32>
    %38 = vector.shape_cast %37 : vector<128x384xf32> to vector<8x16x384xf32>
    %39 = vector.extract_strided_slice %38 {offsets = [0, 0, 0], sizes = [8, 1, 384], strides = [1, 1, 1]} : vector<8x16x384xf32> to vector<8x1x384xf32>
    %40 = vector.shape_cast %39 : vector<8x1x384xf32> to vector<8x384xf32>
    %41 = vector.extract_strided_slice %38 {offsets = [0, 2, 0], sizes = [8, 1, 384], strides = [1, 1, 1]} : vector<8x16x384xf32> to vector<8x1x384xf32>
    %42 = vector.shape_cast %41 : vector<8x1x384xf32> to vector<8x384xf32>
    %43 = arith.maximumf %40, %42 : vector<8x384xf32>
    %44 = vector.extract_strided_slice %43 {offsets = [0, 0], sizes = [8, 280], strides = [1, 1]} : vector<8x384xf32> to vector<8x280xf32>
    %45 = vector.extract_strided_slice %43 {offsets = [0, 40], sizes = [8, 280], strides = [1, 1]} : vector<8x384xf32> to vector<8x280xf32>
    %46 = arith.maximumf %44, %45 : vector<8x280xf32>
    %cst_14 = arith.constant 0.000000e+00 : f32
    %47 = vector.broadcast %cst_14 : f32 to vector<8x280xf32>
    %48 = arith.maximumf %46, %47 : vector<8x280xf32>
    %49 = arith.truncf %48 : vector<8x280xf32> to vector<8x280xbf16>
    %50 = vector.extract_strided_slice %38 {offsets = [0, 4, 0], sizes = [8, 1, 384], strides = [1, 1, 1]} : vector<8x16x384xf32> to vector<8x1x384xf32>
    %51 = vector.shape_cast %50 : vector<8x1x384xf32> to vector<8x384xf32>
    %52 = vector.extract_strided_slice %38 {offsets = [0, 6, 0], sizes = [8, 1, 384], strides = [1, 1, 1]} : vector<8x16x384xf32> to vector<8x1x384xf32>
    %53 = vector.shape_cast %52 : vector<8x1x384xf32> to vector<8x384xf32>
    %54 = arith.maximumf %51, %53 : vector<8x384xf32>
    %55 = vector.extract_strided_slice %54 {offsets = [0, 0], sizes = [8, 280], strides = [1, 1]} : vector<8x384xf32> to vector<8x280xf32>
    %56 = vector.extract_strided_slice %54 {offsets = [0, 40], sizes = [8, 280], strides = [1, 1]} : vector<8x384xf32> to vector<8x280xf32>
    %57 = arith.maximumf %55, %56 : vector<8x280xf32>
    %cst_15 = arith.constant 0.000000e+00 : f32
    %58 = vector.broadcast %cst_15 : f32 to vector<8x280xf32>
    %59 = arith.maximumf %57, %58 : vector<8x280xf32>
    %60 = arith.truncf %59 : vector<8x280xf32> to vector<8x280xbf16>
    %61 = vector.extract_strided_slice %38 {offsets = [0, 8, 0], sizes = [8, 1, 384], strides = [1, 1, 1]} : vector<8x16x384xf32> to vector<8x1x384xf32>
    %62 = vector.shape_cast %61 : vector<8x1x384xf32> to vector<8x384xf32>
    %63 = vector.extract_strided_slice %38 {offsets = [0, 10, 0], sizes = [8, 1, 384], strides = [1, 1, 1]} : vector<8x16x384xf32> to vector<8x1x384xf32>
    %64 = vector.shape_cast %63 : vector<8x1x384xf32> to vector<8x384xf32>
    %65 = arith.maximumf %62, %64 : vector<8x384xf32>
    %66 = vector.extract_strided_slice %65 {offsets = [0, 0], sizes = [8, 280], strides = [1, 1]} : vector<8x384xf32> to vector<8x280xf32>
    %67 = vector.extract_strided_slice %65 {offsets = [0, 40], sizes = [8, 280], strides = [1, 1]} : vector<8x384xf32> to vector<8x280xf32>
    %68 = arith.maximumf %66, %67 : vector<8x280xf32>
    %cst_16 = arith.constant 0.000000e+00 : f32
    %69 = vector.broadcast %cst_16 : f32 to vector<8x280xf32>
    %70 = arith.maximumf %68, %69 : vector<8x280xf32>
    %71 = arith.truncf %70 : vector<8x280xf32> to vector<8x280xbf16>
    %72 = vector.extract_strided_slice %38 {offsets = [0, 12, 0], sizes = [8, 1, 384], strides = [1, 1, 1]} : vector<8x16x384xf32> to vector<8x1x384xf32>
    %73 = vector.shape_cast %72 : vector<8x1x384xf32> to vector<8x384xf32>
    %74 = vector.extract_strided_slice %38 {offsets = [0, 14, 0], sizes = [8, 1, 384], strides = [1, 1, 1]} : vector<8x16x384xf32> to vector<8x1x384xf32>
    %75 = vector.shape_cast %74 : vector<8x1x384xf32> to vector<8x384xf32>
    %76 = arith.maximumf %73, %75 : vector<8x384xf32>
    %77 = vector.extract_strided_slice %76 {offsets = [0, 0], sizes = [8, 280], strides = [1, 1]} : vector<8x384xf32> to vector<8x280xf32>
    %78 = vector.extract_strided_slice %76 {offsets = [0, 40], sizes = [8, 280], strides = [1, 1]} : vector<8x384xf32> to vector<8x280xf32>
    %79 = arith.maximumf %77, %78 : vector<8x280xf32>
    %cst_17 = arith.constant 0.000000e+00 : f32
    %80 = vector.broadcast %cst_17 : f32 to vector<8x280xf32>
    %81 = arith.maximumf %79, %80 : vector<8x280xf32>
    %82 = arith.truncf %81 : vector<8x280xf32> to vector<8x280xbf16>
    %83 = tpu.concatenate %49, %60, %71, %82 in 1 : vector<8x280xbf16>, vector<8x280xbf16>, vector<8x280xbf16>, vector<8x280xbf16> -> vector<8x1120xbf16>
    %c0_18 = arith.constant 0 : index
    %c0_19 = arith.constant 0 : index
    %84 = vector.load %arg6[%c0_18, %c0_19] : memref<1120x50xbf16, #tpu.memory_space<vmem>>, vector<1120x50xbf16>
    %cst_20 = arith.constant dense<0.000000e+00> : vector<8x50xf32>
    %85 = tpu.matmul %83, %84, %cst_20 {dimension_numbers = #tpu.dot_dimension_numbers<[1], [0], [0], [1], [0, 0, 1, 1], [], []>} : vector<8x1120xbf16>, vector<1120x50xbf16>, vector<8x50xf32> -> vector<8x50xf32>
    %c0_21 = arith.constant 0 : index
    %c0_22 = arith.constant 0 : index
    %86 = vector.load %arg7[%c0_21, %c0_22] : memref<1x50xf32, #tpu.memory_space<vmem>>, vector<1x50xf32>
    %87 = vector.broadcast %86 : vector<1x50xf32> to vector<8x50xf32>
    %88 = arith.addf %85, %87 : vector<8x50xf32>
    %cst_23 = arith.constant 0.000000e+00 : f32
    %89 = vector.broadcast %cst_23 : f32 to vector<8x50xf32>
    %90 = arith.maximumf %88, %89 : vector<8x50xf32>
    %91 = arith.truncf %90 : vector<8x50xf32> to vector<8x50xbf16>
    %c0_24 = arith.constant 0 : index
    %c0_25 = arith.constant 0 : index
    %92 = vector.load %arg8[%c0_24, %c0_25] : memref<50x128xbf16, #tpu.memory_space<vmem>>, vector<50x128xbf16>
    %cst_26 = arith.constant dense<0.000000e+00> : vector<8x128xf32>
    %93 = tpu.matmul %91, %92, %cst_26 {dimension_numbers = #tpu.dot_dimension_numbers<[1], [0], [0], [1], [0, 0, 1, 1], [], []>} : vector<8x50xbf16>, vector<50x128xbf16>, vector<8x128xf32> -> vector<8x128xf32>
    %c0_27 = arith.constant 0 : index
    %c0_28 = arith.constant 0 : index
    %94 = vector.load %arg9[%c0_27, %c0_28] : memref<1x128xf32, #tpu.memory_space<vmem>>, vector<1x128xf32>
    %95 = vector.broadcast %94 : vector<1x128xf32> to vector<8x128xf32>
    %96 = arith.addf %93, %95 : vector<8x128xf32>
    %cst_29 = arith.constant dense<0xFF800000> : vector<8xf32>
    %97 = vector.multi_reduction <maximumf>, %96, %cst_29 [1] : vector<8x128xf32> to vector<8xf32>
    %98 = vector.shape_cast %97 : vector<8xf32> to vector<8x1xf32>
    %99 = vector.broadcast %98 : vector<8x1xf32> to vector<8x128xf32>
    %100 = arith.subf %96, %99 : vector<8x128xf32>
    %101 = math.exp %100 : vector<8x128xf32>
    %cst_30 = arith.constant dense<0.000000e+00> : vector<8xf32>
    %102 = vector.multi_reduction <add>, %101, %cst_30 [1] : vector<8x128xf32> to vector<8xf32>
    %103 = vector.shape_cast %102 : vector<8xf32> to vector<8x1xf32>
    %104 = math.log %103 : vector<8x1xf32>
    %105 = vector.broadcast %104 : vector<8x1xf32> to vector<8x128xf32>
    %106 = arith.subf %100, %105 : vector<8x128xf32>
    %c0_31 = arith.constant 0 : index
    %c0_32 = arith.constant 0 : index
    %107 = vector.load %arg10[%c0_31, %c0_32] : memref<8x128xf32, #tpu.memory_space<vmem>>, vector<8x128xf32>
    tpu.vector_store %arg10[%c0_31, %c0_32], %106 {strides = array<i32>} : memref<8x128xf32, #tpu.memory_space<vmem>>, vector<8x128xf32>,
    return
  }
  func.func @transform_0(%arg0: i32) -> (i32, i32, i32) {
    %c0_i32 = arith.constant 0 : i32
    %c0_i32_0 = arith.constant 0 : i32
    %c0_i32_1 = arith.constant 0 : i32
    return %arg0, %c0_i32, %c0_i32_0 : i32, i32, i32
  }
  func.func @transform_1(%arg0: i32) -> (i32, i32) {
    %c0_i32 = arith.constant 0 : i32
    %c0_i32_0 = arith.constant 0 : i32
    %c0_i32_1 = arith.constant 0 : i32
    return %c0_i32, %c0_i32_0 : i32, i32
  }
  func.func @transform_2(%arg0: i32) -> (i32, i32) {
    %c0_i32 = arith.constant 0 : i32
    %c0_i32_0 = arith.constant 0 : i32
    %c0_i32_1 = arith.constant 0 : i32
    return %c0_i32, %c0_i32_0 : i32, i32
  }
  func.func @transform_3(%arg0: i32) -> (i32, i32) {
    %c0_i32 = arith.constant 0 : i32
    %c0_i32_0 = arith.constant 0 : i32
    %c0_i32_1 = arith.constant 0 : i32
    return %c0_i32, %c0_i32_0 : i32, i32
  }
  func.func @transform_4(%arg0: i32) -> (i32, i32) {
    %c0_i32 = arith.constant 0 : i32
    %c0_i32_0 = arith.constant 0 : i32
    %c0_i32_1 = arith.constant 0 : i32
    return %c0_i32, %c0_i32_0 : i32, i32
  }
  func.func @transform_5(%arg0: i32) -> (i32, i32) {
    %c0_i32 = arith.constant 0 : i32
    %c0_i32_0 = arith.constant 0 : i32
    %c0_i32_1 = arith.constant 0 : i32
    return %c0_i32, %c0_i32_0 : i32, i32
  }
  func.func @transform_6(%arg0: i32) -> (i32, i32) {
    %c0_i32 = arith.constant 0 : i32
    %c0_i32_0 = arith.constant 0 : i32
    %c0_i32_1 = arith.constant 0 : i32
    return %c0_i32, %c0_i32_0 : i32, i32
  }
  func.func @transform_7(%arg0: i32) -> (i32, i32) {
    %c0_i32 = arith.constant 0 : i32
    %c0_i32_0 = arith.constant 0 : i32
    %c0_i32_1 = arith.constant 0 : i32
    return %c0_i32, %c0_i32_0 : i32, i32
  }
  func.func @transform_8(%arg0: i32) -> (i32, i32) {
    %c0_i32 = arith.constant 0 : i32
    %c0_i32_0 = arith.constant 0 : i32
    %c0_i32_1 = arith.constant 0 : i32
    return %c0_i32, %c0_i32_0 : i32, i32
  }
  func.func @transform_9(%arg0: i32) -> (i32, i32) {
    %c0_i32 = arith.constant 0 : i32
    %c0_i32_0 = arith.constant 0 : i32
    return %arg0, %c0_i32 : i32, i32
  }
}

</mosaic_0001>

<llo_original>
// kernel: net_forward.1
$region0: #{net_forward.1}
  #allocation0 [shape = 'u32[]', space=smem, size = 0x4, offset = 0x4, fixed_abs, tag = 'smem constant byte address 0x4 - core index']
  #allocation1 [shape = 'u32[72,128]{1,0:T(1,128)}', space=vmem, size = 0x9000, scoped, tag = 'internal scratch']
  %s0 = inlined_call_operand.vmem [shape: bf16[8,36,32], index: 0, kind: input, shape index: {}]
  %s1 = inlined_call_operand.vmem [shape: bf16[256,256], index: 1, kind: input, shape index: {}]
  %s2 = inlined_call_operand.vmem [shape: f32[1,256], index: 2, kind: input, shape index: {}]
  %s3 = inlined_call_operand.hbm [shape: bf16[1280,384], index: 3, kind: input, shape index: {}]
  %s4 = inlined_call_operand.vmem [shape: f32[1,384], index: 4, kind: input, shape index: {}]
  %s5 = inlined_call_operand.vmem [shape: bf16[1120,50], index: 5, kind: input, shape index: {}]
  %s6 = inlined_call_operand.vmem [shape: f32[1,50], index: 6, kind: input, shape index: {}]
  %s7 = inlined_call_operand.vmem [shape: bf16[50,128], index: 7, kind: input, shape index: {}]
  %s8 = inlined_call_operand.vmem [shape: f32[1,128], index: 8, kind: input, shape index: {}]
  %s9 = inlined_call_operand.vmem [shape: f32[8,128], index: 9, kind: output, shape index: {}]
  %s10 = sld [smem:[#allocation0]]
  $region50: #{net_forward.1} parent=0
    _
  %s12 = ssub.s32 1, %s10
  %s13 = scalar_select 0, %s12, %s10
  $region1: #{net_forward.1} parent=0
    #allocation2 [shape = 'u8[983040]{0}', space=vmem, size = 0xf0000, scoped, tag = 'input window, operand 3, single buffered']
    #allocation3 [shape = 's32[1]{0}', space=sflag, size = 0x4, scoped, tag = 'scoped memory for net_forward.1']
    %14 = vsyncpa [#allocation3], 0
    // Predicated region
    $region2: #{net_forward.1} parent=1 // pred_check
      _
    $region3: #{net_forward.1} parent=1 // pred_check_branch
      %16 = sbr.rel (0) target = $region5
    $region4: #{net_forward.1} parent=1 // pred_region
      _
    $region5: #{net_forward.1} parent=1 // pred_fallthru
      _
    // Predicated region
    $region6: #{net_forward.1} parent=1 // pred_check
      _
    $region7: #{net_forward.1} parent=1 // pred_check_branch
      %18 = sbr.rel (0) target = $region9
    $region8: #{net_forward.1} parent=1 // pred_region
      _
    $region9: #{net_forward.1} parent=1 // pred_fallthru
      _
    // Predicated region
    $region10: #{net_forward.1} parent=1 // pred_check
      _
    $region11: #{net_forward.1} parent=1 // pred_check_branch
      %20 = sbr.rel (0) target = $region13
    $region12: #{net_forward.1} parent=1 // pred_region
      _
    $region13: #{net_forward.1} parent=1 // pred_fallthru
      _
    // Predicated region
    $region14: #{net_forward.1} parent=1 // pred_check
      _
    $region15: #{net_forward.1} parent=1 // pred_check_branch
      %22 = sbr.rel (0) target = $region17
    $region16: #{net_forward.1} parent=1 // pred_region
      %24 = vsyncadd [#allocation3], 0
      %s25 = sshll.u32 %s3, 4
      %s26 = int_to_ptr.hbm [resolvable:$true] %s25
      %s27 = sshll.u32 [#allocation2], 4
      %s28 = int_to_ptr.vmem [resolvable:$true] %s27
      %33 = dma.hbm_to_vmem [thread:$0]  %s26, 30720, %s28, [#allocation3], 192, 192, 12
    $region17: #{net_forward.1} parent=1 // pred_fallthru
      _
    // Predicated region
    $region18: #{net_forward.1} parent=1 // pred_check
      _
    $region19: #{net_forward.1} parent=1 // pred_check_branch
      %35 = sbr.rel (0) target = $region21
    $region20: #{net_forward.1} parent=1 // pred_region
      _
    $region21: #{net_forward.1} parent=1 // pred_fallthru
      _
    // Predicated region
    $region22: #{net_forward.1} parent=1 // pred_check
      _
    $region23: #{net_forward.1} parent=1 // pred_check_branch
      %37 = sbr.rel (0) target = $region25
    $region24: #{net_forward.1} parent=1 // pred_region
      _
    $region25: #{net_forward.1} parent=1 // pred_fallthru
      _
    // Predicated region
    $region26: #{net_forward.1} parent=1 // pred_check
      _
    $region27: #{net_forward.1} parent=1 // pred_check_branch
      %39 = sbr.rel (0) target = $region29
    $region28: #{net_forward.1} parent=1 // pred_region
      _
    $region29: #{net_forward.1} parent=1 // pred_fallthru
      _
    // Predicated region
    $region30: #{net_forward.1} parent=1 // pred_check
      _
    $region31: #{net_forward.1} parent=1 // pred_check_branch
      %41 = sbr.rel (0) target = $region33
    $region32: #{net_forward.1} parent=1 // pred_region
      _
    $region33: #{net_forward.1} parent=1 // pred_fallthru
      _
    // Predicated region
    $region34: #{net_forward.1} parent=1 // pred_check
      _
    $region35: #{net_forward.1} parent=1 // pred_check_branch
      %43 = sbr.rel (0) target = $region37
    $region36: #{net_forward.1} parent=1 // pred_region
      _
    $region37: #{net_forward.1} parent=1 // pred_fallthru
      _
    // Predicated region
    $region38: #{net_forward.1} parent=1 // pred_check
      _
    $region39: #{net_forward.1} parent=1 // pred_check_branch
      %45 = sbr.rel (0) target = $region41
    $region40: #{net_forward.1} parent=1 // pred_region
      %47 = dma.done [#allocation3], 30720
    $region41: #{net_forward.1} parent=1 // pred_fallthru
      _
    %v49 = vld [vmem:[%s0] sm:$0xf]
    %v50 = vld [vmem:[%s0 + $0x4] sm:$0xf]
    %v51 = vld [vmem:[%s0 + $0x8] sm:$0xf]
    %v52 = vld [vmem:[%s0 + $0xc] sm:$0xf]
    %v53 = vld [vmem:[%s0 + $0x10] sm:$0x3]
    %v54 = vld [vmem:[%s0 + $0x14] sm:$0xf]
    %v55 = vld [vmem:[%s0 + $0x18] sm:$0xf]
    %v56 = vld [vmem:[%s0 + $0x1c] sm:$0xf]
    %v57 = vld [vmem:[%s0 + $0x20] sm:$0xf]
    %v58 = vld [vmem:[%s0 + $0x24] sm:$0x3]
    %v59 = vld [vmem:[%s0 + $0x28] sm:$0xf]
    %v60 = vld [vmem:[%s0 + $0x2c] sm:$0xf]
    %v61 = vld [vmem:[%s0 + $0x30] sm:$0xf]
    %v62 = vld [vmem:[%s0 + $0x34] sm:$0xf]
    %v63 = vld [vmem:[%s0 + $0x38] sm:$0x3]
    %v64 = vld [vmem:[%s0 + $0x3c] sm:$0xf]
    %v65 = vld [vmem:[%s0 + $0x40] sm:$0xf]
    %v66 = vld [vmem:[%s0 + $0x44] sm:$0xf]
    %v67 = vld [vmem:[%s0 + $0x48] sm:$0xf]
    %v68 = vld [vmem:[%s0 + $0x4c] sm:$0x3]
    %v69 = vld [vmem:[%s0 + $0x50] sm:$0xf]
    %v70 = vld [vmem:[%s0 + $0x54] sm:$0xf]
    %v71 = vld [vmem:[%s0 + $0x58] sm:$0xf]
    %v72 = vld [vmem:[%s0 + $0x5c] sm:$0xf]
    %v73 = vld [vmem:[%s0 + $0x60] sm:$0x3]
    %v74 = vld [vmem:[%s0 + $0x64] sm:$0xf]
    %v75 = vld [vmem:[%s0 + $0x68] sm:$0xf]
    %v76 = vld [vmem:[%s0 + $0x6c] sm:$0xf]
    %v77 = vld [vmem:[%s0 + $0x70] sm:$0xf]
    %v78 = vld [vmem:[%s0 + $0x74] sm:$0x3]
    %v79 = vld [vmem:[%s0 + $0x78] sm:$0xf]
    %v80 = vld [vmem:[%s0 + $0x7c] sm:$0xf]
    %v81 = vld [vmem:[%s0 + $0x80] sm:$0xf]
    %v82 = vld [vmem:[%s0 + $0x84] sm:$0xf]
    %v83 = vld [vmem:[%s0 + $0x88] sm:$0x3]
    %v84 = vld [vmem:[%s0 + $0x8c] sm:$0xf]
    %v85 = vld [vmem:[%s0 + $0x90] sm:$0xf]
    %v86 = vld [vmem:[%s0 + $0x94] sm:$0xf]
    %v87 = vld [vmem:[%s0 + $0x98] sm:$0xf]
    %v88 = vld [vmem:[%s0 + $0x9c] sm:$0x3]
    %v121 = vunpack.c.l.b16 %v49
    %v122 = vunpack.c.l.b16 %v50
    %v123 = vunpack.c.l.b16 %v51
    %v124 = vunpack.c.l.b16 %v52
    %v125 = vunpack.c.l.b16 %v54
    %v126 = vunpack.c.l.b16 %v55
    %v127 = vunpack.c.l.b16 %v56
    %v128 = vunpack.c.l.b16 %v57
    %v129 = vunpack.c.l.b16 %v59
    %v130 = vunpack.c.l.b16 %v60
    %v131 = vunpack.c.l.b16 %v61
    %v132 = vunpack.c.l.b16 %v62
    %v133 = vunpack.c.l.b16 %v64
    %v134 = vunpack.c.l.b16 %v65
    %v135 = vunpack.c.l.b16 %v66
    %v136 = vunpack.c.l.b16 %v67
    %v137 = vunpack.c.l.b16 %v69
    %v138 = vunpack.c.l.b16 %v70
    %v139 = vunpack.c.l.b16 %v71
    %v140 = vunpack.c.l.b16 %v72
    %v141 = vunpack.c.l.b16 %v74
    %v142 = vunpack.c.l.b16 %v75
    %v143 = vunpack.c.l.b16 %v76
    %v144 = vunpack.c.l.b16 %v77
    %v145 = vunpack.c.l.b16 %v79
    %v146 = vunpack.c.l.b16 %v80
    %v147 = vunpack.c.l.b16 %v81
    %v148 = vunpack.c.l.b16 %v82
    %v149 = vunpack.c.l.b16 %v84
    %v150 = vunpack.c.l.b16 %v85
    %v151 = vunpack.c.l.b16 %v86
    %v152 = vunpack.c.l.b16 %v87
    %v153 = vpack.c.b16 %v122, %v121
    %v154 = vpack.c.b16 %v124, %v123
    %v155 = vpack.c.b16 %v126, %v125
    %v156 = vpack.c.b16 %v128, %v127
    %v157 = vpack.c.b16 %v130, %v129
    %v158 = vpack.c.b16 %v132, %v131
    %v159 = vpack.c.b16 %v134, %v133
    %v160 = vpack.c.b16 %v136, %v135
    %v161 = vpack.c.b16 %v138, %v137
    %v162 = vpack.c.b16 %v140, %v139
    %v163 = vpack.c.b16 %v142, %v141
    %v164 = vpack.c.b16 %v144, %v143
    %v165 = vpack.c.b16 %v146, %v145
    %v166 = vpack.c.b16 %v148, %v147
    %v167 = vpack.c.b16 %v150, %v149
    %v168 = vpack.c.b16 %v152, %v151
    %v177 = vunpack.c.l.b16 %v53
    %v178 = vunpack.c.l.b16 %v58
    %v179 = vunpack.c.l.b16 %v63
    %v180 = vunpack.c.l.b16 %v68
    %v181 = vunpack.c.l.b16 %v73
    %v182 = vunpack.c.l.b16 %v78
    %v183 = vunpack.c.l.b16 %v83
    %v184 = vunpack.c.l.b16 %v88
    %v185 = vpack.c.b16 %v177, %v177
    %v186 = vpack.c.b16 %v178, %v178
    %v187 = vpack.c.b16 %v179, %v179
    %v188 = vpack.c.b16 %v180, %v180
    %v189 = vpack.c.b16 %v181, %v181
    %v190 = vpack.c.b16 %v182, %v182
    %v191 = vpack.c.b16 %v183, %v183
    %v192 = vpack.c.b16 %v184, %v184
    %vm193 = vsmask.f32 7424
    %v195 = vshrl.u32 %v153, 16
    %v197 = vshll.u32 %v153, 16
    %v199 = vrot.slane %v197, 1
    %v200 = vor.u32 %v195, %v199
    %v202 = vshll.u32 %v154, 16
    %v204 = vrot.slane %v202, 1
    %v205 = vsel %vm193, %v200, %v204
    %v206 = vshrl.u32 %v154, 16
    %v208 = vor.u32 %v206, %v204
    %v210 = vshll.u32 %v185, 16
    %v212 = vrot.slane %v210, 1
    %v213 = vsel %vm193, %v208, %v212
    %v215 = vshrl.u32 %v155, 16
    %v217 = vshll.u32 %v155, 16
    %v219 = vrot.slane %v217, 1
    %v220 = vor.u32 %v215, %v219
    %v222 = vshll.u32 %v156, 16
    %v224 = vrot.slane %v222, 1
    %v225 = vsel %vm193, %v220, %v224
    %v226 = vshrl.u32 %v156, 16
    %v228 = vor.u32 %v226, %v224
    %v230 = vshll.u32 %v186, 16
    %v232 = vrot.slane %v230, 1
    %v233 = vsel %vm193, %v228, %v232
    %v235 = vshrl.u32 %v157, 16
    %v237 = vshll.u32 %v157, 16
    %v239 = vrot.slane %v237, 1
    %v240 = vor.u32 %v235, %v239
    %v242 = vshll.u32 %v158, 16
    %v244 = vrot.slane %v242, 1
    %v245 = vsel %vm193, %v240, %v244
    %v246 = vshrl.u32 %v158, 16
    %v248 = vor.u32 %v246, %v244
    %v250 = vshll.u32 %v187, 16
    %v252 = vrot.slane %v250, 1
    %v253 = vsel %vm193, %v248, %v252
    %v255 = vshrl.u32 %v159, 16
    %v257 = vshll.u32 %v159, 16
    %v259 = vrot.slane %v257, 1
    %v260 = vor.u32 %v255, %v259
    %v262 = vshll.u32 %v160, 16
    %v264 = vrot.slane %v262, 1
    %v265 = vsel %vm193, %v260, %v264
    %v266 = vshrl.u32 %v160, 16
    %v268 = vor.u32 %v266, %v264
    %v270 = vshll.u32 %v188, 16
    %v272 = vrot.slane %v270, 1
    %v273 = vsel %vm193, %v268, %v272
    %v275 = vshrl.u32 %v161, 16
    %v277 = vshll.u32 %v161, 16
    %v279 = vrot.slane %v277, 1
    %v280 = vor.u32 %v275, %v279
    %v282 = vshll.u32 %v162, 16
    %v284 = vrot.slane %v282, 1
    %v285 = vsel %vm193, %v280, %v284
    %v286 = vshrl.u32 %v162, 16
    %v288 = vor.u32 %v286, %v284
    %v290 = vshll.u32 %v189, 16
    %v292 = vrot.slane %v290, 1
    %v293 = vsel %vm193, %v288, %v292
    %v295 = vshrl.u32 %v163, 16
    %v297 = vshll.u32 %v163, 16
    %v299 = vrot.slane %v297, 1
    %v300 = vor.u32 %v295, %v299
    %v302 = vshll.u32 %v164, 16
    %v304 = vrot.slane %v302, 1
    %v305 = vsel %vm193, %v300, %v304
    %v306 = vshrl.u32 %v164, 16
    %v308 = vor.u32 %v306, %v304
    %v310 = vshll.u32 %v190, 16
    %v312 = vrot.slane %v310, 1
    %v313 = vsel %vm193, %v308, %v312
    %v315 = vshrl.u32 %v165, 16
    %v317 = vshll.u32 %v165, 16
    %v319 = vrot.slane %v317, 1
    %v320 = vor.u32 %v315, %v319
    %v322 = vshll.u32 %v166, 16
    %v324 = vrot.slane %v322, 1
    %v325 = vsel %vm193, %v320, %v324
    %v326 = vshrl.u32 %v166, 16
    %v328 = vor.u32 %v326, %v324
    %v330 = vshll.u32 %v191, 16
    %v332 = vrot.slane %v330, 1
    %v333 = vsel %vm193, %v328, %v332
    %v335 = vshrl.u32 %v167, 16
    %v337 = vshll.u32 %v167, 16
    %v339 = vrot.slane %v337, 1
    %v340 = vor.u32 %v335, %v339
    %v342 = vshll.u32 %v168, 16
    %v344 = vrot.slane %v342, 1
    %v345 = vsel %vm193, %v340, %v344
    %v346 = vshrl.u32 %v168, 16
    %v348 = vor.u32 %v346, %v344
    %v350 = vshll.u32 %v192, 16
    %v352 = vrot.slane %v350, 1
    %v353 = vsel %vm193, %v348, %v352
    %354 = vrot.lane.b32.xlu0 %v205, 32
    %v355 = vpop.permute.xlu0 %354
    %356 = vrot.lane.b32.xlu0 %v213, 32
    %v357 = vpop.permute.xlu0 %356
    %358 = vrot.lane.b32.xlu0 %v225, 32
    %v359 = vpop.permute.xlu0 %358
    %360 = vrot.lane.b32.xlu0 %v233, 32
    %v361 = vpop.permute.xlu0 %360
    %362 = vrot.lane.b32.xlu0 %v245, 32
    %v363 = vpop.permute.xlu0 %362
    %364 = vrot.lane.b32.xlu0 %v253, 32
    %v365 = vpop.permute.xlu0 %364
    %366 = vrot.lane.b32.xlu0 %v265, 32
    %v367 = vpop.permute.xlu0 %366
    %368 = vrot.lane.b32.xlu0 %v273, 32
    %v369 = vpop.permute.xlu0 %368
    %370 = vrot.lane.b32.xlu0 %v285, 32
    %v371 = vpop.permute.xlu0 %370
    %372 = vrot.lane.b32.xlu0 %v293, 32
    %v373 = vpop.permute.xlu0 %372
    %374 = vrot.lane.b32.xlu0 %v305, 32
    %v375 = vpop.permute.xlu0 %374
    %376 = vrot.lane.b32.xlu0 %v313, 32
    %v377 = vpop.permute.xlu0 %376
    %378 = vrot.lane.b32.xlu0 %v325, 32
    %v379 = vpop.permute.xlu0 %378
    %380 = vrot.lane.b32.xlu0 %v333, 32
    %v381 = vpop.permute.xlu0 %380
    %382 = vrot.lane.b32.xlu0 %v345, 32
    %v383 = vpop.permute.xlu0 %382
    %384 = vrot.lane.b32.xlu0 %v353, 32
    %v385 = vpop.permute.xlu0 %384
    %vm386 = vcmask 1046528
    %v387 = vrot.slane %v153, 1
    %v388 = vrot.slane %v154, 1
    %v389 = vsel %vm386, %v387, %v388
    %v390 = vrot.slane %v185, 1
    %v391 = vsel %vm386, %v388, %v390
    %v392 = vrot.slane %v155, 1
    %v393 = vrot.slane %v156, 1
    %v394 = vsel %vm386, %v392, %v393
    %v395 = vrot.slane %v186, 1
    %v396 = vsel %vm386, %v393, %v395
    %v397 = vrot.slane %v157, 1
    %v398 = vrot.slane %v158, 1
    %v399 = vsel %vm386, %v397, %v398
    %v400 = vrot.slane %v187, 1
    %v401 = vsel %vm386, %v398, %v400
    %v402 = vrot.slane %v159, 1
    %v403 = vrot.slane %v160, 1
    %v404 = vsel %vm386, %v402, %v403
    %v405 = vrot.slane %v188, 1
    %v406 = vsel %vm386, %v403, %v405
    %v407 = vrot.slane %v161, 1
    %v408 = vrot.slane %v162, 1
    %v409 = vsel %vm386, %v407, %v408
    %v410 = vrot.slane %v189, 1
    %v411 = vsel %vm386, %v408, %v410
    %v412 = vrot.slane %v163, 1
    %v413 = vrot.slane %v164, 1
    %v414 = vsel %vm386, %v412, %v413
    %v415 = vrot.slane %v190, 1
    %v416 = vsel %vm386, %v413, %v415
    %v417 = vrot.slane %v165, 1
    %v418 = vrot.slane %v166, 1
    %v419 = vsel %vm386, %v417, %v418
    %v420 = vrot.slane %v191, 1
    %v421 = vsel %vm386, %v418, %v420
    %v422 = vrot.slane %v167, 1
    %v423 = vrot.slane %v168, 1
    %v424 = vsel %vm386, %v422, %v423
    %v425 = vrot.slane %v192, 1
    %v426 = vsel %vm386, %v423, %v425
    %427 = vrot.lane.b32.xlu0 %v389, 64
    %v428 = vpop.permute.xlu0 %427
    %429 = vrot.lane.b32.xlu0 %v391, 64
    %v430 = vpop.permute.xlu0 %429
    %431 = vrot.lane.b32.xlu0 %v394, 64
    %v432 = vpop.permute.xlu0 %431
    %433 = vrot.lane.b32.xlu0 %v396, 64
    %v434 = vpop.permute.xlu0 %433
    %435 = vrot.lane.b32.xlu0 %v399, 64
    %v436 = vpop.permute.xlu0 %435
    %437 = vrot.lane.b32.xlu0 %v401, 64
    %v438 = vpop.permute.xlu0 %437
    %439 = vrot.lane.b32.xlu0 %v404, 64
    %v440 = vpop.permute.xlu0 %439
    %441 = vrot.lane.b32.xlu0 %v406, 64
    %v442 = vpop.permute.xlu0 %441
    %443 = vrot.lane.b32.xlu0 %v409, 64
    %v444 = vpop.permute.xlu0 %443
    %445 = vrot.lane.b32.xlu0 %v411, 64
    %v446 = vpop.permute.xlu0 %445
    %447 = vrot.lane.b32.xlu0 %v414, 64
    %v448 = vpop.permute.xlu0 %447
    %449 = vrot.lane.b32.xlu0 %v416, 64
    %v450 = vpop.permute.xlu0 %449
    %451 = vrot.lane.b32.xlu0 %v419, 64
    %v452 = vpop.permute.xlu0 %451
    %453 = vrot.lane.b32.xlu0 %v421, 64
    %v454 = vpop.permute.xlu0 %453
    %455 = vrot.lane.b32.xlu0 %v424, 64
    %v456 = vpop.permute.xlu0 %455
    %457 = vrot.lane.b32.xlu0 %v426, 64
    %v458 = vpop.permute.xlu0 %457
    %vm459 = vsmask.f32 6400
    %v460 = vrot.slane %v195, 1
    %v461 = vrot.slane %v197, 2
    %v462 = vor.u32 %v460, %v461
    %v463 = vrot.slane %v206, 1
    %v464 = vrot.slane %v202, 2
    %v465 = vor.u32 %v463, %v464
    %v466 = vsel %vm459, %v462, %v465
    %v467 = vshrl.u32 %v185, 16
    %v469 = vrot.slane %v467, 1
    %v470 = vrot.slane %v210, 2
    %v471 = vor.u32 %v469, %v470
    %v472 = vsel %vm459, %v465, %v471
    %v473 = vrot.slane %v215, 1
    %v474 = vrot.slane %v217, 2
    %v475 = vor.u32 %v473, %v474
    %v476 = vrot.slane %v226, 1
    %v477 = vrot.slane %v222, 2
    %v478 = vor.u32 %v476, %v477
    %v479 = vsel %vm459, %v475, %v478
    %v480 = vshrl.u32 %v186, 16
    %v482 = vrot.slane %v480, 1
    %v483 = vrot.slane %v230, 2
    %v484 = vor.u32 %v482, %v483
    %v485 = vsel %vm459, %v478, %v484
    %v486 = vrot.slane %v235, 1
    %v487 = vrot.slane %v237, 2
    %v488 = vor.u32 %v486, %v487
    %v489 = vrot.slane %v246, 1
    %v490 = vrot.slane %v242, 2
    %v491 = vor.u32 %v489, %v490
    %v492 = vsel %vm459, %v488, %v491
    %v493 = vshrl.u32 %v187, 16
    %v495 = vrot.slane %v493, 1
    %v496 = vrot.slane %v250, 2
    %v497 = vor.u32 %v495, %v496
    %v498 = vsel %vm459, %v491, %v497
    %v499 = vrot.slane %v255, 1
    %v500 = vrot.slane %v257, 2
    %v501 = vor.u32 %v499, %v500
    %v502 = vrot.slane %v266, 1
    %v503 = vrot.slane %v262, 2
    %v504 = vor.u32 %v502, %v503
    %v505 = vsel %vm459, %v501, %v504
    %v506 = vshrl.u32 %v188, 16
    %v508 = vrot.slane %v506, 1
    %v509 = vrot.slane %v270, 2
    %v510 = vor.u32 %v508, %v509
    %v511 = vsel %vm459, %v504, %v510
    %v512 = vrot.slane %v275, 1
    %v513 = vrot.slane %v277, 2
    %v514 = vor.u32 %v512, %v513
    %v515 = vrot.slane %v286, 1
    %v516 = vrot.slane %v282, 2
    %v517 = vor.u32 %v515, %v516
    %v518 = vsel %vm459, %v514, %v517
    %v519 = vshrl.u32 %v189, 16
    %v521 = vrot.slane %v519, 1
    %v522 = vrot.slane %v290, 2
    %v523 = vor.u32 %v521, %v522
    %v524 = vsel %vm459, %v517, %v523
    %v525 = vrot.slane %v295, 1
    %v526 = vrot.slane %v297, 2
    %v527 = vor.u32 %v525, %v526
    %v528 = vrot.slane %v306, 1
    %v529 = vrot.slane %v302, 2
    %v530 = vor.u32 %v528, %v529
    %v531 = vsel %vm459, %v527, %v530
    %v532 = vshrl.u32 %v190, 16
    %v534 = vrot.slane %v532, 1
    %v535 = vrot.slane %v310, 2
    %v536 = vor.u32 %v534, %v535
    %v537 = vsel %vm459, %v530, %v536
    %v538 = vrot.slane %v315, 1
    %v539 = vrot.slane %v317, 2
    %v540 = vor.u32 %v538, %v539
    %v541 = vrot.slane %v326, 1
    %v542 = vrot.slane %v322, 2
    %v543 = vor.u32 %v541, %v542
    %v544 = vsel %vm459, %v540, %v543
    %v545 = vshrl.u32 %v191, 16
    %v547 = vrot.slane %v545, 1
    %v548 = vrot.slane %v330, 2
    %v549 = vor.u32 %v547, %v548
    %v550 = vsel %vm459, %v543, %v549
    %v551 = vrot.slane %v335, 1
    %v552 = vrot.slane %v337, 2
    %v553 = vor.u32 %v551, %v552
    %v554 = vrot.slane %v346, 1
    %v555 = vrot.slane %v342, 2
    %v556 = vor.u32 %v554, %v555
    %v557 = vsel %vm459, %v553, %v556
    %v558 = vshrl.u32 %v192, 16
    %v560 = vrot.slane %v558, 1
    %v561 = vrot.slane %v350, 2
    %v562 = vor.u32 %v560, %v561
    %v563 = vsel %vm459, %v556, %v562
    %564 = vrot.lane.b32.xlu0 %v466, 96
    %v565 = vpop.permute.xlu0 %564
    %566 = vrot.lane.b32.xlu0 %v472, 96
    %v567 = vpop.permute.xlu0 %566
    %568 = vrot.lane.b32.xlu0 %v479, 96
    %v569 = vpop.permute.xlu0 %568
    %570 = vrot.lane.b32.xlu0 %v485, 96
    %v571 = vpop.permute.xlu0 %570
    %572 = vrot.lane.b32.xlu0 %v492, 96
    %v573 = vpop.permute.xlu0 %572
    %574 = vrot.lane.b32.xlu0 %v498, 96
    %v575 = vpop.permute.xlu0 %574
    %576 = vrot.lane.b32.xlu0 %v505, 96
    %v577 = vpop.permute.xlu0 %576
    %578 = vrot.lane.b32.xlu0 %v511, 96
    %v579 = vpop.permute.xlu0 %578
    %580 = vrot.lane.b32.xlu0 %v518, 96
    %v581 = vpop.permute.xlu0 %580
    %582 = vrot.lane.b32.xlu0 %v524, 96
    %v583 = vpop.permute.xlu0 %582
    %584 = vrot.lane.b32.xlu0 %v531, 96
    %v585 = vpop.permute.xlu0 %584
    %586 = vrot.lane.b32.xlu0 %v537, 96
    %v587 = vpop.permute.xlu0 %586
    %588 = vrot.lane.b32.xlu0 %v544, 96
    %v589 = vpop.permute.xlu0 %588
    %590 = vrot.lane.b32.xlu0 %v550, 96
    %v591 = vpop.permute.xlu0 %590
    %592 = vrot.lane.b32.xlu0 %v557, 96
    %v593 = vpop.permute.xlu0 %592
    %594 = vrot.lane.b32.xlu0 %v563, 96
    %v595 = vpop.permute.xlu0 %594
    %vm596 = vcmask 1045504
    %v597 = vrot.slane %v153, 2
    %v598 = vrot.slane %v154, 2
    %v599 = vsel %vm596, %v597, %v598
    %v600 = vrot.slane %v185, 2
    %v601 = vsel %vm596, %v598, %v600
    %v602 = vrot.slane %v155, 2
    %v603 = vrot.slane %v156, 2
    %v604 = vsel %vm596, %v602, %v603
    %v605 = vrot.slane %v186, 2
    %v606 = vsel %vm596, %v603, %v605
    %v607 = vrot.slane %v157, 2
    %v608 = vrot.slane %v158, 2
    %v609 = vsel %vm596, %v607, %v608
    %v610 = vrot.slane %v187, 2
    %v611 = vsel %vm596, %v608, %v610
    %v612 = vrot.slane %v159, 2
    %v613 = vrot.slane %v160, 2
    %v614 = vsel %vm596, %v612, %v613
    %v615 = vrot.slane %v188, 2
    %v616 = vsel %vm596, %v613, %v615
    %v617 = vrot.slane %v161, 2
    %v618 = vrot.slane %v162, 2
    %v619 = vsel %vm596, %v617, %v618
    %v620 = vrot.slane %v189, 2
    %v621 = vsel %vm596, %v618, %v620
    %v622 = vrot.slane %v163, 2
    %v623 = vrot.slane %v164, 2
    %v624 = vsel %vm596, %v622, %v623
    %v625 = vrot.slane %v190, 2
    %v626 = vsel %vm596, %v623, %v625
    %v627 = vrot.slane %v165, 2
    %v628 = vrot.slane %v166, 2
    %v629 = vsel %vm596, %v627, %v628
    %v630 = vrot.slane %v191, 2
    %v631 = vsel %vm596, %v628, %v630
    %v632 = vrot.slane %v167, 2
    %v633 = vrot.slane %v168, 2
    %v634 = vsel %vm596, %v632, %v633
    %v635 = vrot.slane %v192, 2
    %v636 = vsel %vm596, %v633, %v635
    %vm637 = vcmask 261120
    %v639 = vsel %vm637, %v153, %v355
    %v641 = vsel %vm637, %v154, %v357
    %v643 = vsel %vm637, %v155, %v359
    %v645 = vsel %vm637, %v156, %v361
    %v647 = vsel %vm637, %v157, %v363
    %v649 = vsel %vm637, %v158, %v365
    %v651 = vsel %vm637, %v159, %v367
    %v653 = vsel %vm637, %v160, %v369
    %v655 = vsel %vm637, %v161, %v371
    %v657 = vsel %vm637, %v162, %v373
    %v659 = vsel %vm637, %v163, %v375
    %v661 = vsel %vm637, %v164, %v377
    %v663 = vsel %vm637, %v165, %v379
    %v665 = vsel %vm637, %v166, %v381
    %v667 = vsel %vm637, %v167, %v383
    %v669 = vsel %vm637, %v168, %v385
    %vm670 = vcmask 523264
    %v672 = vsel %vm670, %v639, %v428
    %v674 = vsel %vm670, %v641, %v430
    %v676 = vsel %vm670, %v643, %v432
    %v678 = vsel %vm670, %v645, %v434
    %v680 = vsel %vm670, %v647, %v436
    %v682 = vsel %vm670, %v649, %v438
    %v684 = vsel %vm670, %v651, %v440
    %v686 = vsel %vm670, %v653, %v442
    %v688 = vsel %vm670, %v655, %v444
    %v690 = vsel %vm670, %v657, %v446
    %v692 = vsel %vm670, %v659, %v448
    %v694 = vsel %vm670, %v661, %v450
    %v696 = vsel %vm670, %v663, %v452
    %v698 = vsel %vm670, %v665, %v454
    %v700 = vsel %vm670, %v667, %v456
    %v702 = vsel %vm670, %v669, %v458
    %vm703 = vcmask 785408
    %v705 = vsel %vm703, %v672, %v565
    %v708 = vsel %vm703, %v674, %v567
    %v711 = vsel %vm703, %v676, %v569
    %v714 = vsel %vm703, %v678, %v571
    %v717 = vsel %vm703, %v680, %v573
    %v720 = vsel %vm703, %v682, %v575
    %v723 = vsel %vm703, %v684, %v577
    %v726 = vsel %vm703, %v686, %v579
    %v729 = vsel %vm703, %v688, %v581
    %v732 = vsel %vm703, %v690, %v583
    %v735 = vsel %vm703, %v692, %v585
    %v738 = vsel %vm703, %v694, %v587
    %v741 = vsel %vm703, %v696, %v589
    %v744 = vsel %vm703, %v698, %v591
    %v747 = vsel %vm703, %v700, %v593
    %v750 = vsel %vm703, %v702, %v595
    %v754 = vsel %vm637, %v599, 0
    %v757 = vsel %vm637, %v601, 0
    %v760 = vsel %vm637, %v604, 0
    %v763 = vsel %vm637, %v606, 0
    %v766 = vsel %vm637, %v609, 0
    %v769 = vsel %vm637, %v611, 0
    %v772 = vsel %vm637, %v614, 0
    %v775 = vsel %vm637, %v616, 0
    %v778 = vsel %vm637, %v619, 0
    %v781 = vsel %vm637, %v621, 0
    %v784 = vsel %vm637, %v624, 0
    %v787 = vsel %vm637, %v626, 0
    %v790 = vsel %vm637, %v629, 0
    %v793 = vsel %vm637, %v631, 0
    %v796 = vsel %vm637, %v634, 0
    %v799 = vsel %vm637, %v636, 0
    %v801 = vld [vmem:[%s1] sm:$0xff]
    %v802 = vld [vmem:[%s1 + $0x8] sm:$0xff]
    %v803 = vld [vmem:[%s1 + $0x10] sm:$0xff]
    %v804 = vld [vmem:[%s1 + $0x18] sm:$0xff]
    %v805 = vld [vmem:[%s1 + $0x20] sm:$0xff]
    %v806 = vld [vmem:[%s1 + $0x28] sm:$0xff]
    %v807 = vld [vmem:[%s1 + $0x30] sm:$0xff]
    %v808 = vld [vmem:[%s1 + $0x38] sm:$0xff]
    %v809 = vld [vmem:[%s1 + $0x40] sm:$0xff]
    %v810 = vld [vmem:[%s1 + $0x48] sm:$0xff]
    %v811 = vld [vmem:[%s1 + $0x50] sm:$0xff]
    %v812 = vld [vmem:[%s1 + $0x58] sm:$0xff]
    %v813 = vld [vmem:[%s1 + $0x60] sm:$0xff]
    %v814 = vld [vmem:[%s1 + $0x68] sm:$0xff]
    %v815 = vld [vmem:[%s1 + $0x70] sm:$0xff]
    %v816 = vld [vmem:[%s1 + $0x78] sm:$0xff]
    %v817 = vld [vmem:[%s1 + $0x80] sm:$0xff]
    %v818 = vld [vmem:[%s1 + $0x88] sm:$0xff]
    %v819 = vld [vmem:[%s1 + $0x90] sm:$0xff]
    %v820 = vld [vmem:[%s1 + $0x98] sm:$0xff]
    %v821 = vld [vmem:[%s1 + $0xa0] sm:$0xff]
    %v822 = vld [vmem:[%s1 + $0xa8] sm:$0xff]
    %v823 = vld [vmem:[%s1 + $0xb0] sm:$0xff]
    %v824 = vld [vmem:[%s1 + $0xb8] sm:$0xff]
    %v825 = vld [vmem:[%s1 + $0xc0] sm:$0xff]
    %v826 = vld [vmem:[%s1 + $0xc8] sm:$0xff]
    %v827 = vld [vmem:[%s1 + $0xd0] sm:$0xff]
    %v828 = vld [vmem:[%s1 + $0xd8] sm:$0xff]
    %v829 = vld [vmem:[%s1 + $0xe0] sm:$0xff]
    %v830 = vld [vmem:[%s1 + $0xe8] sm:$0xff]
    %v831 = vld [vmem:[%s1 + $0xf0] sm:$0xff]
    %v832 = vld [vmem:[%s1 + $0xf8] sm:$0xff]
    %v833 = vld [vmem:[%s2] sm:$0x3]
    %v835 = vperm.slane %v833, 0
    %v836 = vperm.slane %v833, 1
    %v871 = vunpack.c.l.b16 %v801
    %v872 = vunpack.c.h.b16 %v801
    %v873 = vunpack.c.l.b16 %v802
    %v874 = vunpack.c.h.b16 %v802
    %v875 = vunpack.c.l.b16 %v803
    %v876 = vunpack.c.h.b16 %v803
    %v877 = vunpack.c.l.b16 %v804
    %v878 = vunpack.c.h.b16 %v804
    %v879 = vunpack.c.l.b16 %v805
    %v880 = vunpack.c.h.b16 %v805
    %v881 = vunpack.c.l.b16 %v806
    %v882 = vunpack.c.h.b16 %v806
    %v883 = vunpack.c.l.b16 %v807
    %v884 = vunpack.c.h.b16 %v807
    %v885 = vunpack.c.l.b16 %v808
    %v886 = vunpack.c.h.b16 %v808
    %v887 = vunpack.c.l.b16 %v809
    %v888 = vunpack.c.h.b16 %v809
    %v889 = vunpack.c.l.b16 %v810
    %v890 = vunpack.c.h.b16 %v810
    %v891 = vunpack.c.l.b16 %v811
    %v892 = vunpack.c.h.b16 %v811
    %v893 = vunpack.c.l.b16 %v812
    %v894 = vunpack.c.h.b16 %v812
    %v895 = vunpack.c.l.b16 %v813
    %v896 = vunpack.c.h.b16 %v813
    %v897 = vunpack.c.l.b16 %v814
    %v898 = vunpack.c.h.b16 %v814
    %v899 = vunpack.c.l.b16 %v815
    %v900 = vunpack.c.h.b16 %v815
    %v901 = vunpack.c.l.b16 %v816
    %v902 = vunpack.c.h.b16 %v816
    %v903 = vunpack.c.l.b16 %v817
    %v904 = vunpack.c.h.b16 %v817
    %v905 = vunpack.c.l.b16 %v818
    %v906 = vunpack.c.h.b16 %v818
    %v907 = vunpack.c.l.b16 %v819
    %v908 = vunpack.c.h.b16 %v819
    %v909 = vunpack.c.l.b16 %v820
    %v910 = vunpack.c.h.b16 %v820
    %v911 = vunpack.c.l.b16 %v821
    %v912 = vunpack.c.h.b16 %v821
    %v913 = vunpack.c.l.b16 %v822
    %v914 = vunpack.c.h.b16 %v822
    %v915 = vunpack.c.l.b16 %v823
    %v916 = vunpack.c.h.b16 %v823
    %v917 = vunpack.c.l.b16 %v824
    %v918 = vunpack.c.h.b16 %v824
    %v919 = vunpack.c.l.b16 %v825
    %v920 = vunpack.c.h.b16 %v825
    %v921 = vunpack.c.l.b16 %v826
    %v922 = vunpack.c.h.b16 %v826
    %v923 = vunpack.c.l.b16 %v827
    %v924 = vunpack.c.h.b16 %v827
    %v925 = vunpack.c.l.b16 %v828
    %v926 = vunpack.c.h.b16 %v828
    %v927 = vunpack.c.l.b16 %v829
    %v928 = vunpack.c.h.b16 %v829
    %v929 = vunpack.c.l.b16 %v830
    %v930 = vunpack.c.h.b16 %v830
    %v931 = vunpack.c.l.b16 %v831
    %v932 = vunpack.c.h.b16 %v831
    %v933 = vunpack.c.l.b16 %v832
    %v934 = vunpack.c.h.b16 %v832
    %v935 = vpack.c.b16 %v873, %v871
    %v936 = vpack.c.b16 %v874, %v872
    %v937 = vpack.c.b16 %v877, %v875
    %v938 = vpack.c.b16 %v878, %v876
    %v939 = vpack.c.b16 %v881, %v879
    %v940 = vpack.c.b16 %v882, %v880
    %v941 = vpack.c.b16 %v885, %v883
    %v942 = vpack.c.b16 %v886, %v884
    %v943 = vpack.c.b16 %v889, %v887
    %v944 = vpack.c.b16 %v890, %v888
    %v945 = vpack.c.b16 %v893, %v891
    %v946 = vpack.c.b16 %v894, %v892
    %v947 = vpack.c.b16 %v897, %v895
    %v948 = vpack.c.b16 %v898, %v896
    %v949 = vpack.c.b16 %v901, %v899
    %v950 = vpack.c.b16 %v902, %v900
    %v951 = vpack.c.b16 %v905, %v903
    %v952 = vpack.c.b16 %v906, %v904
    %v953 = vpack.c.b16 %v909, %v907
    %v954 = vpack.c.b16 %v910, %v908
    %v955 = vpack.c.b16 %v913, %v911
    %v956 = vpack.c.b16 %v914, %v912
    %v957 = vpack.c.b16 %v917, %v915
    %v958 = vpack.c.b16 %v918, %v916
    %v959 = vpack.c.b16 %v921, %v919
    %v960 = vpack.c.b16 %v922, %v920
    %v961 = vpack.c.b16 %v925, %v923
    %v962 = vpack.c.b16 %v926, %v924
    %v963 = vpack.c.b16 %v929, %v927
    %v964 = vpack.c.b16 %v930, %v928
    %v965 = vpack.c.b16 %v933, %v931
    %v966 = vpack.c.b16 %v934, %v932
    %999 = vmatpush.bf16.msra.mxu0 %v949
    %1000 = vmatpush.bf16.msra.mxu0 %v947
    %1001 = vmatpush.bf16.msra.mxu0 %v945
    %1002 = vmatpush.bf16.msra.mxu0 %v943
    %1003 = vmatpush.bf16.msra.mxu0 %v941
    %1004 = vmatpush.bf16.msra.mxu0 %v939
    %1005 = vmatpush.bf16.msra.mxu0 %v937
    %1006 = vmatpush.bf16.msra.mxu0 %v935
    %1007 = vmatmul.bf16.gmra.mxu0 %v705
    %v1008 = vpop.f32.mrf.mxu0
    %v1009 = vadd.f32 %v835, %v1008
    %v1010 = vpop.f32.mrf.mxu0
    %v1011 = vadd.f32 %v835, %v1010
    %1012 = vmatmul.bf16.gmra.mxu0 %v708
    %v1013 = vpop.f32.mrf.mxu0
    %v1014 = vadd.f32 %v835, %v1013
    %v1015 = vpop.f32.mrf.mxu0
    %v1016 = vadd.f32 %v835, %v1015
    %1017 = vmatmul.bf16.gmra.mxu0 %v711
    %v1018 = vpop.f32.mrf.mxu0
    %v1019 = vadd.f32 %v835, %v1018
    %v1020 = vpop.f32.mrf.mxu0
    %v1021 = vadd.f32 %v835, %v1020
    %1022 = vmatmul.bf16.gmra.mxu0 %v714
    %v1023 = vpop.f32.mrf.mxu0
    %v1024 = vadd.f32 %v835, %v1023
    %v1025 = vpop.f32.mrf.mxu0
    %v1026 = vadd.f32 %v835, %v1025
    %1027 = vmatmul.bf16.gmra.mxu0 %v717
    %v1028 = vpop.f32.mrf.mxu0
    %v1029 = vadd.f32 %v835, %v1028
    %v1030 = vpop.f32.mrf.mxu0
    %v1031 = vadd.f32 %v835, %v1030
    %1032 = vmatmul.bf16.gmra.mxu0 %v720
    %v1033 = vpop.f32.mrf.mxu0
    %v1034 = vadd.f32 %v835, %v1033
    %v1035 = vpop.f32.mrf.mxu0
    %v1036 = vadd.f32 %v835, %v1035
    %1037 = vmatmul.bf16.gmra.mxu0 %v723
    %v1038 = vpop.f32.mrf.mxu0
    %v1039 = vadd.f32 %v835, %v1038
    %v1040 = vpop.f32.mrf.mxu0
    %v1041 = vadd.f32 %v835, %v1040
    %1042 = vmatmul.bf16.gmra.mxu0 %v726
    %v1043 = vpop.f32.mrf.mxu0
    %v1044 = vadd.f32 %v835, %v1043
    %v1045 = vpop.f32.mrf.mxu0
    %v1046 = vadd.f32 %v835, %v1045
    %1047 = vmatmul.bf16.gmra.mxu0 %v729
    %v1048 = vpop.f32.mrf.mxu0
    %v1049 = vadd.f32 %v835, %v1048
    %v1050 = vpop.f32.mrf.mxu0
    %v1051 = vadd.f32 %v835, %v1050
    %1052 = vmatmul.bf16.gmra.mxu0 %v732
    %v1053 = vpop.f32.mrf.mxu0
    %v1054 = vadd.f32 %v835, %v1053
    %v1055 = vpop.f32.mrf.mxu0
    %v1056 = vadd.f32 %v835, %v1055
    %1057 = vmatmul.bf16.gmra.mxu0 %v735
    %v1058 = vpop.f32.mrf.mxu0
    %v1059 = vadd.f32 %v835, %v1058
    %v1060 = vpop.f32.mrf.mxu0
    %v1061 = vadd.f32 %v835, %v1060
    %1062 = vmatmul.bf16.gmra.mxu0 %v738
    %v1063 = vpop.f32.mrf.mxu0
    %v1064 = vadd.f32 %v835, %v1063
    %v1065 = vpop.f32.mrf.mxu0
    %v1066 = vadd.f32 %v835, %v1065
    %1067 = vmatmul.bf16.gmra.mxu0 %v741
    %v1068 = vpop.f32.mrf.mxu0
    %v1069 = vadd.f32 %v835, %v1068
    %v1070 = vpop.f32.mrf.mxu0
    %v1071 = vadd.f32 %v835, %v1070
    %1072 = vmatmul.bf16.gmra.mxu0 %v744
    %v1073 = vpop.f32.mrf.mxu0
    %v1074 = vadd.f32 %v835, %v1073
    %v1075 = vpop.f32.mrf.mxu0
    %v1076 = vadd.f32 %v835, %v1075
    %1077 = vmatmul.bf16.gmra.mxu0 %v747
    %v1078 = vpop.f32.mrf.mxu0
    %v1079 = vadd.f32 %v835, %v1078
    %v1080 = vpop.f32.mrf.mxu0
    %v1081 = vadd.f32 %v835, %v1080
    %1082 = vmatmul.bf16.gmra.mxu0 %v750
    %v1083 = vpop.f32.mrf.mxu0
    %v1084 = vadd.f32 %v835, %v1083
    %v1085 = vpop.f32.mrf.mxu0
    %v1086 = vadd.f32 %v835, %v1085
    %1087 = vdwg.mxu0
    %1088 = vmatpush.bf16.msra.mxu0 %v965
    %1089 = vmatpush.bf16.msra.mxu0 %v963
    %1090 = vmatpush.bf16.msra.mxu0 %v961
    %1091 = vmatpush.bf16.msra.mxu0 %v959
    %1092 = vmatpush.bf16.msra.mxu0 %v957
    %1093 = vmatpush.bf16.msra.mxu0 %v955
    %1094 = vmatpush.bf16.msra.mxu0 %v953
    %1095 = vmatpush.bf16.msra.mxu0 %v951
    %1096 = vmatmul.bf16.gmra.mxu0 %v754
    %v1097 = vpop.f32.mrf.mxu0
    %v1098 = vadd.f32 %v1009, %v1097
    %v1099 = vpop.f32.mrf.mxu0
    %v1100 = vadd.f32 %v1011, %v1099
    %1101 = vmatmul.bf16.gmra.mxu0 %v757
    %v1102 = vpop.f32.mrf.mxu0
    %v1103 = vadd.f32 %v1014, %v1102
    %v1104 = vpop.f32.mrf.mxu0
    %v1105 = vadd.f32 %v1016, %v1104
    %1106 = vmatmul.bf16.gmra.mxu0 %v760
    %v1107 = vpop.f32.mrf.mxu0
    %v1108 = vadd.f32 %v1019, %v1107
    %v1109 = vpop.f32.mrf.mxu0
    %v1110 = vadd.f32 %v1021, %v1109
    %1111 = vmatmul.bf16.gmra.mxu0 %v763
    %v1112 = vpop.f32.mrf.mxu0
    %v1113 = vadd.f32 %v1024, %v1112
    %v1114 = vpop.f32.mrf.mxu0
    %v1115 = vadd.f32 %v1026, %v1114
    %1116 = vmatmul.bf16.gmra.mxu0 %v766
    %v1117 = vpop.f32.mrf.mxu0
    %v1118 = vadd.f32 %v1029, %v1117
    %v1119 = vpop.f32.mrf.mxu0
    %v1120 = vadd.f32 %v1031, %v1119
    %1121 = vmatmul.bf16.gmra.mxu0 %v769
    %v1122 = vpop.f32.mrf.mxu0
    %v1123 = vadd.f32 %v1034, %v1122
    %v1124 = vpop.f32.mrf.mxu0
    %v1125 = vadd.f32 %v1036, %v1124
    %1126 = vmatmul.bf16.gmra.mxu0 %v772
    %v1127 = vpop.f32.mrf.mxu0
    %v1128 = vadd.f32 %v1039, %v1127
    %v1129 = vpop.f32.mrf.mxu0
    %v1130 = vadd.f32 %v1041, %v1129
    %1131 = vmatmul.bf16.gmra.mxu0 %v775
    %v1132 = vpop.f32.mrf.mxu0
    %v1133 = vadd.f32 %v1044, %v1132
    %v1134 = vpop.f32.mrf.mxu0
    %v1135 = vadd.f32 %v1046, %v1134
    %1136 = vmatmul.bf16.gmra.mxu0 %v778
    %v1137 = vpop.f32.mrf.mxu0
    %v1138 = vadd.f32 %v1049, %v1137
    %v1139 = vpop.f32.mrf.mxu0
    %v1140 = vadd.f32 %v1051, %v1139
    %1141 = vmatmul.bf16.gmra.mxu0 %v781
    %v1142 = vpop.f32.mrf.mxu0
    %v1143 = vadd.f32 %v1054, %v1142
    %v1144 = vpop.f32.mrf.mxu0
    %v1145 = vadd.f32 %v1056, %v1144
    %1146 = vmatmul.bf16.gmra.mxu0 %v784
    %v1147 = vpop.f32.mrf.mxu0
    %v1148 = vadd.f32 %v1059, %v1147
    %v1149 = vpop.f32.mrf.mxu0
    %v1150 = vadd.f32 %v1061, %v1149
    %1151 = vmatmul.bf16.gmra.mxu0 %v787
    %v1152 = vpop.f32.mrf.mxu0
    %v1153 = vadd.f32 %v1064, %v1152
    %v1154 = vpop.f32.mrf.mxu0
    %v1155 = vadd.f32 %v1066, %v1154
    %1156 = vmatmul.bf16.gmra.mxu0 %v790
    %v1157 = vpop.f32.mrf.mxu0
    %v1158 = vadd.f32 %v1069, %v1157
    %v1159 = vpop.f32.mrf.mxu0
    %v1160 = vadd.f32 %v1071, %v1159
    %1161 = vmatmul.bf16.gmra.mxu0 %v793
    %v1162 = vpop.f32.mrf.mxu0
    %v1163 = vadd.f32 %v1074, %v1162
    %v1164 = vpop.f32.mrf.mxu0
    %v1165 = vadd.f32 %v1076, %v1164
    %1166 = vmatmul.bf16.gmra.mxu0 %v796
    %v1167 = vpop.f32.mrf.mxu0
    %v1168 = vadd.f32 %v1079, %v1167
    %v1169 = vpop.f32.mrf.mxu0
    %v1170 = vadd.f32 %v1081, %v1169
    %1171 = vmatmul.bf16.gmra.mxu0 %v799
    %v1172 = vpop.f32.mrf.mxu0
    %v1173 = vadd.f32 %v1084, %v1172
    %v1174 = vpop.f32.mrf.mxu0
    %v1175 = vadd.f32 %v1086, %v1174
    %1176 = vdwg.mxu0
    %1177 = vmatpush.bf16.msra.mxu0 %v950
    %1178 = vmatpush.bf16.msra.mxu0 %v948
    %1179 = vmatpush.bf16.msra.mxu0 %v946
    %1180 = vmatpush.bf16.msra.mxu0 %v944
    %1181 = vmatpush.bf16.msra.mxu0 %v942
    %1182 = vmatpush.bf16.msra.mxu0 %v940
    %1183 = vmatpush.bf16.msra.mxu0 %v938
    %1184 = vmatpush.bf16.msra.mxu0 %v936
    %1185 = vmatmul.bf16.gmra.mxu0 %v705
    %v1186 = vpop.f32.mrf.mxu0
    %v1187 = vadd.f32 %v836, %v1186
    %v1188 = vpop.f32.mrf.mxu0
    %v1189 = vadd.f32 %v836, %v1188
    %1190 = vmatmul.bf16.gmra.mxu0 %v708
    %v1191 = vpop.f32.mrf.mxu0
    %v1192 = vadd.f32 %v836, %v1191
    %v1193 = vpop.f32.mrf.mxu0
    %v1194 = vadd.f32 %v836, %v1193
    %1195 = vmatmul.bf16.gmra.mxu0 %v711
    %v1196 = vpop.f32.mrf.mxu0
    %v1197 = vadd.f32 %v836, %v1196
    %v1198 = vpop.f32.mrf.mxu0
    %v1199 = vadd.f32 %v836, %v1198
    %1200 = vmatmul.bf16.gmra.mxu0 %v714
    %v1201 = vpop.f32.mrf.mxu0
    %v1202 = vadd.f32 %v836, %v1201
    %v1203 = vpop.f32.mrf.mxu0
    %v1204 = vadd.f32 %v836, %v1203
    %1205 = vmatmul.bf16.gmra.mxu0 %v717
    %v1206 = vpop.f32.mrf.mxu0
    %v1207 = vadd.f32 %v836, %v1206
    %v1208 = vpop.f32.mrf.mxu0
    %v1209 = vadd.f32 %v836, %v1208
    %1210 = vmatmul.bf16.gmra.mxu0 %v720
    %v1211 = vpop.f32.mrf.mxu0
    %v1212 = vadd.f32 %v836, %v1211
    %v1213 = vpop.f32.mrf.mxu0
    %v1214 = vadd.f32 %v836, %v1213
    %1215 = vmatmul.bf16.gmra.mxu0 %v723
    %v1216 = vpop.f32.mrf.mxu0
    %v1217 = vadd.f32 %v836, %v1216
    %v1218 = vpop.f32.mrf.mxu0
    %v1219 = vadd.f32 %v836, %v1218
    %1220 = vmatmul.bf16.gmra.mxu0 %v726
    %v1221 = vpop.f32.mrf.mxu0
    %v1222 = vadd.f32 %v836, %v1221
    %v1223 = vpop.f32.mrf.mxu0
    %v1224 = vadd.f32 %v836, %v1223
    %1225 = vmatmul.bf16.gmra.mxu0 %v729
    %v1226 = vpop.f32.mrf.mxu0
    %v1227 = vadd.f32 %v836, %v1226
    %v1228 = vpop.f32.mrf.mxu0
    %v1229 = vadd.f32 %v836, %v1228
    %1230 = vmatmul.bf16.gmra.mxu0 %v732
    %v1231 = vpop.f32.mrf.mxu0
    %v1232 = vadd.f32 %v836, %v1231
    %v1233 = vpop.f32.mrf.mxu0
    %v1234 = vadd.f32 %v836, %v1233
    %1235 = vmatmul.bf16.gmra.mxu0 %v735
    %v1236 = vpop.f32.mrf.mxu0
    %v1237 = vadd.f32 %v836, %v1236
    %v1238 = vpop.f32.mrf.mxu0
    %v1239 = vadd.f32 %v836, %v1238
    %1240 = vmatmul.bf16.gmra.mxu0 %v738
    %v1241 = vpop.f32.mrf.mxu0
    %v1242 = vadd.f32 %v836, %v1241
    %v1243 = vpop.f32.mrf.mxu0
    %v1244 = vadd.f32 %v836, %v1243
    %1245 = vmatmul.bf16.gmra.mxu0 %v741
    %v1246 = vpop.f32.mrf.mxu0
    %v1247 = vadd.f32 %v836, %v1246
    %v1248 = vpop.f32.mrf.mxu0
    %v1249 = vadd.f32 %v836, %v1248
    %1250 = vmatmul.bf16.gmra.mxu0 %v744
    %v1251 = vpop.f32.mrf.mxu0
    %v1252 = vadd.f32 %v836, %v1251
    %v1253 = vpop.f32.mrf.mxu0
    %v1254 = vadd.f32 %v836, %v1253
    %1255 = vmatmul.bf16.gmra.mxu0 %v747
    %v1256 = vpop.f32.mrf.mxu0
    %v1257 = vadd.f32 %v836, %v1256
    %v1258 = vpop.f32.mrf.mxu0
    %v1259 = vadd.f32 %v836, %v1258
    %1260 = vmatmul.bf16.gmra.mxu0 %v750
    %v1261 = vpop.f32.mrf.mxu0
    %v1262 = vadd.f32 %v836, %v1261
    %v1263 = vpop.f32.mrf.mxu0
    %v1264 = vadd.f32 %v836, %v1263
    %1265 = vdwg.mxu0
    %1266 = vmatpush.bf16.msra.mxu0 %v966
    %1267 = vmatpush.bf16.msra.mxu0 %v964
    %1268 = vmatpush.bf16.msra.mxu0 %v962
    %1269 = vmatpush.bf16.msra.mxu0 %v960
    %1270 = vmatpush.bf16.msra.mxu0 %v958
    %1271 = vmatpush.bf16.msra.mxu0 %v956
    %1272 = vmatpush.bf16.msra.mxu0 %v954
    %1273 = vmatpush.bf16.msra.mxu0 %v952
    %1274 = vmatmul.bf16.gmra.mxu0 %v754
    %v1275 = vpop.f32.mrf.mxu0
    %v1276 = vadd.f32 %v1187, %v1275
    %v1277 = vpop.f32.mrf.mxu0
    %v1278 = vadd.f32 %v1189, %v1277
    %1279 = vmatmul.bf16.gmra.mxu0 %v757
    %v1280 = vpop.f32.mrf.mxu0
    %v1281 = vadd.f32 %v1192, %v1280
    %v1282 = vpop.f32.mrf.mxu0
    %v1283 = vadd.f32 %v1194, %v1282
    %1284 = vmatmul.bf16.gmra.mxu0 %v760
    %v1285 = vpop.f32.mrf.mxu0
    %v1286 = vadd.f32 %v1197, %v1285
    %v1287 = vpop.f32.mrf.mxu0
    %v1288 = vadd.f32 %v1199, %v1287
    %1289 = vmatmul.bf16.gmra.mxu0 %v763
    %v1290 = vpop.f32.mrf.mxu0
    %v1291 = vadd.f32 %v1202, %v1290
    %v1292 = vpop.f32.mrf.mxu0
    %v1293 = vadd.f32 %v1204, %v1292
    %1294 = vmatmul.bf16.gmra.mxu0 %v766
    %v1295 = vpop.f32.mrf.mxu0
    %v1296 = vadd.f32 %v1207, %v1295
    %v1297 = vpop.f32.mrf.mxu0
    %v1298 = vadd.f32 %v1209, %v1297
    %1299 = vmatmul.bf16.gmra.mxu0 %v769
    %v1300 = vpop.f32.mrf.mxu0
    %v1301 = vadd.f32 %v1212, %v1300
    %v1302 = vpop.f32.mrf.mxu0
    %v1303 = vadd.f32 %v1214, %v1302
    %1304 = vmatmul.bf16.gmra.mxu0 %v772
    %v1305 = vpop.f32.mrf.mxu0
    %v1306 = vadd.f32 %v1217, %v1305
    %v1307 = vpop.f32.mrf.mxu0
    %v1308 = vadd.f32 %v1219, %v1307
    %1309 = vmatmul.bf16.gmra.mxu0 %v775
    %v1310 = vpop.f32.mrf.mxu0
    %v1311 = vadd.f32 %v1222, %v1310
    %v1312 = vpop.f32.mrf.mxu0
    %v1313 = vadd.f32 %v1224, %v1312
    %1314 = vmatmul.bf16.gmra.mxu0 %v778
    %v1315 = vpop.f32.mrf.mxu0
    %v1316 = vadd.f32 %v1227, %v1315
    %v1317 = vpop.f32.mrf.mxu0
    %v1318 = vadd.f32 %v1229, %v1317
    %1319 = vmatmul.bf16.gmra.mxu0 %v781
    %v1320 = vpop.f32.mrf.mxu0
    %v1321 = vadd.f32 %v1232, %v1320
    %v1322 = vpop.f32.mrf.mxu0
    %v1323 = vadd.f32 %v1234, %v1322
    %1324 = vmatmul.bf16.gmra.mxu0 %v784
    %v1325 = vpop.f32.mrf.mxu0
    %v1326 = vadd.f32 %v1237, %v1325
    %v1327 = vpop.f32.mrf.mxu0
    %v1328 = vadd.f32 %v1239, %v1327
    %1329 = vmatmul.bf16.gmra.mxu0 %v787
    %v1330 = vpop.f32.mrf.mxu0
    %v1331 = vadd.f32 %v1242, %v1330
    %v1332 = vpop.f32.mrf.mxu0
    %v1333 = vadd.f32 %v1244, %v1332
    %1334 = vmatmul.bf16.gmra.mxu0 %v790
    %v1335 = vpop.f32.mrf.mxu0
    %v1336 = vadd.f32 %v1247, %v1335
    %v1337 = vpop.f32.mrf.mxu0
    %v1338 = vadd.f32 %v1249, %v1337
    %1339 = vmatmul.bf16.gmra.mxu0 %v793
    %v1340 = vpop.f32.mrf.mxu0
    %v1341 = vadd.f32 %v1252, %v1340
    %v1342 = vpop.f32.mrf.mxu0
    %v1343 = vadd.f32 %v1254, %v1342
    %1344 = vmatmul.bf16.gmra.mxu0 %v796
    %v1345 = vpop.f32.mrf.mxu0
    %v1346 = vadd.f32 %v1257, %v1345
    %v1347 = vpop.f32.mrf.mxu0
    %v1348 = vadd.f32 %v1259, %v1347
    %1349 = vmatmul.bf16.gmra.mxu0 %v799
    %v1350 = vpop.f32.mrf.mxu0
    %v1351 = vadd.f32 %v1262, %v1350
    %v1352 = vpop.f32.mrf.mxu0
    %v1353 = vadd.f32 %v1264, %v1352
    %1354 = vdwg.mxu0
    %1403 = vrot.lane.b32.xlu0 %v1098, 118
    %v1404 = vpop.permute.xlu0 %1403
    %1405 = vrot.lane.b32.xlu0 %v1276, 118
    %v1406 = vpop.permute.xlu0 %1405
    %1407 = vrot.lane.b32.xlu0 %v1100, 118
    %v1408 = vpop.permute.xlu0 %1407
    %1409 = vrot.lane.b32.xlu0 %v1278, 118
    %v1410 = vpop.permute.xlu0 %1409
    %1411 = vrot.lane.b32.xlu0 %v1103, 118
    %v1412 = vpop.permute.xlu0 %1411
    %1413 = vrot.lane.b32.xlu0 %v1281, 118
    %v1414 = vpop.permute.xlu0 %1413
    %1415 = vrot.lane.b32.xlu0 %v1108, 118
    %v1416 = vpop.permute.xlu0 %1415
    %1417 = vrot.lane.b32.xlu0 %v1286, 118
    %v1418 = vpop.permute.xlu0 %1417
    %1419 = vrot.lane.b32.xlu0 %v1110, 118
    %v1420 = vpop.permute.xlu0 %1419
    %1421 = vrot.lane.b32.xlu0 %v1288, 118
    %v1422 = vpop.permute.xlu0 %1421
    %1423 = vrot.lane.b32.xlu0 %v1113, 118
    %v1424 = vpop.permute.xlu0 %1423
    %1425 = vrot.lane.b32.xlu0 %v1291, 118
    %v1426 = vpop.permute.xlu0 %1425
    %1427 = vrot.lane.b32.xlu0 %v1118, 118
    %v1428 = vpop.permute.xlu0 %1427
    %1429 = vrot.lane.b32.xlu0 %v1296, 118
    %v1430 = vpop.permute.xlu0 %1429
    %1431 = vrot.lane.b32.xlu0 %v1120, 118
    %v1432 = vpop.permute.xlu0 %1431
    %1433 = vrot.lane.b32.xlu0 %v1298, 118
    %v1434 = vpop.permute.xlu0 %1433
    %1435 = vrot.lane.b32.xlu0 %v1123, 118
    %v1436 = vpop.permute.xlu0 %1435
    %1437 = vrot.lane.b32.xlu0 %v1301, 118
    %v1438 = vpop.permute.xlu0 %1437
    %1439 = vrot.lane.b32.xlu0 %v1128, 118
    %v1440 = vpop.permute.xlu0 %1439
    %1441 = vrot.lane.b32.xlu0 %v1306, 118
    %v1442 = vpop.permute.xlu0 %1441
    %1443 = vrot.lane.b32.xlu0 %v1130, 118
    %v1444 = vpop.permute.xlu0 %1443
    %1445 = vrot.lane.b32.xlu0 %v1308, 118
    %v1446 = vpop.permute.xlu0 %1445
    %1447 = vrot.lane.b32.xlu0 %v1133, 118
    %v1448 = vpop.permute.xlu0 %1447
    %1449 = vrot.lane.b32.xlu0 %v1311, 118
    %v1450 = vpop.permute.xlu0 %1449
    %1451 = vrot.lane.b32.xlu0 %v1138, 118
    %v1452 = vpop.permute.xlu0 %1451
    %1453 = vrot.lane.b32.xlu0 %v1316, 118
    %v1454 = vpop.permute.xlu0 %1453
    %1455 = vrot.lane.b32.xlu0 %v1140, 118
    %v1456 = vpop.permute.xlu0 %1455
    %1457 = vrot.lane.b32.xlu0 %v1318, 118
    %v1458 = vpop.permute.xlu0 %1457
    %1459 = vrot.lane.b32.xlu0 %v1143, 118
    %v1460 = vpop.permute.xlu0 %1459
    %1461 = vrot.lane.b32.xlu0 %v1321, 118
    %v1462 = vpop.permute.xlu0 %1461
    %1463 = vrot.lane.b32.xlu0 %v1148, 118
    %v1464 = vpop.permute.xlu0 %1463
    %1465 = vrot.lane.b32.xlu0 %v1326, 118
    %v1466 = vpop.permute.xlu0 %1465
    %1467 = vrot.lane.b32.xlu0 %v1150, 118
    %v1468 = vpop.permute.xlu0 %1467
    %1469 = vrot.lane.b32.xlu0 %v1328, 118
    %v1470 = vpop.permute.xlu0 %1469
    %1471 = vrot.lane.b32.xlu0 %v1153, 118
    %v1472 = vpop.permute.xlu0 %1471
    %1473 = vrot.lane.b32.xlu0 %v1331, 118
    %v1474 = vpop.permute.xlu0 %1473
    %1475 = vrot.lane.b32.xlu0 %v1158, 118
    %v1476 = vpop.permute.xlu0 %1475
    %1477 = vrot.lane.b32.xlu0 %v1336, 118
    %v1478 = vpop.permute.xlu0 %1477
    %1479 = vrot.lane.b32.xlu0 %v1160, 118
    %v1480 = vpop.permute.xlu0 %1479
    %1481 = vrot.lane.b32.xlu0 %v1338, 118
    %v1482 = vpop.permute.xlu0 %1481
    %1483 = vrot.lane.b32.xlu0 %v1163, 118
    %v1484 = vpop.permute.xlu0 %1483
    %1485 = vrot.lane.b32.xlu0 %v1341, 118
    %v1486 = vpop.permute.xlu0 %1485
    %1487 = vrot.lane.b32.xlu0 %v1168, 118
    %v1488 = vpop.permute.xlu0 %1487
    %1489 = vrot.lane.b32.xlu0 %v1346, 118
    %v1490 = vpop.permute.xlu0 %1489
    %1491 = vrot.lane.b32.xlu0 %v1170, 118
    %v1492 = vpop.permute.xlu0 %1491
    %1493 = vrot.lane.b32.xlu0 %v1348, 118
    %v1494 = vpop.permute.xlu0 %1493
    %1495 = vrot.lane.b32.xlu0 %v1173, 118
    %v1496 = vpop.permute.xlu0 %1495
    %1497 = vrot.lane.b32.xlu0 %v1351, 118
    %v1498 = vpop.permute.xlu0 %1497
    %vm1499 = vcmask 965632
    %v1500 = vsel %vm1499, %v1404, %v1406
    %v1501 = vsel %vm1499, %v1408, %v1410
    %v1502 = vsel %vm1499, %v1412, %v1414
    %v1503 = vsel %vm1499, %v1416, %v1418
    %v1504 = vsel %vm1499, %v1420, %v1422
    %v1505 = vsel %vm1499, %v1424, %v1426
    %v1506 = vsel %vm1499, %v1428, %v1430
    %v1507 = vsel %vm1499, %v1432, %v1434
    %v1508 = vsel %vm1499, %v1436, %v1438
    %v1509 = vsel %vm1499, %v1440, %v1442
    %v1510 = vsel %vm1499, %v1444, %v1446
    %v1511 = vsel %vm1499, %v1448, %v1450
    %v1512 = vsel %vm1499, %v1452, %v1454
    %v1513 = vsel %vm1499, %v1456, %v1458
    %v1514 = vsel %vm1499, %v1460, %v1462
    %v1515 = vsel %vm1499, %v1464, %v1466
    %v1516 = vsel %vm1499, %v1468, %v1470
    %v1517 = vsel %vm1499, %v1472, %v1474
    %v1518 = vsel %vm1499, %v1476, %v1478
    %v1519 = vsel %vm1499, %v1480, %v1482
    %v1520 = vsel %vm1499, %v1484, %v1486
    %v1521 = vsel %vm1499, %v1488, %v1490
    %v1522 = vsel %vm1499, %v1492, %v1494
    %v1523 = vsel %vm1499, %v1496, %v1498
    %v1572 = vmax.f32 %v1098, %v1500
    %v1573 = vmax.f32 %v1276, %v1406
    %v1574 = vmax.f32 %v1100, %v1501
    %v1575 = vmax.f32 %v1278, %v1410
    %v1576 = vmax.f32 %v1103, %v1502
    %v1577 = vmax.f32 %v1281, %v1414
    %v1578 = vmax.f32 %v1108, %v1503
    %v1579 = vmax.f32 %v1286, %v1418
    %v1580 = vmax.f32 %v1110, %v1504
    %v1581 = vmax.f32 %v1288, %v1422
    %v1582 = vmax.f32 %v1113, %v1505
    %v1583 = vmax.f32 %v1291, %v1426
    %v1584 = vmax.f32 %v1118, %v1506
    %v1585 = vmax.f32 %v1296, %v1430
    %v1586 = vmax.f32 %v1120, %v1507
    %v1587 = vmax.f32 %v1298, %v1434
    %v1588 = vmax.f32 %v1123, %v1508
    %v1589 = vmax.f32 %v1301, %v1438
    %v1590 = vmax.f32 %v1128, %v1509
    %v1591 = vmax.f32 %v1306, %v1442
    %v1592 = vmax.f32 %v1130, %v1510
    %v1593 = vmax.f32 %v1308, %v1446
    %v1594 = vmax.f32 %v1133, %v1511
    %v1595 = vmax.f32 %v1311, %v1450
    %v1596 = vmax.f32 %v1138, %v1512
    %v1597 = vmax.f32 %v1316, %v1454
    %v1598 = vmax.f32 %v1140, %v1513
    %v1599 = vmax.f32 %v1318, %v1458
    %v1600 = vmax.f32 %v1143, %v1514
    %v1601 = vmax.f32 %v1321, %v1462
    %v1602 = vmax.f32 %v1148, %v1515
    %v1603 = vmax.f32 %v1326, %v1466
    %v1604 = vmax.f32 %v1150, %v1516
    %v1605 = vmax.f32 %v1328, %v1470
    %v1606 = vmax.f32 %v1153, %v1517
    %v1607 = vmax.f32 %v1331, %v1474
    %v1608 = vmax.f32 %v1158, %v1518
    %v1609 = vmax.f32 %v1336, %v1478
    %v1610 = vmax.f32 %v1160, %v1519
    %v1611 = vmax.f32 %v1338, %v1482
    %v1612 = vmax.f32 %v1163, %v1520
    %v1613 = vmax.f32 %v1341, %v1486
    %v1614 = vmax.f32 %v1168, %v1521
    %v1615 = vmax.f32 %v1346, %v1490
    %v1616 = vmax.f32 %v1170, %v1522
    %v1617 = vmax.f32 %v1348, %v1494
    %v1618 = vmax.f32 %v1173, %v1523
    %v1619 = vmax.f32 %v1351, %v1498
    %1636 = vrot.lane.b32.xlu0 %v1105, 118
    %v1637 = vpop.permute.xlu0 %1636
    %1638 = vrot.lane.b32.xlu0 %v1283, 118
    %v1639 = vpop.permute.xlu0 %1638
    %1640 = vrot.lane.b32.xlu0 %v1115, 118
    %v1641 = vpop.permute.xlu0 %1640
    %1642 = vrot.lane.b32.xlu0 %v1293, 118
    %v1643 = vpop.permute.xlu0 %1642
    %1644 = vrot.lane.b32.xlu0 %v1125, 118
    %v1645 = vpop.permute.xlu0 %1644
    %1646 = vrot.lane.b32.xlu0 %v1303, 118
    %v1647 = vpop.permute.xlu0 %1646
    %1648 = vrot.lane.b32.xlu0 %v1135, 118
    %v1649 = vpop.permute.xlu0 %1648
    %1650 = vrot.lane.b32.xlu0 %v1313, 118
    %v1651 = vpop.permute.xlu0 %1650
    %1652 = vrot.lane.b32.xlu0 %v1145, 118
    %v1653 = vpop.permute.xlu0 %1652
    %1654 = vrot.lane.b32.xlu0 %v1323, 118
    %v1655 = vpop.permute.xlu0 %1654
    %1656 = vrot.lane.b32.xlu0 %v1155, 118
    %v1657 = vpop.permute.xlu0 %1656
    %1658 = vrot.lane.b32.xlu0 %v1333, 118
    %v1659 = vpop.permute.xlu0 %1658
    %1660 = vrot.lane.b32.xlu0 %v1165, 118
    %v1661 = vpop.permute.xlu0 %1660
    %1662 = vrot.lane.b32.xlu0 %v1343, 118
    %v1663 = vpop.permute.xlu0 %1662
    %1664 = vrot.lane.b32.xlu0 %v1175, 118
    %v1665 = vpop.permute.xlu0 %1664
    %1666 = vrot.lane.b32.xlu0 %v1353, 118
    %v1667 = vpop.permute.xlu0 %1666
    %v1668 = vsel %vm1499, %v1637, %v1639
    %v1669 = vsel %vm1499, %v1641, %v1643
    %v1670 = vsel %vm1499, %v1645, %v1647
    %v1671 = vsel %vm1499, %v1649, %v1651
    %v1672 = vsel %vm1499, %v1653, %v1655
    %v1673 = vsel %vm1499, %v1657, %v1659
    %v1674 = vsel %vm1499, %v1661, %v1663
    %v1675 = vsel %vm1499, %v1665, %v1667
    %v1692 = vmax.f32 %v1105, %v1668
    %v1693 = vmax.f32 %v1283, %v1639
    %v1694 = vmax.f32 %v1115, %v1669
    %v1695 = vmax.f32 %v1293, %v1643
    %v1696 = vmax.f32 %v1125, %v1670
    %v1697 = vmax.f32 %v1303, %v1647
    %v1698 = vmax.f32 %v1135, %v1671
    %v1699 = vmax.f32 %v1313, %v1651
    %v1700 = vmax.f32 %v1145, %v1672
    %v1701 = vmax.f32 %v1323, %v1655
    %v1702 = vmax.f32 %v1155, %v1673
    %v1703 = vmax.f32 %v1333, %v1659
    %v1704 = vmax.f32 %v1165, %v1674
    %v1705 = vmax.f32 %v1343, %v1663
    %v1706 = vmax.f32 %v1175, %v1675
    %v1707 = vmax.f32 %v1353, %v1667
    %vm1772 = vcmask 1046528
    %v1773 = vrot.slane %v1572, 1
    %v1774 = vrot.slane %v1574, 1
    %v1775 = vsel %vm1772, %v1773, %v1774
    %v1776 = vrot.slane %v1573, 1
    %v1777 = vrot.slane %v1575, 1
    %v1778 = vsel %vm1772, %v1776, %v1777
    %v1779 = vrot.slane %v1576, 1
    %v1780 = vsel %vm1772, %v1774, %v1779
    %v1781 = vrot.slane %v1577, 1
    %v1782 = vsel %vm1772, %v1777, %v1781
    %v1783 = vrot.slane %v1692, 1
    %v1784 = vsel %vm1772, %v1779, %v1783
    %v1785 = vrot.slane %v1693, 1
    %v1786 = vsel %vm1772, %v1781, %v1785
    %v1787 = vrot.slane %v1578, 1
    %v1788 = vrot.slane %v1580, 1
    %v1789 = vsel %vm1772, %v1787, %v1788
    %v1790 = vrot.slane %v1579, 1
    %v1791 = vrot.slane %v1581, 1
    %v1792 = vsel %vm1772, %v1790, %v1791
    %v1793 = vrot.slane %v1582, 1
    %v1794 = vsel %vm1772, %v1788, %v1793
    %v1795 = vrot.slane %v1583, 1
    %v1796 = vsel %vm1772, %v1791, %v1795
    %v1797 = vrot.slane %v1694, 1
    %v1798 = vsel %vm1772, %v1793, %v1797
    %v1799 = vrot.slane %v1695, 1
    %v1800 = vsel %vm1772, %v1795, %v1799
    %v1801 = vrot.slane %v1584, 1
    %v1802 = vrot.slane %v1586, 1
    %v1803 = vsel %vm1772, %v1801, %v1802
    %v1804 = vrot.slane %v1585, 1
    %v1805 = vrot.slane %v1587, 1
    %v1806 = vsel %vm1772, %v1804, %v1805
    %v1807 = vrot.slane %v1588, 1
    %v1808 = vsel %vm1772, %v1802, %v1807
    %v1809 = vrot.slane %v1589, 1
    %v1810 = vsel %vm1772, %v1805, %v1809
    %v1811 = vrot.slane %v1696, 1
    %v1812 = vsel %vm1772, %v1807, %v1811
    %v1813 = vrot.slane %v1697, 1
    %v1814 = vsel %vm1772, %v1809, %v1813
    %v1815 = vrot.slane %v1590, 1
    %v1816 = vrot.slane %v1592, 1
    %v1817 = vsel %vm1772, %v1815, %v1816
    %v1818 = vrot.slane %v1591, 1
    %v1819 = vrot.slane %v1593, 1
    %v1820 = vsel %vm1772, %v1818, %v1819
    %v1821 = vrot.slane %v1594, 1
    %v1822 = vsel %vm1772, %v1816, %v1821
    %v1823 = vrot.slane %v1595, 1
    %v1824 = vsel %vm1772, %v1819, %v1823
    %v1825 = vrot.slane %v1698, 1
    %v1826 = vsel %vm1772, %v1821, %v1825
    %v1827 = vrot.slane %v1699, 1
    %v1828 = vsel %vm1772, %v1823, %v1827
    %v1829 = vrot.slane %v1596, 1
    %v1830 = vrot.slane %v1598, 1
    %v1831 = vsel %vm1772, %v1829, %v1830
    %v1832 = vrot.slane %v1597, 1
    %v1833 = vrot.slane %v1599, 1
    %v1834 = vsel %vm1772, %v1832, %v1833
    %v1835 = vrot.slane %v1600, 1
    %v1836 = vsel %vm1772, %v1830, %v1835
    %v1837 = vrot.slane %v1601, 1
    %v1838 = vsel %vm1772, %v1833, %v1837
    %v1839 = vrot.slane %v1700, 1
    %v1840 = vsel %vm1772, %v1835, %v1839
    %v1841 = vrot.slane %v1701, 1
    %v1842 = vsel %vm1772, %v1837, %v1841
    %v1843 = vrot.slane %v1602, 1
    %v1844 = vrot.slane %v1604, 1
    %v1845 = vsel %vm1772, %v1843, %v1844
    %v1846 = vrot.slane %v1603, 1
    %v1847 = vrot.slane %v1605, 1
    %v1848 = vsel %vm1772, %v1846, %v1847
    %v1849 = vrot.slane %v1606, 1
    %v1850 = vsel %vm1772, %v1844, %v1849
    %v1851 = vrot.slane %v1607, 1
    %v1852 = vsel %vm1772, %v1847, %v1851
    %v1853 = vrot.slane %v1702, 1
    %v1854 = vsel %vm1772, %v1849, %v1853
    %v1855 = vrot.slane %v1703, 1
    %v1856 = vsel %vm1772, %v1851, %v1855
    %v1857 = vrot.slane %v1608, 1
    %v1858 = vrot.slane %v1610, 1
    %v1859 = vsel %vm1772, %v1857, %v1858
    %v1860 = vrot.slane %v1609, 1
    %v1861 = vrot.slane %v1611, 1
    %v1862 = vsel %vm1772, %v1860, %v1861
    %v1863 = vrot.slane %v1612, 1
    %v1864 = vsel %vm1772, %v1858, %v1863
    %v1865 = vrot.slane %v1613, 1
    %v1866 = vsel %vm1772, %v1861, %v1865
    %v1867 = vrot.slane %v1704, 1
    %v1868 = vsel %vm1772, %v1863, %v1867
    %v1869 = vrot.slane %v1705, 1
    %v1870 = vsel %vm1772, %v1865, %v1869
    %v1871 = vrot.slane %v1614, 1
    %v1872 = vrot.slane %v1616, 1
    %v1873 = vsel %vm1772, %v1871, %v1872
    %v1874 = vrot.slane %v1615, 1
    %v1875 = vrot.slane %v1617, 1
    %v1876 = vsel %vm1772, %v1874, %v1875
    %v1877 = vrot.slane %v1618, 1
    %v1878 = vsel %vm1772, %v1872, %v1877
    %v1879 = vrot.slane %v1619, 1
    %v1880 = vsel %vm1772, %v1875, %v1879
    %v1881 = vrot.slane %v1706, 1
    %v1882 = vsel %vm1772, %v1877, %v1881
    %v1883 = vrot.slane %v1707, 1
    %v1884 = vsel %vm1772, %v1879, %v1883
    %v1933 = vmax.f32 %v1572, %v1775
    %v1934 = vmax.f32 %v1573, %v1778
    %v1935 = vmax.f32 %v1574, %v1780
    %v1936 = vmax.f32 %v1575, %v1782
    %v1937 = vmax.f32 %v1576, %v1784
    %v1938 = vmax.f32 %v1577, %v1786
    %v1939 = vmax.f32 %v1578, %v1789
    %v1940 = vmax.f32 %v1579, %v1792
    %v1941 = vmax.f32 %v1580, %v1794
    %v1942 = vmax.f32 %v1581, %v1796
    %v1943 = vmax.f32 %v1582, %v1798
    %v1944 = vmax.f32 %v1583, %v1800
    %v1945 = vmax.f32 %v1584, %v1803
    %v1946 = vmax.f32 %v1585, %v1806
    %v1947 = vmax.f32 %v1586, %v1808
    %v1948 = vmax.f32 %v1587, %v1810
    %v1949 = vmax.f32 %v1588, %v1812
    %v1950 = vmax.f32 %v1589, %v1814
    %v1951 = vmax.f32 %v1590, %v1817
    %v1952 = vmax.f32 %v1591, %v1820
    %v1953 = vmax.f32 %v1592, %v1822
    %v1954 = vmax.f32 %v1593, %v1824
    %v1955 = vmax.f32 %v1594, %v1826
    %v1956 = vmax.f32 %v1595, %v1828
    %v1957 = vmax.f32 %v1596, %v1831
    %v1958 = vmax.f32 %v1597, %v1834
    %v1959 = vmax.f32 %v1598, %v1836
    %v1960 = vmax.f32 %v1599, %v1838
    %v1961 = vmax.f32 %v1600, %v1840
    %v1962 = vmax.f32 %v1601, %v1842
    %v1963 = vmax.f32 %v1602, %v1845
    %v1964 = vmax.f32 %v1603, %v1848
    %v1965 = vmax.f32 %v1604, %v1850
    %v1966 = vmax.f32 %v1605, %v1852
    %v1967 = vmax.f32 %v1606, %v1854
    %v1968 = vmax.f32 %v1607, %v1856
    %v1969 = vmax.f32 %v1608, %v1859
    %v1970 = vmax.f32 %v1609, %v1862
    %v1971 = vmax.f32 %v1610, %v1864
    %v1972 = vmax.f32 %v1611, %v1866
    %v1973 = vmax.f32 %v1612, %v1868
    %v1974 = vmax.f32 %v1613, %v1870
    %v1975 = vmax.f32 %v1614, %v1873
    %v1976 = vmax.f32 %v1615, %v1876
    %v1977 = vmax.f32 %v1616, %v1878
    %v1978 = vmax.f32 %v1617, %v1880
    %v1979 = vmax.f32 %v1618, %v1882
    %v1980 = vmax.f32 %v1619, %v1884
    %v1981 = vmax.f32 %v1933, 0.0
    %v1982 = vmax.f32 %v1934, 0.0
    %v1983 = vmax.f32 %v1935, 0.0
    %v1984 = vmax.f32 %v1936, 0.0
    %v1985 = vmax.f32 %v1937, 0.0
    %v1986 = vmax.f32 %v1938, 0.0
    %v1987 = vmax.f32 %v1939, 0.0
    %v1988 = vmax.f32 %v1940, 0.0
    %v1989 = vmax.f32 %v1941, 0.0
    %v1990 = vmax.f32 %v1942, 0.0
    %v1991 = vmax.f32 %v1943, 0.0
    %v1992 = vmax.f32 %v1944, 0.0
    %v1993 = vmax.f32 %v1945, 0.0
    %v1994 = vmax.f32 %v1946, 0.0
    %v1995 = vmax.f32 %v1947, 0.0
    %v1996 = vmax.f32 %v1948, 0.0
    %v1997 = vmax.f32 %v1949, 0.0
    %v1998 = vmax.f32 %v1950, 0.0
    %v1999 = vmax.f32 %v1951, 0.0
    %v2000 = vmax.f32 %v1952, 0.0
    %v2001 = vmax.f32 %v1953, 0.0
    %v2002 = vmax.f32 %v1954, 0.0
    %v2003 = vmax.f32 %v1955, 0.0
    %v2004 = vmax.f32 %v1956, 0.0
    %v2005 = vmax.f32 %v1957, 0.0
    %v2006 = vmax.f32 %v1958, 0.0
    %v2007 = vmax.f32 %v1959, 0.0
    %v2008 = vmax.f32 %v1960, 0.0
    %v2009 = vmax.f32 %v1961, 0.0
    %v2010 = vmax.f32 %v1962, 0.0
    %v2011 = vmax.f32 %v1963, 0.0
    %v2012 = vmax.f32 %v1964, 0.0
    %v2013 = vmax.f32 %v1965, 0.0
    %v2014 = vmax.f32 %v1966, 0.0
    %v2015 = vmax.f32 %v1967, 0.0
    %v2016 = vmax.f32 %v1968, 0.0
    %v2017 = vmax.f32 %v1969, 0.0
    %v2018 = vmax.f32 %v1970, 0.0
    %v2019 = vmax.f32 %v1971, 0.0
    %v2020 = vmax.f32 %v1972, 0.0
    %v2021 = vmax.f32 %v1973, 0.0
    %v2022 = vmax.f32 %v1974, 0.0
    %v2023 = vmax.f32 %v1975, 0.0
    %v2024 = vmax.f32 %v1976, 0.0
    %v2025 = vmax.f32 %v1977, 0.0
    %v2026 = vmax.f32 %v1978, 0.0
    %v2027 = vmax.f32 %v1979, 0.0
    %v2028 = vmax.f32 %v1980, 0.0
    %v2029 = vpack.c.bf16 %v1982, %v1981
    %v2030 = vpack.c.bf16 %v1984, %v1983
    %v2031 = vpack.c.bf16 %v1986, %v1985
    %v2032 = vpack.c.bf16 %v1988, %v1987
    %v2033 = vpack.c.bf16 %v1990, %v1989
    %v2034 = vpack.c.bf16 %v1992, %v1991
    %v2035 = vpack.c.bf16 %v1994, %v1993
    %v2036 = vpack.c.bf16 %v1996, %v1995
    %v2037 = vpack.c.bf16 %v1998, %v1997
    %v2038 = vpack.c.bf16 %v2000, %v1999
    %v2039 = vpack.c.bf16 %v2002, %v2001
    %v2040 = vpack.c.bf16 %v2004, %v2003
    %v2041 = vpack.c.bf16 %v2006, %v2005
    %v2042 = vpack.c.bf16 %v2008, %v2007
    %v2043 = vpack.c.bf16 %v2010, %v2009
    %v2044 = vpack.c.bf16 %v2012, %v2011
    %v2045 = vpack.c.bf16 %v2014, %v2013
    %v2046 = vpack.c.bf16 %v2016, %v2015
    %v2047 = vpack.c.bf16 %v2018, %v2017
    %v2048 = vpack.c.bf16 %v2020, %v2019
    %v2049 = vpack.c.bf16 %v2022, %v2021
    %v2050 = vpack.c.bf16 %v2024, %v2023
    %v2051 = vpack.c.bf16 %v2026, %v2025
    %v2052 = vpack.c.bf16 %v2028, %v2027
    %v2069 = vunpack.c.l.b16 %v2029
    %v2070 = vunpack.c.h.b16 %v2029
    %v2071 = vunpack.c.l.b16 %v2030
    %v2072 = vunpack.c.h.b16 %v2030
    %v2073 = vunpack.c.l.b16 %v2032
    %v2074 = vunpack.c.h.b16 %v2032
    %v2075 = vunpack.c.l.b16 %v2033
    %v2076 = vunpack.c.h.b16 %v2033
    %v2077 = vunpack.c.l.b16 %v2035
    %v2078 = vunpack.c.h.b16 %v2035
    %v2079 = vunpack.c.l.b16 %v2036
    %v2080 = vunpack.c.h.b16 %v2036
    %v2081 = vunpack.c.l.b16 %v2038
    %v2082 = vunpack.c.h.b16 %v2038
    %v2083 = vunpack.c.l.b16 %v2039
    %v2084 = vunpack.c.h.b16 %v2039
    %v2085 = vunpack.c.l.b16 %v2041
    %v2086 = vunpack.c.h.b16 %v2041
    %v2087 = vunpack.c.l.b16 %v2042
    %v2088 = vunpack.c.h.b16 %v2042
    %v2089 = vunpack.c.l.b16 %v2044
    %v2090 = vunpack.c.h.b16 %v2044
    %v2091 = vunpack.c.l.b16 %v2045
    %v2092 = vunpack.c.h.b16 %v2045
    %v2093 = vunpack.c.l.b16 %v2047
    %v2094 = vunpack.c.h.b16 %v2047
    %v2095 = vunpack.c.l.b16 %v2048
    %v2096 = vunpack.c.h.b16 %v2048
    %v2097 = vunpack.c.l.b16 %v2050
    %v2098 = vunpack.c.h.b16 %v2050
    %v2099 = vunpack.c.l.b16 %v2051
    %v2100 = vunpack.c.h.b16 %v2051
    %v2101 = vpack.c.b16 %v2071, %v2069
    %v2102 = vpack.c.b16 %v2072, %v2070
    %v2103 = vpack.c.b16 %v2075, %v2073
    %v2104 = vpack.c.b16 %v2076, %v2074
    %v2105 = vpack.c.b16 %v2079, %v2077
    %v2106 = vpack.c.b16 %v2080, %v2078
    %v2107 = vpack.c.b16 %v2083, %v2081
    %v2108 = vpack.c.b16 %v2084, %v2082
    %v2109 = vpack.c.b16 %v2087, %v2085
    %v2110 = vpack.c.b16 %v2088, %v2086
    %v2111 = vpack.c.b16 %v2091, %v2089
    %v2112 = vpack.c.b16 %v2092, %v2090
    %v2113 = vpack.c.b16 %v2095, %v2093
    %v2114 = vpack.c.b16 %v2096, %v2094
    %v2115 = vpack.c.b16 %v2099, %v2097
    %v2116 = vpack.c.b16 %v2100, %v2098
    %v2133 = vunpack.c.l.b16 %v2031
    %v2134 = vunpack.c.h.b16 %v2031
    %v2135 = vunpack.c.l.b16 %v2034
    %v2136 = vunpack.c.h.b16 %v2034
    %v2137 = vunpack.c.l.b16 %v2037
    %v2138 = vunpack.c.h.b16 %v2037
    %v2139 = vunpack.c.l.b16 %v2040
    %v2140 = vunpack.c.h.b16 %v2040
    %v2141 = vunpack.c.l.b16 %v2043
    %v2142 = vunpack.c.h.b16 %v2043
    %v2143 = vunpack.c.l.b16 %v2046
    %v2144 = vunpack.c.h.b16 %v2046
    %v2145 = vunpack.c.l.b16 %v2049
    %v2146 = vunpack.c.h.b16 %v2049
    %v2147 = vunpack.c.l.b16 %v2052
    %v2148 = vunpack.c.h.b16 %v2052
    %v2149 = vpack.c.b16 %v2133, %v2133
    %v2150 = vpack.c.b16 %v2134, %v2134
    %v2151 = vpack.c.b16 %v2135, %v2135
    %v2152 = vpack.c.b16 %v2136, %v2136
    %v2153 = vpack.c.b16 %v2137, %v2137
    %v2154 = vpack.c.b16 %v2138, %v2138
    %v2155 = vpack.c.b16 %v2139, %v2139
    %v2156 = vpack.c.b16 %v2140, %v2140
    %v2157 = vpack.c.b16 %v2141, %v2141
    %v2158 = vpack.c.b16 %v2142, %v2142
    %v2159 = vpack.c.b16 %v2143, %v2143
    %v2160 = vpack.c.b16 %v2144, %v2144
    %v2161 = vpack.c.b16 %v2145, %v2145
    %v2162 = vpack.c.b16 %v2146, %v2146
    %v2163 = vpack.c.b16 %v2147, %v2147
    %v2164 = vpack.c.b16 %v2148, %v2148
    %v2165 = vrot.slane %v2101, 1
    %v2166 = vrot.slane %v2149, 1
    %v2167 = vsel %vm386, %v2165, %v2166
    %v2168 = vrot.slane %v2102, 1
    %v2169 = vrot.slane %v2150, 1
    %v2170 = vsel %vm386, %v2168, %v2169
    %v2171 = vrot.slane %v2103, 1
    %v2172 = vrot.slane %v2151, 1
    %v2173 = vsel %vm386, %v2171, %v2172
    %v2174 = vrot.slane %v2104, 1
    %v2175 = vrot.slane %v2152, 1
    %v2176 = vsel %vm386, %v2174, %v2175
    %v2177 = vrot.slane %v2105, 1
    %v2178 = vrot.slane %v2153, 1
    %v2179 = vsel %vm386, %v2177, %v2178
    %v2180 = vrot.slane %v2106, 1
    %v2181 = vrot.slane %v2154, 1
    %v2182 = vsel %vm386, %v2180, %v2181
    %v2183 = vrot.slane %v2107, 1
    %v2184 = vrot.slane %v2155, 1
    %v2185 = vsel %vm386, %v2183, %v2184
    %v2186 = vrot.slane %v2108, 1
    %v2187 = vrot.slane %v2156, 1
    %v2188 = vsel %vm386, %v2186, %v2187
    %v2189 = vrot.slane %v2109, 1
    %v2190 = vrot.slane %v2157, 1
    %v2191 = vsel %vm386, %v2189, %v2190
    %v2192 = vrot.slane %v2110, 1
    %v2193 = vrot.slane %v2158, 1
    %v2194 = vsel %vm386, %v2192, %v2193
    %v2195 = vrot.slane %v2111, 1
    %v2196 = vrot.slane %v2159, 1
    %v2197 = vsel %vm386, %v2195, %v2196
    %v2198 = vrot.slane %v2112, 1
    %v2199 = vrot.slane %v2160, 1
    %v2200 = vsel %vm386, %v2198, %v2199
    %v2201 = vrot.slane %v2113, 1
    %v2202 = vrot.slane %v2161, 1
    %v2203 = vsel %vm386, %v2201, %v2202
    %v2204 = vrot.slane %v2114, 1
    %v2205 = vrot.slane %v2162, 1
    %v2206 = vsel %vm386, %v2204, %v2205
    %v2207 = vrot.slane %v2115, 1
    %v2208 = vrot.slane %v2163, 1
    %v2209 = vsel %vm386, %v2207, %v2208
    %v2210 = vrot.slane %v2116, 1
    %v2211 = vrot.slane %v2164, 1
    %v2212 = vsel %vm386, %v2210, %v2211
    %2213 = vrot.lane.b32.xlu0 %v2167, 112
    %v2214 = vpop.permute.xlu0 %2213
    %2215 = vrot.lane.b32.xlu0 %v2170, 112
    %v2216 = vpop.permute.xlu0 %2215
    %2217 = vrot.lane.b32.xlu0 %v2173, 112
    %v2218 = vpop.permute.xlu0 %2217
    %2219 = vrot.lane.b32.xlu0 %v2176, 112
    %v2220 = vpop.permute.xlu0 %2219
    %2221 = vrot.lane.b32.xlu0 %v2179, 112
    %v2222 = vpop.permute.xlu0 %2221
    %2223 = vrot.lane.b32.xlu0 %v2182, 112
    %v2224 = vpop.permute.xlu0 %2223
    %2225 = vrot.lane.b32.xlu0 %v2185, 112
    %v2226 = vpop.permute.xlu0 %2225
    %2227 = vrot.lane.b32.xlu0 %v2188, 112
    %v2228 = vpop.permute.xlu0 %2227
    %2229 = vrot.lane.b32.xlu0 %v2191, 112
    %v2230 = vpop.permute.xlu0 %2229
    %2231 = vrot.lane.b32.xlu0 %v2194, 112
    %v2232 = vpop.permute.xlu0 %2231
    %2233 = vrot.lane.b32.xlu0 %v2197, 112
    %v2234 = vpop.permute.xlu0 %2233
    %2235 = vrot.lane.b32.xlu0 %v2200, 112
    %v2236 = vpop.permute.xlu0 %2235
    %2237 = vrot.lane.b32.xlu0 %v2203, 112
    %v2238 = vpop.permute.xlu0 %2237
    %2239 = vrot.lane.b32.xlu0 %v2206, 112
    %v2240 = vpop.permute.xlu0 %2239
    %2241 = vrot.lane.b32.xlu0 %v2209, 112
    %v2242 = vpop.permute.xlu0 %2241
    %2243 = vrot.lane.b32.xlu0 %v2212, 112
    %v2244 = vpop.permute.xlu0 %2243
    %vm2245 = vcmask 916480
    %v2246 = vsel %vm2245, %v2214, %v2216
    %v2247 = vsel %vm2245, %v2218, %v2220
    %v2248 = vsel %vm2245, %v2222, %v2224
    %v2249 = vsel %vm2245, %v2226, %v2228
    %v2250 = vsel %vm2245, %v2230, %v2232
    %v2251 = vsel %vm2245, %v2234, %v2236
    %v2252 = vsel %vm2245, %v2238, %v2240
    %v2253 = vsel %vm2245, %v2242, %v2244
    %v2262 = vrot.slane %v2101, 2
    %v2263 = vrot.slane %v2149, 2
    %v2264 = vsel %vm596, %v2262, %v2263
    %v2265 = vrot.slane %v2102, 2
    %v2266 = vrot.slane %v2150, 2
    %v2267 = vsel %vm596, %v2265, %v2266
    %v2268 = vrot.slane %v2103, 2
    %v2269 = vrot.slane %v2151, 2
    %v2270 = vsel %vm596, %v2268, %v2269
    %v2271 = vrot.slane %v2104, 2
    %v2272 = vrot.slane %v2152, 2
    %v2273 = vsel %vm596, %v2271, %v2272
    %v2274 = vrot.slane %v2105, 2
    %v2275 = vrot.slane %v2153, 2
    %v2276 = vsel %vm596, %v2274, %v2275
    %v2277 = vrot.slane %v2106, 2
    %v2278 = vrot.slane %v2154, 2
    %v2279 = vsel %vm596, %v2277, %v2278
    %v2280 = vrot.slane %v2107, 2
    %v2281 = vrot.slane %v2155, 2
    %v2282 = vsel %vm596, %v2280, %v2281
    %v2283 = vrot.slane %v2108, 2
    %v2284 = vrot.slane %v2156, 2
    %v2285 = vsel %vm596, %v2283, %v2284
    %v2286 = vrot.slane %v2109, 2
    %v2287 = vrot.slane %v2157, 2
    %v2288 = vsel %vm596, %v2286, %v2287
    %v2289 = vrot.slane %v2110, 2
    %v2290 = vrot.slane %v2158, 2
    %v2291 = vsel %vm596, %v2289, %v2290
    %v2292 = vrot.slane %v2111, 2
    %v2293 = vrot.slane %v2159, 2
    %v2294 = vsel %vm596, %v2292, %v2293
    %v2295 = vrot.slane %v2112, 2
    %v2296 = vrot.slane %v2160, 2
    %v2297 = vsel %vm596, %v2295, %v2296
    %v2298 = vrot.slane %v2113, 2
    %v2299 = vrot.slane %v2161, 2
    %v2300 = vsel %vm596, %v2298, %v2299
    %v2301 = vrot.slane %v2114, 2
    %v2302 = vrot.slane %v2162, 2
    %v2303 = vsel %vm596, %v2301, %v2302
    %v2304 = vrot.slane %v2115, 2
    %v2305 = vrot.slane %v2163, 2
    %v2306 = vsel %vm596, %v2304, %v2305
    %v2307 = vrot.slane %v2116, 2
    %v2308 = vrot.slane %v2164, 2
    %v2309 = vsel %vm596, %v2307, %v2308
    %2310 = vrot.lane.b32.xlu0 %v2264, 96
    %v2311 = vpop.permute.xlu0 %2310
    %2312 = vrot.lane.b32.xlu0 %v2267, 96
    %v2313 = vpop.permute.xlu0 %2312
    %2314 = vrot.lane.b32.xlu0 %v2270, 96
    %v2315 = vpop.permute.xlu0 %2314
    %2316 = vrot.lane.b32.xlu0 %v2273, 96
    %v2317 = vpop.permute.xlu0 %2316
    %2318 = vrot.lane.b32.xlu0 %v2276, 96
    %v2319 = vpop.permute.xlu0 %2318
    %2320 = vrot.lane.b32.xlu0 %v2279, 96
    %v2321 = vpop.permute.xlu0 %2320
    %2322 = vrot.lane.b32.xlu0 %v2282, 96
    %v2323 = vpop.permute.xlu0 %2322
    %2324 = vrot.lane.b32.xlu0 %v2285, 96
    %v2325 = vpop.permute.xlu0 %2324
    %2326 = vrot.lane.b32.xlu0 %v2288, 96
    %v2327 = vpop.permute.xlu0 %2326
    %2328 = vrot.lane.b32.xlu0 %v2291, 96
    %v2329 = vpop.permute.xlu0 %2328
    %2330 = vrot.lane.b32.xlu0 %v2294, 96
    %v2331 = vpop.permute.xlu0 %2330
    %2332 = vrot.lane.b32.xlu0 %v2297, 96
    %v2333 = vpop.permute.xlu0 %2332
    %2334 = vrot.lane.b32.xlu0 %v2300, 96
    %v2335 = vpop.permute.xlu0 %2334
    %2336 = vrot.lane.b32.xlu0 %v2303, 96
    %v2337 = vpop.permute.xlu0 %2336
    %2338 = vrot.lane.b32.xlu0 %v2306, 96
    %v2339 = vpop.permute.xlu0 %2338
    %2340 = vrot.lane.b32.xlu0 %v2309, 96
    %v2341 = vpop.permute.xlu0 %2340
    %vm2342 = vcmask 785408
    %v2343 = vsel %vm2342, %v2311, %v2313
    %v2344 = vsel %vm2342, %v2315, %v2317
    %v2345 = vsel %vm2342, %v2319, %v2321
    %v2346 = vsel %vm2342, %v2323, %v2325
    %v2347 = vsel %vm2342, %v2327, %v2329
    %v2348 = vsel %vm2342, %v2331, %v2333
    %v2349 = vsel %vm2342, %v2335, %v2337
    %v2350 = vsel %vm2342, %v2339, %v2341
    %vm2359 = vcmask 1044480
    %v2360 = vrot.slane %v2101, 3
    %v2361 = vrot.slane %v2149, 3
    %v2362 = vsel %vm2359, %v2360, %v2361
    %v2363 = vrot.slane %v2102, 3
    %v2364 = vrot.slane %v2150, 3
    %v2365 = vsel %vm2359, %v2363, %v2364
    %v2366 = vrot.slane %v2103, 3
    %v2367 = vrot.slane %v2151, 3
    %v2368 = vsel %vm2359, %v2366, %v2367
    %v2369 = vrot.slane %v2104, 3
    %v2370 = vrot.slane %v2152, 3
    %v2371 = vsel %vm2359, %v2369, %v2370
    %v2372 = vrot.slane %v2105, 3
    %v2373 = vrot.slane %v2153, 3
    %v2374 = vsel %vm2359, %v2372, %v2373
    %v2375 = vrot.slane %v2106, 3
    %v2376 = vrot.slane %v2154, 3
    %v2377 = vsel %vm2359, %v2375, %v2376
    %v2378 = vrot.slane %v2107, 3
    %v2379 = vrot.slane %v2155, 3
    %v2380 = vsel %vm2359, %v2378, %v2379
    %v2381 = vrot.slane %v2108, 3
    %v2382 = vrot.slane %v2156, 3
    %v2383 = vsel %vm2359, %v2381, %v2382
    %v2384 = vrot.slane %v2109, 3
    %v2385 = vrot.slane %v2157, 3
    %v2386 = vsel %vm2359, %v2384, %v2385
    %v2387 = vrot.slane %v2110, 3
    %v2388 = vrot.slane %v2158, 3
    %v2389 = vsel %vm2359, %v2387, %v2388
    %v2390 = vrot.slane %v2111, 3
    %v2391 = vrot.slane %v2159, 3
    %v2392 = vsel %vm2359, %v2390, %v2391
    %v2393 = vrot.slane %v2112, 3
    %v2394 = vrot.slane %v2160, 3
    %v2395 = vsel %vm2359, %v2393, %v2394
    %v2396 = vrot.slane %v2113, 3
    %v2397 = vrot.slane %v2161, 3
    %v2398 = vsel %vm2359, %v2396, %v2397
    %v2399 = vrot.slane %v2114, 3
    %v2400 = vrot.slane %v2162, 3
    %v2401 = vsel %vm2359, %v2399, %v2400
    %v2402 = vrot.slane %v2115, 3
    %v2403 = vrot.slane %v2163, 3
    %v2404 = vsel %vm2359, %v2402, %v2403
    %v2405 = vrot.slane %v2116, 3
    %v2406 = vrot.slane %v2164, 3
    %v2407 = vsel %vm2359, %v2405, %v2406
    %2408 = vrot.lane.b32.xlu0 %v2362, 80
    %v2409 = vpop.permute.xlu0 %2408
    %2410 = vrot.lane.b32.xlu0 %v2365, 80
    %v2411 = vpop.permute.xlu0 %2410
    %2412 = vrot.lane.b32.xlu0 %v2368, 80
    %v2413 = vpop.permute.xlu0 %2412
    %2414 = vrot.lane.b32.xlu0 %v2371, 80
    %v2415 = vpop.permute.xlu0 %2414
    %2416 = vrot.lane.b32.xlu0 %v2374, 80
    %v2417 = vpop.permute.xlu0 %2416
    %2418 = vrot.lane.b32.xlu0 %v2377, 80
    %v2419 = vpop.permute.xlu0 %2418
    %2420 = vrot.lane.b32.xlu0 %v2380, 80
    %v2421 = vpop.permute.xlu0 %2420
    %2422 = vrot.lane.b32.xlu0 %v2383, 80
    %v2423 = vpop.permute.xlu0 %2422
    %2424 = vrot.lane.b32.xlu0 %v2386, 80
    %v2425 = vpop.permute.xlu0 %2424
    %2426 = vrot.lane.b32.xlu0 %v2389, 80
    %v2427 = vpop.permute.xlu0 %2426
    %2428 = vrot.lane.b32.xlu0 %v2392, 80
    %v2429 = vpop.permute.xlu0 %2428
    %2430 = vrot.lane.b32.xlu0 %v2395, 80
    %v2431 = vpop.permute.xlu0 %2430
    %2432 = vrot.lane.b32.xlu0 %v2398, 80
    %v2433 = vpop.permute.xlu0 %2432
    %2434 = vrot.lane.b32.xlu0 %v2401, 80
    %v2435 = vpop.permute.xlu0 %2434
    %2436 = vrot.lane.b32.xlu0 %v2404, 80
    %v2437 = vpop.permute.xlu0 %2436
    %2438 = vrot.lane.b32.xlu0 %v2407, 80
    %v2439 = vpop.permute.xlu0 %2438
    %vm2440 = vcmask 654336
    %v2441 = vsel %vm2440, %v2409, %v2411
    %v2442 = vsel %vm2440, %v2413, %v2415
    %v2443 = vsel %vm2440, %v2417, %v2419
    %v2444 = vsel %vm2440, %v2421, %v2423
    %v2445 = vsel %vm2440, %v2425, %v2427
    %v2446 = vsel %vm2440, %v2429, %v2431
    %v2447 = vsel %vm2440, %v2433, %v2435
    %v2448 = vsel %vm2440, %v2437, %v2439
    %v2457 = vpack.c.b16 %v2133, %v2071
    %v2458 = vpack.c.b16 %v2134, %v2072
    %v2459 = vpack.c.b16 %v2135, %v2075
    %v2460 = vpack.c.b16 %v2136, %v2076
    %v2461 = vpack.c.b16 %v2137, %v2079
    %v2462 = vpack.c.b16 %v2138, %v2080
    %v2463 = vpack.c.b16 %v2139, %v2083
    %v2464 = vpack.c.b16 %v2140, %v2084
    %v2465 = vpack.c.b16 %v2141, %v2087
    %v2466 = vpack.c.b16 %v2142, %v2088
    %v2467 = vpack.c.b16 %v2143, %v2091
    %v2468 = vpack.c.b16 %v2144, %v2092
    %v2469 = vpack.c.b16 %v2145, %v2095
    %v2470 = vpack.c.b16 %v2146, %v2096
    %v2471 = vpack.c.b16 %v2147, %v2099
    %v2472 = vpack.c.b16 %v2148, %v2100
    %2473 = vrot.lane.b32.xlu0 %v2457, 64
    %v2474 = vpop.permute.xlu0 %2473
    %2475 = vrot.lane.b32.xlu0 %v2458, 64
    %v2476 = vpop.permute.xlu0 %2475
    %2477 = vrot.lane.b32.xlu0 %v2459, 64
    %v2478 = vpop.permute.xlu0 %2477
    %2479 = vrot.lane.b32.xlu0 %v2460, 64
    %v2480 = vpop.permute.xlu0 %2479
    %2481 = vrot.lane.b32.xlu0 %v2461, 64
    %v2482 = vpop.permute.xlu0 %2481
    %2483 = vrot.lane.b32.xlu0 %v2462, 64
    %v2484 = vpop.permute.xlu0 %2483
    %2485 = vrot.lane.b32.xlu0 %v2463, 64
    %v2486 = vpop.permute.xlu0 %2485
    %2487 = vrot.lane.b32.xlu0 %v2464, 64
    %v2488 = vpop.permute.xlu0 %2487
    %2489 = vrot.lane.b32.xlu0 %v2465, 64
    %v2490 = vpop.permute.xlu0 %2489
    %2491 = vrot.lane.b32.xlu0 %v2466, 64
    %v2492 = vpop.permute.xlu0 %2491
    %2493 = vrot.lane.b32.xlu0 %v2467, 64
    %v2494 = vpop.permute.xlu0 %2493
    %2495 = vrot.lane.b32.xlu0 %v2468, 64
    %v2496 = vpop.permute.xlu0 %2495
    %2497 = vrot.lane.b32.xlu0 %v2469, 64
    %v2498 = vpop.permute.xlu0 %2497
    %2499 = vrot.lane.b32.xlu0 %v2470, 64
    %v2500 = vpop.permute.xlu0 %2499
    %2501 = vrot.lane.b32.xlu0 %v2471, 64
    %v2502 = vpop.permute.xlu0 %2501
    %2503 = vrot.lane.b32.xlu0 %v2472, 64
    %v2504 = vpop.permute.xlu0 %2503
    %vm2505 = vcmask 523264
    %v2506 = vsel %vm2505, %v2474, %v2476
    %v2507 = vsel %vm2505, %v2478, %v2480
    %v2508 = vsel %vm2505, %v2482, %v2484
    %v2509 = vsel %vm2505, %v2486, %v2488
    %v2510 = vsel %vm2505, %v2490, %v2492
    %v2511 = vsel %vm2505, %v2494, %v2496
    %v2512 = vsel %vm2505, %v2498, %v2500
    %v2513 = vsel %vm2505, %v2502, %v2504
    %vm2522 = vcmask 916480
    %v2525 = vsel %vm2522, %v2102, %v2214
    %v2529 = vsel %vm2522, %v2104, %v2218
    %v2533 = vsel %vm2522, %v2106, %v2222
    %v2537 = vsel %vm2522, %v2108, %v2226
    %v2541 = vsel %vm2522, %v2110, %v2230
    %v2545 = vsel %vm2522, %v2112, %v2234
    %v2549 = vsel %vm2522, %v2114, %v2238
    %v2553 = vsel %vm2522, %v2116, %v2242
    %v2557 = vsel %vm703, %v2216, %v2311
    %v2561 = vsel %vm703, %v2220, %v2315
    %v2565 = vsel %vm703, %v2224, %v2319
    %v2569 = vsel %vm703, %v2228, %v2323
    %v2573 = vsel %vm703, %v2232, %v2327
    %v2577 = vsel %vm703, %v2236, %v2331
    %v2581 = vsel %vm703, %v2240, %v2335
    %v2585 = vsel %vm703, %v2244, %v2339
    %vm2587 = vcmask 654336
    %v2590 = vsel %vm2587, %v2313, %v2409
    %v2594 = vsel %vm2587, %v2317, %v2413
    %v2598 = vsel %vm2587, %v2321, %v2417
    %v2602 = vsel %vm2587, %v2325, %v2421
    %v2606 = vsel %vm2587, %v2329, %v2425
    %v2610 = vsel %vm2587, %v2333, %v2429
    %v2614 = vsel %vm2587, %v2337, %v2433
    %v2618 = vsel %vm2587, %v2341, %v2437
    %v2622 = vsel %vm670, %v2411, %v2474
    %v2626 = vsel %vm670, %v2415, %v2478
    %v2630 = vsel %vm670, %v2419, %v2482
    %v2634 = vsel %vm670, %v2423, %v2486
    %v2638 = vsel %vm670, %v2427, %v2490
    %v2642 = vsel %vm670, %v2431, %v2494
    %v2646 = vsel %vm670, %v2435, %v2498
    %v2650 = vsel %vm670, %v2439, %v2502
    %vm2652 = vcmask 392192
    %v2654 = vsel %vm2652, %v2476, 0
    %v2657 = vsel %vm2652, %v2480, 0
    %v2660 = vsel %vm2652, %v2484, 0
    %v2663 = vsel %vm2652, %v2488, 0
    %v2666 = vsel %vm2652, %v2492, 0
    %v2669 = vsel %vm2652, %v2496, 0
    %v2672 = vsel %vm2652, %v2500, 0
    %v2675 = vsel %vm2652, %v2504, 0
    %v2677 = vld [vmem:[#allocation2] sm:$0xff]
    %v2678 = vld [vmem:[#allocation2 + $0x8] sm:$0xf]
    %v2679 = vld [vmem:[#allocation2 + $0xc] sm:$0xff]
    %v2680 = vld [vmem:[#allocation2 + $0x14] sm:$0xf]
    %v2681 = vld [vmem:[#allocation2 + $0x18] sm:$0xff]
    %v2682 = vld [vmem:[#allocation2 + $0x20] sm:$0xf]
    %v2683 = vld [vmem:[#allocation2 + $0x24] sm:$0xff]
    %v2684 = vld [vmem:[#allocation2 + $0x2c] sm:$0xf]
    %v2685 = vld [vmem:[#allocation2 + $0x30] sm:$0xff]
    %v2686 = vld [vmem:[#allocation2 + $0x38] sm:$0xf]
    %v2687 = vld [vmem:[#allocation2 + $0x3c] sm:$0xff]
    %v2688 = vld [vmem:[#allocation2 + $0x44] sm:$0xf]
    %v2689 = vld [vmem:[#allocation2 + $0x48] sm:$0xff]
    %v2690 = vld [vmem:[#allocation2 + $0x50] sm:$0xf]
    %v2691 = vld [vmem:[#allocation2 + $0x54] sm:$0xff]
    %v2692 = vld [vmem:[#allocation2 + $0x5c] sm:$0xf]
    %v2693 = vld [vmem:[#allocation2 + $0x60] sm:$0xff]
    %v2694 = vld [vmem:[#allocation2 + $0x68] sm:$0xf]
    %v2695 = vld [vmem:[#allocation2 + $0x6c] sm:$0xff]
    %v2696 = vld [vmem:[#allocation2 + $0x74] sm:$0xf]
    %v2697 = vld [vmem:[#allocation2 + $0x78] sm:$0xff]
    %v2698 = vld [vmem:[#allocation2 + $0x80] sm:$0xf]
    %v2699 = vld [vmem:[#allocation2 + $0x84] sm:$0xff]
    %v2700 = vld [vmem:[#allocation2 + $0x8c] sm:$0xf]
    %v2701 = vld [vmem:[#allocation2 + $0x90] sm:$0xff]
    %v2702 = vld [vmem:[#allocation2 + $0x98] sm:$0xf]
    %v2703 = vld [vmem:[#allocation2 + $0x9c] sm:$0xff]
    %v2704 = vld [vmem:[#allocation2 + $0xa4] sm:$0xf]
    %v2705 = vld [vmem:[#allocation2 + $0xa8] sm:$0xff]
    %v2706 = vld [vmem:[#allocation2 + $0xb0] sm:$0xf]
    %v2707 = vld [vmem:[#allocation2 + $0xb4] sm:$0xff]
    %v2708 = vld [vmem:[#allocation2 + $0xbc] sm:$0xf]
    %v2709 = vld [vmem:[#allocation2 + $0xc0] sm:$0xff]
    %v2710 = vld [vmem:[#allocation2 + $0xc8] sm:$0xf]
    %v2711 = vld [vmem:[#allocation2 + $0xcc] sm:$0xff]
    %v2712 = vld [vmem:[#allocation2 + $0xd4] sm:$0xf]
    %v2713 = vld [vmem:[#allocation2 + $0xd8] sm:$0xff]
    %v2714 = vld [vmem:[#allocation2 + $0xe0] sm:$0xf]
    %v2715 = vld [vmem:[#allocation2 + $0xe4] sm:$0xff]
    %v2716 = vld [vmem:[#allocation2 + $0xec] sm:$0xf]
    %v2717 = vld [vmem:[#allocation2 + $0xf0] sm:$0xff]
    %v2718 = vld [vmem:[#allocation2 + $0xf8] sm:$0xf]
    %v2719 = vld [vmem:[#allocation2 + $0xfc] sm:$0xff]
    %v2720 = vld [vmem:[#allocation2 + $0x104] sm:$0xf]
    %v2721 = vld [vmem:[#allocation2 + $0x108] sm:$0xff]
    %v2722 = vld [vmem:[#allocation2 + $0x110] sm:$0xf]
    %v2723 = vld [vmem:[#allocation2 + $0x114] sm:$0xff]
    %v2724 = vld [vmem:[#allocation2 + $0x11c] sm:$0xf]
    %v2725 = vld [vmem:[#allocation2 + $0x120] sm:$0xff]
    %v2726 = vld [vmem:[#allocation2 + $0x128] sm:$0xf]
    %v2727 = vld [vmem:[#allocation2 + $0x12c] sm:$0xff]
    %v2728 = vld [vmem:[#allocation2 + $0x134] sm:$0xf]
    %v2729 = vld [vmem:[#allocation2 + $0x138] sm:$0xff]
    %v2730 = vld [vmem:[#allocation2 + $0x140] sm:$0xf]
    %v2731 = vld [vmem:[#allocation2 + $0x144] sm:$0xff]
    %v2732 = vld [vmem:[#allocation2 + $0x14c] sm:$0xf]
    %v2733 = vld [vmem:[#allocation2 + $0x150] sm:$0xff]
    %v2734 = vld [vmem:[#allocation2 + $0x158] sm:$0xf]
    %v2735 = vld [vmem:[#allocation2 + $0x15c] sm:$0xff]
    %v2736 = vld [vmem:[#allocation2 + $0x164] sm:$0xf]
    %v2737 = vld [vmem:[#allocation2 + $0x168] sm:$0xff]
    %v2738 = vld [vmem:[#allocation2 + $0x170] sm:$0xf]
    %v2739 = vld [vmem:[#allocation2 + $0x174] sm:$0xff]
    %v2740 = vld [vmem:[#allocation2 + $0x17c] sm:$0xf]
    %v2741 = vld [vmem:[#allocation2 + $0x180] sm:$0xff]
    %v2742 = vld [vmem:[#allocation2 + $0x188] sm:$0xf]
    %v2743 = vld [vmem:[#allocation2 + $0x18c] sm:$0xff]
    %v2744 = vld [vmem:[#allocation2 + $0x194] sm:$0xf]
    %v2745 = vld [vmem:[#allocation2 + $0x198] sm:$0xff]
    %v2746 = vld [vmem:[#allocation2 + $0x1a0] sm:$0xf]
    %v2747 = vld [vmem:[#allocation2 + $0x1a4] sm:$0xff]
    %v2748 = vld [vmem:[#allocation2 + $0x1ac] sm:$0xf]
    %v2749 = vld [vmem:[#allocation2 + $0x1b0] sm:$0xff]
    %v2750 = vld [vmem:[#allocation2 + $0x1b8] sm:$0xf]
    %v2751 = vld [vmem:[#allocation2 + $0x1bc] sm:$0xff]
    %v2752 = vld [vmem:[#allocation2 + $0x1c4] sm:$0xf]
    %v2753 = vld [vmem:[#allocation2 + $0x1c8] sm:$0xff]
    %v2754 = vld [vmem:[#allocation2 + $0x1d0] sm:$0xf]
    %v2755 = vld [vmem:[#allocation2 + $0x1d4] sm:$0xff]
    %v2756 = vld [vmem:[#allocation2 + $0x1dc] sm:$0xf]
    %v2757 = vld [vmem:[#allocation2 + $0x1e0] sm:$0xff]
    %v2758 = vld [vmem:[#allocation2 + $0x1e8] sm:$0xf]
    %v2759 = vld [vmem:[#allocation2 + $0x1ec] sm:$0xff]
    %v2760 = vld [vmem:[#allocation2 + $0x1f4] sm:$0xf]
    %v2761 = vld [vmem:[#allocation2 + $0x1f8] sm:$0xff]
    %v2762 = vld [vmem:[#allocation2 + $0x200] sm:$0xf]
    %v2763 = vld [vmem:[#allocation2 + $0x204] sm:$0xff]
    %v2764 = vld [vmem:[#allocation2 + $0x20c] sm:$0xf]
    %v2765 = vld [vmem:[#allocation2 + $0x210] sm:$0xff]
    %v2766 = vld [vmem:[#allocation2 + $0x218] sm:$0xf]
    %v2767 = vld [vmem:[#allocation2 + $0x21c] sm:$0xff]
    %v2768 = vld [vmem:[#allocation2 + $0x224] sm:$0xf]
    %v2769 = vld [vmem:[#allocation2 + $0x228] sm:$0xff]
    %v2770 = vld [vmem:[#allocation2 + $0x230] sm:$0xf]
    %v2771 = vld [vmem:[#allocation2 + $0x234] sm:$0xff]
    %v2772 = vld [vmem:[#allocation2 + $0x23c] sm:$0xf]
    %v2773 = vld [vmem:[#allocation2 + $0x240] sm:$0xff]
    %v2774 = vld [vmem:[#allocation2 + $0x248] sm:$0xf]
    %v2775 = vld [vmem:[#allocation2 + $0x24c] sm:$0xff]
    %v2776 = vld [vmem:[#allocation2 + $0x254] sm:$0xf]
    %v2777 = vld [vmem:[#allocation2 + $0x258] sm:$0xff]
    %v2778 = vld [vmem:[#allocation2 + $0x260] sm:$0xf]
    %v2779 = vld [vmem:[#allocation2 + $0x264] sm:$0xff]
    %v2780 = vld [vmem:[#allocation2 + $0x26c] sm:$0xf]
    %v2781 = vld [vmem:[#allocation2 + $0x270] sm:$0xff]
    %v2782 = vld [vmem:[#allocation2 + $0x278] sm:$0xf]
    %v2783 = vld [vmem:[#allocation2 + $0x27c] sm:$0xff]
    %v2784 = vld [vmem:[#allocation2 + $0x284] sm:$0xf]
    %v2785 = vld [vmem:[#allocation2 + $0x288] sm:$0xff]
    %v2786 = vld [vmem:[#allocation2 + $0x290] sm:$0xf]
    %v2787 = vld [vmem:[#allocation2 + $0x294] sm:$0xff]
    %v2788 = vld [vmem:[#allocation2 + $0x29c] sm:$0xf]
    %v2789 = vld [vmem:[#allocation2 + $0x2a0] sm:$0xff]
    %v2790 = vld [vmem:[#allocation2 + $0x2a8] sm:$0xf]
    %v2791 = vld [vmem:[#allocation2 + $0x2ac] sm:$0xff]
    %v2792 = vld [vmem:[#allocation2 + $0x2b4] sm:$0xf]
    %v2793 = vld [vmem:[#allocation2 + $0x2b8] sm:$0xff]
    %v2794 = vld [vmem:[#allocation2 + $0x2c0] sm:$0xf]
    %v2795 = vld [vmem:[#allocation2 + $0x2c4] sm:$0xff]
    %v2796 = vld [vmem:[#allocation2 + $0x2cc] sm:$0xf]
    %v2797 = vld [vmem:[#allocation2 + $0x2d0] sm:$0xff]
    %v2798 = vld [vmem:[#allocation2 + $0x2d8] sm:$0xf]
    %v2799 = vld [vmem:[#allocation2 + $0x2dc] sm:$0xff]
    %v2800 = vld [vmem:[#allocation2 + $0x2e4] sm:$0xf]
    %v2801 = vld [vmem:[#allocation2 + $0x2e8] sm:$0xff]
    %v2802 = vld [vmem:[#allocation2 + $0x2f0] sm:$0xf]
    %v2803 = vld [vmem:[#allocation2 + $0x2f4] sm:$0xff]
    %v2804 = vld [vmem:[#allocation2 + $0x2fc] sm:$0xf]
    %v2805 = vld [vmem:[#allocation2 + $0x300] sm:$0xff]
    %v2806 = vld [vmem:[#allocation2 + $0x308] sm:$0xf]
    %v2807 = vld [vmem:[#allocation2 + $0x30c] sm:$0xff]
    %v2808 = vld [vmem:[#allocation2 + $0x314] sm:$0xf]
    %v2809 = vld [vmem:[#allocation2 + $0x318] sm:$0xff]
    %v2810 = vld [vmem:[#allocation2 + $0x320] sm:$0xf]
    %v2811 = vld [vmem:[#allocation2 + $0x324] sm:$0xff]
    %v2812 = vld [vmem:[#allocation2 + $0x32c] sm:$0xf]
    %v2813 = vld [vmem:[#allocation2 + $0x330] sm:$0xff]
    %v2814 = vld [vmem:[#allocation2 + $0x338] sm:$0xf]
    %v2815 = vld [vmem:[#allocation2 + $0x33c] sm:$0xff]
    %v2816 = vld [vmem:[#allocation2 + $0x344] sm:$0xf]
    %v2817 = vld [vmem:[#allocation2 + $0x348] sm:$0xff]
    %v2818 = vld [vmem:[#allocation2 + $0x350] sm:$0xf]
    %v2819 = vld [vmem:[#allocation2 + $0x354] sm:$0xff]
    %v2820 = vld [vmem:[#allocation2 + $0x35c] sm:$0xf]
    %v2821 = vld [vmem:[#allocation2 + $0x360] sm:$0xff]
    %v2822 = vld [vmem:[#allocation2 + $0x368] sm:$0xf]
    %v2823 = vld [vmem:[#allocation2 + $0x36c] sm:$0xff]
    %v2824 = vld [vmem:[#allocation2 + $0x374] sm:$0xf]
    %v2825 = vld [vmem:[#allocation2 + $0x378] sm:$0xff]
    %v2826 = vld [vmem:[#allocation2 + $0x380] sm:$0xf]
    %v2827 = vld [vmem:[#allocation2 + $0x384] sm:$0xff]
    %v2828 = vld [vmem:[#allocation2 + $0x38c] sm:$0xf]
    %v2829 = vld [vmem:[#allocation2 + $0x390] sm:$0xff]
    %v2830 = vld [vmem:[#allocation2 + $0x398] sm:$0xf]
    %v2831 = vld [vmem:[#allocation2 + $0x39c] sm:$0xff]
    %v2832 = vld [vmem:[#allocation2 + $0x3a4] sm:$0xf]
    %v2833 = vld [vmem:[#allocation2 + $0x3a8] sm:$0xff]
    %v2834 = vld [vmem:[#allocation2 + $0x3b0] sm:$0xf]
    %v2835 = vld [vmem:[#allocation2 + $0x3b4] sm:$0xff]
    %v2836 = vld [vmem:[#allocation2 + $0x3bc] sm:$0xf]
    %v2837 = vld [vmem:[#allocation2 + $0x3c0] sm:$0xff]
    %v2838 = vld [vmem:[#allocation2 + $0x3c8] sm:$0xf]
    %v2839 = vld [vmem:[#allocation2 + $0x3cc] sm:$0xff]
    %v2840 = vld [vmem:[#allocation2 + $0x3d4] sm:$0xf]
    %v2841 = vld [vmem:[#allocation2 + $0x3d8] sm:$0xff]
    %v2842 = vld [vmem:[#allocation2 + $0x3e0] sm:$0xf]
    %v2843 = vld [vmem:[#allocation2 + $0x3e4] sm:$0xff]
    %v2844 = vld [vmem:[#allocation2 + $0x3ec] sm:$0xf]
    %v2845 = vld [vmem:[#allocation2 + $0x3f0] sm:$0xff]
    %v2846 = vld [vmem:[#allocation2 + $0x3f8] sm:$0xf]
    %v2847 = vld [vmem:[#allocation2 + $0x3fc] sm:$0xff]
    %v2848 = vld [vmem:[#allocation2 + $0x404] sm:$0xf]
    %v2849 = vld [vmem:[#allocation2 + $0x408] sm:$0xff]
    %v2850 = vld [vmem:[#allocation2 + $0x410] sm:$0xf]
    %v2851 = vld [vmem:[#allocation2 + $0x414] sm:$0xff]
    %v2852 = vld [vmem:[#allocation2 + $0x41c] sm:$0xf]
    %v2853 = vld [vmem:[#allocation2 + $0x420] sm:$0xff]
    %v2854 = vld [vmem:[#allocation2 + $0x428] sm:$0xf]
    %v2855 = vld [vmem:[#allocation2 + $0x42c] sm:$0xff]
    %v2856 = vld [vmem:[#allocation2 + $0x434] sm:$0xf]
    %v2857 = vld [vmem:[#allocation2 + $0x438] sm:$0xff]
    %v2858 = vld [vmem:[#allocation2 + $0x440] sm:$0xf]
    %v2859 = vld [vmem:[#allocation2 + $0x444] sm:$0xff]
    %v2860 = vld [vmem:[#allocation2 + $0x44c] sm:$0xf]
    %v2861 = vld [vmem:[#allocation2 + $0x450] sm:$0xff]
    %v2862 = vld [vmem:[#allocation2 + $0x458] sm:$0xf]
    %v2863 = vld [vmem:[#allocation2 + $0x45c] sm:$0xff]
    %v2864 = vld [vmem:[#allocation2 + $0x464] sm:$0xf]
    %v2865 = vld [vmem:[#allocation2 + $0x468] sm:$0xff]
    %v2866 = vld [vmem:[#allocation2 + $0x470] sm:$0xf]
    %v2867 = vld [vmem:[#allocation2 + $0x474] sm:$0xff]
    %v2868 = vld [vmem:[#allocation2 + $0x47c] sm:$0xf]
    %v2869 = vld [vmem:[#allocation2 + $0x480] sm:$0xff]
    %v2870 = vld [vmem:[#allocation2 + $0x488] sm:$0xf]
    %v2871 = vld [vmem:[#allocation2 + $0x48c] sm:$0xff]
    %v2872 = vld [vmem:[#allocation2 + $0x494] sm:$0xf]
    %v2873 = vld [vmem:[#allocation2 + $0x498] sm:$0xff]
    %v2874 = vld [vmem:[#allocation2 + $0x4a0] sm:$0xf]
    %v2875 = vld [vmem:[#allocation2 + $0x4a4] sm:$0xff]
    %v2876 = vld [vmem:[#allocation2 + $0x4ac] sm:$0xf]
    %v2877 = vld [vmem:[#allocation2 + $0x4b0] sm:$0xff]
    %v2878 = vld [vmem:[#allocation2 + $0x4b8] sm:$0xf]
    %v2879 = vld [vmem:[#allocation2 + $0x4bc] sm:$0xff]
    %v2880 = vld [vmem:[#allocation2 + $0x4c4] sm:$0xf]
    %v2881 = vld [vmem:[#allocation2 + $0x4c8] sm:$0xff]
    %v2882 = vld [vmem:[#allocation2 + $0x4d0] sm:$0xf]
    %v2883 = vld [vmem:[#allocation2 + $0x4d4] sm:$0xff]
    %v2884 = vld [vmem:[#allocation2 + $0x4dc] sm:$0xf]
    %v2885 = vld [vmem:[#allocation2 + $0x4e0] sm:$0xff]
    %v2886 = vld [vmem:[#allocation2 + $0x4e8] sm:$0xf]
    %v2887 = vld [vmem:[#allocation2 + $0x4ec] sm:$0xff]
    %v2888 = vld [vmem:[#allocation2 + $0x4f4] sm:$0xf]
    %v2889 = vld [vmem:[#allocation2 + $0x4f8] sm:$0xff]
    %v2890 = vld [vmem:[#allocation2 + $0x500] sm:$0xf]
    %v2891 = vld [vmem:[#allocation2 + $0x504] sm:$0xff]
    %v2892 = vld [vmem:[#allocation2 + $0x50c] sm:$0xf]
    %v2893 = vld [vmem:[#allocation2 + $0x510] sm:$0xff]
    %v2894 = vld [vmem:[#allocation2 + $0x518] sm:$0xf]
    %v2895 = vld [vmem:[#allocation2 + $0x51c] sm:$0xff]
    %v2896 = vld [vmem:[#allocation2 + $0x524] sm:$0xf]
    %v2897 = vld [vmem:[#allocation2 + $0x528] sm:$0xff]
    %v2898 = vld [vmem:[#allocation2 + $0x530] sm:$0xf]
    %v2899 = vld [vmem:[#allocation2 + $0x534] sm:$0xff]
    %v2900 = vld [vmem:[#allocation2 + $0x53c] sm:$0xf]
    %v2901 = vld [vmem:[#allocation2 + $0x540] sm:$0xff]
    %v2902 = vld [vmem:[#allocation2 + $0x548] sm:$0xf]
    %v2903 = vld [vmem:[#allocation2 + $0x54c] sm:$0xff]
    %v2904 = vld [vmem:[#allocation2 + $0x554] sm:$0xf]
    %v2905 = vld [vmem:[#allocation2 + $0x558] sm:$0xff]
    %v2906 = vld [vmem:[#allocation2 + $0x560] sm:$0xf]
    %v2907 = vld [vmem:[#allocation2 + $0x564] sm:$0xff]
    %v2908 = vld [vmem:[#allocation2 + $0x56c] sm:$0xf]
    %v2909 = vld [vmem:[#allocation2 + $0x570] sm:$0xff]
    %v2910 = vld [vmem:[#allocation2 + $0x578] sm:$0xf]
    %v2911 = vld [vmem:[#allocation2 + $0x57c] sm:$0xff]
    %v2912 = vld [vmem:[#allocation2 + $0x584] sm:$0xf]
    %v2913 = vld [vmem:[#allocation2 + $0x588] sm:$0xff]
    %v2914 = vld [vmem:[#allocation2 + $0x590] sm:$0xf]
    %v2915 = vld [vmem:[#allocation2 + $0x594] sm:$0xff]
    %v2916 = vld [vmem:[#allocation2 + $0x59c] sm:$0xf]
    %v2917 = vld [vmem:[#allocation2 + $0x5a0] sm:$0xff]
    %v2918 = vld [vmem:[#allocation2 + $0x5a8] sm:$0xf]
    %v2919 = vld [vmem:[#allocation2 + $0x5ac] sm:$0xff]
    %v2920 = vld [vmem:[#allocation2 + $0x5b4] sm:$0xf]
    %v2921 = vld [vmem:[#allocation2 + $0x5b8] sm:$0xff]
    %v2922 = vld [vmem:[#allocation2 + $0x5c0] sm:$0xf]
    %v2923 = vld [vmem:[#allocation2 + $0x5c4] sm:$0xff]
    %v2924 = vld [vmem:[#allocation2 + $0x5cc] sm:$0xf]
    %v2925 = vld [vmem:[#allocation2 + $0x5d0] sm:$0xff]
    %v2926 = vld [vmem:[#allocation2 + $0x5d8] sm:$0xf]
    %v2927 = vld [vmem:[#allocation2 + $0x5dc] sm:$0xff]
    %v2928 = vld [vmem:[#allocation2 + $0x5e4] sm:$0xf]
    %v2929 = vld [vmem:[#allocation2 + $0x5e8] sm:$0xff]
    %v2930 = vld [vmem:[#allocation2 + $0x5f0] sm:$0xf]
    %v2931 = vld [vmem:[#allocation2 + $0x5f4] sm:$0xff]
    %v2932 = vld [vmem:[#allocation2 + $0x5fc] sm:$0xf]
    %v2933 = vld [vmem:[#allocation2 + $0x600] sm:$0xff]
    %v2934 = vld [vmem:[#allocation2 + $0x608] sm:$0xf]
    %v2935 = vld [vmem:[#allocation2 + $0x60c] sm:$0xff]
    %v2936 = vld [vmem:[#allocation2 + $0x614] sm:$0xf]
    %v2937 = vld [vmem:[#allocation2 + $0x618] sm:$0xff]
    %v2938 = vld [vmem:[#allocation2 + $0x620] sm:$0xf]
    %v2939 = vld [vmem:[#allocation2 + $0x624] sm:$0xff]
    %v2940 = vld [vmem:[#allocation2 + $0x62c] sm:$0xf]
    %v2941 = vld [vmem:[#allocation2 + $0x630] sm:$0xff]
    %v2942 = vld [vmem:[#allocation2 + $0x638] sm:$0xf]
    %v2943 = vld [vmem:[#allocation2 + $0x63c] sm:$0xff]
    %v2944 = vld [vmem:[#allocation2 + $0x644] sm:$0xf]
    %v2945 = vld [vmem:[#allocation2 + $0x648] sm:$0xff]
    %v2946 = vld [vmem:[#allocation2 + $0x650] sm:$0xf]
    %v2947 = vld [vmem:[#allocation2 + $0x654] sm:$0xff]
    %v2948 = vld [vmem:[#allocation2 + $0x65c] sm:$0xf]
    %v2949 = vld [vmem:[#allocation2 + $0x660] sm:$0xff]
    %v2950 = vld [vmem:[#allocation2 + $0x668] sm:$0xf]
    %v2951 = vld [vmem:[#allocation2 + $0x66c] sm:$0xff]
    %v2952 = vld [vmem:[#allocation2 + $0x674] sm:$0xf]
    %v2953 = vld [vmem:[#allocation2 + $0x678] sm:$0xff]
    %v2954 = vld [vmem:[#allocation2 + $0x680] sm:$0xf]
    %v2955 = vld [vmem:[#allocation2 + $0x684] sm:$0xff]
    %v2956 = vld [vmem:[#allocation2 + $0x68c] sm:$0xf]
    %v2957 = vld [vmem:[#allocation2 + $0x690] sm:$0xff]
    %v2958 = vld [vmem:[#allocation2 + $0x698] sm:$0xf]
    %v2959 = vld [vmem:[#allocation2 + $0x69c] sm:$0xff]
    %v2960 = vld [vmem:[#allocation2 + $0x6a4] sm:$0xf]
    %v2961 = vld [vmem:[#allocation2 + $0x6a8] sm:$0xff]
    %v2962 = vld [vmem:[#allocation2 + $0x6b0] sm:$0xf]
    %v2963 = vld [vmem:[#allocation2 + $0x6b4] sm:$0xff]
    %v2964 = vld [vmem:[#allocation2 + $0x6bc] sm:$0xf]
    %v2965 = vld [vmem:[#allocation2 + $0x6c0] sm:$0xff]
    %v2966 = vld [vmem:[#allocation2 + $0x6c8] sm:$0xf]
    %v2967 = vld [vmem:[#allocation2 + $0x6cc] sm:$0xff]
    %v2968 = vld [vmem:[#allocation2 + $0x6d4] sm:$0xf]
    %v2969 = vld [vmem:[#allocation2 + $0x6d8] sm:$0xff]
    %v2970 = vld [vmem:[#allocation2 + $0x6e0] sm:$0xf]
    %v2971 = vld [vmem:[#allocation2 + $0x6e4] sm:$0xff]
    %v2972 = vld [vmem:[#allocation2 + $0x6ec] sm:$0xf]
    %v2973 = vld [vmem:[#allocation2 + $0x6f0] sm:$0xff]
    %v2974 = vld [vmem:[#allocation2 + $0x6f8] sm:$0xf]
    %v2975 = vld [vmem:[#allocation2 + $0x6fc] sm:$0xff]
    %v2976 = vld [vmem:[#allocation2 + $0x704] sm:$0xf]
    %v2977 = vld [vmem:[#allocation2 + $0x708] sm:$0xff]
    %v2978 = vld [vmem:[#allocation2 + $0x710] sm:$0xf]
    %v2979 = vld [vmem:[#allocation2 + $0x714] sm:$0xff]
    %v2980 = vld [vmem:[#allocation2 + $0x71c] sm:$0xf]
    %v2981 = vld [vmem:[#allocation2 + $0x720] sm:$0xff]
    %v2982 = vld [vmem:[#allocation2 + $0x728] sm:$0xf]
    %v2983 = vld [vmem:[#allocation2 + $0x72c] sm:$0xff]
    %v2984 = vld [vmem:[#allocation2 + $0x734] sm:$0xf]
    %v2985 = vld [vmem:[#allocation2 + $0x738] sm:$0xff]
    %v2986 = vld [vmem:[#allocation2 + $0x740] sm:$0xf]
    %v2987 = vld [vmem:[#allocation2 + $0x744] sm:$0xff]
    %v2988 = vld [vmem:[#allocation2 + $0x74c] sm:$0xf]
    %v2989 = vld [vmem:[#allocation2 + $0x750] sm:$0xff]
    %v2990 = vld [vmem:[#allocation2 + $0x758] sm:$0xf]
    %v2991 = vld [vmem:[#allocation2 + $0x75c] sm:$0xff]
    %v2992 = vld [vmem:[#allocation2 + $0x764] sm:$0xf]
    %v2993 = vld [vmem:[#allocation2 + $0x768] sm:$0xff]
    %v2994 = vld [vmem:[#allocation2 + $0x770] sm:$0xf]
    %v2995 = vld [vmem:[#allocation2 + $0x774] sm:$0xff]
    %v2996 = vld [vmem:[#allocation2 + $0x77c] sm:$0xf]
    %v2997 = vld [vmem:[%s4] sm:$0x7]
    %v2999 = vperm.slane %v2997, 0
    %v3000 = vperm.slane %v2997, 1
    %v3001 = vperm.slane %v2997, 2
    %v3325 = vunpack.c.l.b16 %v2677
    %v3326 = vunpack.c.h.b16 %v2677
    %v3327 = vunpack.c.l.b16 %v2678
    %v3328 = vunpack.c.l.b16 %v2679
    %v3329 = vunpack.c.h.b16 %v2679
    %v3330 = vunpack.c.l.b16 %v2680
    %v3331 = vunpack.c.l.b16 %v2681
    %v3332 = vunpack.c.h.b16 %v2681
    %v3333 = vunpack.c.l.b16 %v2682
    %v3334 = vunpack.c.l.b16 %v2683
    %v3335 = vunpack.c.h.b16 %v2683
    %v3336 = vunpack.c.l.b16 %v2684
    %v3337 = vunpack.c.l.b16 %v2685
    %v3338 = vunpack.c.h.b16 %v2685
    %v3339 = vunpack.c.l.b16 %v2686
    %v3340 = vunpack.c.l.b16 %v2687
    %v3341 = vunpack.c.h.b16 %v2687
    %v3342 = vunpack.c.l.b16 %v2688
    %v3343 = vunpack.c.l.b16 %v2689
    %v3344 = vunpack.c.h.b16 %v2689
    %v3345 = vunpack.c.l.b16 %v2690
    %v3346 = vunpack.c.l.b16 %v2691
    %v3347 = vunpack.c.h.b16 %v2691
    %v3348 = vunpack.c.l.b16 %v2692
    %v3349 = vunpack.c.l.b16 %v2693
    %v3350 = vunpack.c.h.b16 %v2693
    %v3351 = vunpack.c.l.b16 %v2694
    %v3352 = vunpack.c.l.b16 %v2695
    %v3353 = vunpack.c.h.b16 %v2695
    %v3354 = vunpack.c.l.b16 %v2696
    %v3355 = vunpack.c.l.b16 %v2697
    %v3356 = vunpack.c.h.b16 %v2697
    %v3357 = vunpack.c.l.b16 %v2698
    %v3358 = vunpack.c.l.b16 %v2699
    %v3359 = vunpack.c.h.b16 %v2699
    %v3360 = vunpack.c.l.b16 %v2700
    %v3361 = vunpack.c.l.b16 %v2701
    %v3362 = vunpack.c.h.b16 %v2701
    %v3363 = vunpack.c.l.b16 %v2702
    %v3364 = vunpack.c.l.b16 %v2703
    %v3365 = vunpack.c.h.b16 %v2703
    %v3366 = vunpack.c.l.b16 %v2704
    %v3367 = vunpack.c.l.b16 %v2705
    %v3368 = vunpack.c.h.b16 %v2705
    %v3369 = vunpack.c.l.b16 %v2706
    %v3370 = vunpack.c.l.b16 %v2707
    %v3371 = vunpack.c.h.b16 %v2707
    %v3372 = vunpack.c.l.b16 %v2708
    %v3373 = vunpack.c.l.b16 %v2709
    %v3374 = vunpack.c.h.b16 %v2709
    %v3375 = vunpack.c.l.b16 %v2710
    %v3376 = vunpack.c.l.b16 %v2711
    %v3377 = vunpack.c.h.b16 %v2711
    %v3378 = vunpack.c.l.b16 %v2712
    %v3379 = vunpack.c.l.b16 %v2713
    %v3380 = vunpack.c.h.b16 %v2713
    %v3381 = vunpack.c.l.b16 %v2714
    %v3382 = vunpack.c.l.b16 %v2715
    %v3383 = vunpack.c.h.b16 %v2715
    %v3384 = vunpack.c.l.b16 %v2716
    %v3385 = vunpack.c.l.b16 %v2717
    %v3386 = vunpack.c.h.b16 %v2717
    %v3387 = vunpack.c.l.b16 %v2718
    %v3388 = vunpack.c.l.b16 %v2719
    %v3389 = vunpack.c.h.b16 %v2719
    %v3390 = vunpack.c.l.b16 %v2720
    %v3391 = vunpack.c.l.b16 %v2721
    %v3392 = vunpack.c.h.b16 %v2721
    %v3393 = vunpack.c.l.b16 %v2722
    %v3394 = vunpack.c.l.b16 %v2723
    %v3395 = vunpack.c.h.b16 %v2723
    %v3396 = vunpack.c.l.b16 %v2724
    %v3397 = vunpack.c.l.b16 %v2725
    %v3398 = vunpack.c.h.b16 %v2725
    %v3399 = vunpack.c.l.b16 %v2726
    %v3400 = vunpack.c.l.b16 %v2727
    %v3401 = vunpack.c.h.b16 %v2727
    %v3402 = vunpack.c.l.b16 %v2728
    %v3403 = vunpack.c.l.b16 %v2729
    %v3404 = vunpack.c.h.b16 %v2729
    %v3405 = vunpack.c.l.b16 %v2730
    %v3406 = vunpack.c.l.b16 %v2731
    %v3407 = vunpack.c.h.b16 %v2731
    %v3408 = vunpack.c.l.b16 %v2732
    %v3409 = vunpack.c.l.b16 %v2733
    %v3410 = vunpack.c.h.b16 %v2733
    %v3411 = vunpack.c.l.b16 %v2734
    %v3412 = vunpack.c.l.b16 %v2735
    %v3413 = vunpack.c.h.b16 %v2735
    %v3414 = vunpack.c.l.b16 %v2736
    %v3415 = vunpack.c.l.b16 %v2737
    %v3416 = vunpack.c.h.b16 %v2737
    %v3417 = vunpack.c.l.b16 %v2738
    %v3418 = vunpack.c.l.b16 %v2739
    %v3419 = vunpack.c.h.b16 %v2739
    %v3420 = vunpack.c.l.b16 %v2740
    %v3421 = vunpack.c.l.b16 %v2741
    %v3422 = vunpack.c.h.b16 %v2741
    %v3423 = vunpack.c.l.b16 %v2742
    %v3424 = vunpack.c.l.b16 %v2743
    %v3425 = vunpack.c.h.b16 %v2743
    %v3426 = vunpack.c.l.b16 %v2744
    %v3427 = vunpack.c.l.b16 %v2745
    %v3428 = vunpack.c.h.b16 %v2745
    %v3429 = vunpack.c.l.b16 %v2746
    %v3430 = vunpack.c.l.b16 %v2747
    %v3431 = vunpack.c.h.b16 %v2747
    %v3432 = vunpack.c.l.b16 %v2748
    %v3433 = vunpack.c.l.b16 %v2749
    %v3434 = vunpack.c.h.b16 %v2749
    %v3435 = vunpack.c.l.b16 %v2750
    %v3436 = vunpack.c.l.b16 %v2751
    %v3437 = vunpack.c.h.b16 %v2751
    %v3438 = vunpack.c.l.b16 %v2752
    %v3439 = vunpack.c.l.b16 %v2753
    %v3440 = vunpack.c.h.b16 %v2753
    %v3441 = vunpack.c.l.b16 %v2754
    %v3442 = vunpack.c.l.b16 %v2755
    %v3443 = vunpack.c.h.b16 %v2755
    %v3444 = vunpack.c.l.b16 %v2756
    %v3445 = vunpack.c.l.b16 %v2757
    %v3446 = vunpack.c.h.b16 %v2757
    %v3447 = vunpack.c.l.b16 %v2758
    %v3448 = vunpack.c.l.b16 %v2759
    %v3449 = vunpack.c.h.b16 %v2759
    %v3450 = vunpack.c.l.b16 %v2760
    %v3451 = vunpack.c.l.b16 %v2761
    %v3452 = vunpack.c.h.b16 %v2761
    %v3453 = vunpack.c.l.b16 %v2762
    %v3454 = vunpack.c.l.b16 %v2763
    %v3455 = vunpack.c.h.b16 %v2763
    %v3456 = vunpack.c.l.b16 %v2764
    %v3457 = vunpack.c.l.b16 %v2765
    %v3458 = vunpack.c.h.b16 %v2765
    %v3459 = vunpack.c.l.b16 %v2766
    %v3460 = vunpack.c.l.b16 %v2767
    %v3461 = vunpack.c.h.b16 %v2767
    %v3462 = vunpack.c.l.b16 %v2768
    %v3463 = vunpack.c.l.b16 %v2769
    %v3464 = vunpack.c.h.b16 %v2769
    %v3465 = vunpack.c.l.b16 %v2770
    %v3466 = vunpack.c.l.b16 %v2771
    %v3467 = vunpack.c.h.b16 %v2771
    %v3468 = vunpack.c.l.b16 %v2772
    %v3469 = vunpack.c.l.b16 %v2773
    %v3470 = vunpack.c.h.b16 %v2773
    %v3471 = vunpack.c.l.b16 %v2774
    %v3472 = vunpack.c.l.b16 %v2775
    %v3473 = vunpack.c.h.b16 %v2775
    %v3474 = vunpack.c.l.b16 %v2776
    %v3475 = vunpack.c.l.b16 %v2777
    %v3476 = vunpack.c.h.b16 %v2777
    %v3477 = vunpack.c.l.b16 %v2778
    %v3478 = vunpack.c.l.b16 %v2779
    %v3479 = vunpack.c.h.b16 %v2779
    %v3480 = vunpack.c.l.b16 %v2780
    %v3481 = vunpack.c.l.b16 %v2781
    %v3482 = vunpack.c.h.b16 %v2781
    %v3483 = vunpack.c.l.b16 %v2782
    %v3484 = vunpack.c.l.b16 %v2783
    %v3485 = vunpack.c.h.b16 %v2783
    %v3486 = vunpack.c.l.b16 %v2784
    %v3487 = vunpack.c.l.b16 %v2785
    %v3488 = vunpack.c.h.b16 %v2785
    %v3489 = vunpack.c.l.b16 %v2786
    %v3490 = vunpack.c.l.b16 %v2787
    %v3491 = vunpack.c.h.b16 %v2787
    %v3492 = vunpack.c.l.b16 %v2788
    %v3493 = vunpack.c.l.b16 %v2789
    %v3494 = vunpack.c.h.b16 %v2789
    %v3495 = vunpack.c.l.b16 %v2790
    %v3496 = vunpack.c.l.b16 %v2791
    %v3497 = vunpack.c.h.b16 %v2791
    %v3498 = vunpack.c.l.b16 %v2792
    %v3499 = vunpack.c.l.b16 %v2793
    %v3500 = vunpack.c.h.b16 %v2793
    %v3501 = vunpack.c.l.b16 %v2794
    %v3502 = vunpack.c.l.b16 %v2795
    %v3503 = vunpack.c.h.b16 %v2795
    %v3504 = vunpack.c.l.b16 %v2796
    %v3505 = vunpack.c.l.b16 %v2797
    %v3506 = vunpack.c.h.b16 %v2797
    %v3507 = vunpack.c.l.b16 %v2798
    %v3508 = vunpack.c.l.b16 %v2799
    %v3509 = vunpack.c.h.b16 %v2799
    %v3510 = vunpack.c.l.b16 %v2800
    %v3511 = vunpack.c.l.b16 %v2801
    %v3512 = vunpack.c.h.b16 %v2801
    %v3513 = vunpack.c.l.b16 %v2802
    %v3514 = vunpack.c.l.b16 %v2803
    %v3515 = vunpack.c.h.b16 %v2803
    %v3516 = vunpack.c.l.b16 %v2804
    %v3517 = vunpack.c.l.b16 %v2805
    %v3518 = vunpack.c.h.b16 %v2805
    %v3519 = vunpack.c.l.b16 %v2806
    %v3520 = vunpack.c.l.b16 %v2807
    %v3521 = vunpack.c.h.b16 %v2807
    %v3522 = vunpack.c.l.b16 %v2808
    %v3523 = vunpack.c.l.b16 %v2809
    %v3524 = vunpack.c.h.b16 %v2809
    %v3525 = vunpack.c.l.b16 %v2810
    %v3526 = vunpack.c.l.b16 %v2811
    %v3527 = vunpack.c.h.b16 %v2811
    %v3528 = vunpack.c.l.b16 %v2812
    %v3529 = vunpack.c.l.b16 %v2813
    %v3530 = vunpack.c.h.b16 %v2813
    %v3531 = vunpack.c.l.b16 %v2814
    %v3532 = vunpack.c.l.b16 %v2815
    %v3533 = vunpack.c.h.b16 %v2815
    %v3534 = vunpack.c.l.b16 %v2816
    %v3535 = vunpack.c.l.b16 %v2817
    %v3536 = vunpack.c.h.b16 %v2817
    %v3537 = vunpack.c.l.b16 %v2818
    %v3538 = vunpack.c.l.b16 %v2819
    %v3539 = vunpack.c.h.b16 %v2819
    %v3540 = vunpack.c.l.b16 %v2820
    %v3541 = vunpack.c.l.b16 %v2821
    %v3542 = vunpack.c.h.b16 %v2821
    %v3543 = vunpack.c.l.b16 %v2822
    %v3544 = vunpack.c.l.b16 %v2823
    %v3545 = vunpack.c.h.b16 %v2823
    %v3546 = vunpack.c.l.b16 %v2824
    %v3547 = vunpack.c.l.b16 %v2825
    %v3548 = vunpack.c.h.b16 %v2825
    %v3549 = vunpack.c.l.b16 %v2826
    %v3550 = vunpack.c.l.b16 %v2827
    %v3551 = vunpack.c.h.b16 %v2827
    %v3552 = vunpack.c.l.b16 %v2828
    %v3553 = vunpack.c.l.b16 %v2829
    %v3554 = vunpack.c.h.b16 %v2829
    %v3555 = vunpack.c.l.b16 %v2830
    %v3556 = vunpack.c.l.b16 %v2831
    %v3557 = vunpack.c.h.b16 %v2831
    %v3558 = vunpack.c.l.b16 %v2832
    %v3559 = vunpack.c.l.b16 %v2833
    %v3560 = vunpack.c.h.b16 %v2833
    %v3561 = vunpack.c.l.b16 %v2834
    %v3562 = vunpack.c.l.b16 %v2835
    %v3563 = vunpack.c.h.b16 %v2835
    %v3564 = vunpack.c.l.b16 %v2836
    %v3565 = vunpack.c.l.b16 %v2837
    %v3566 = vunpack.c.h.b16 %v2837
    %v3567 = vunpack.c.l.b16 %v2838
    %v3568 = vunpack.c.l.b16 %v2839
    %v3569 = vunpack.c.h.b16 %v2839
    %v3570 = vunpack.c.l.b16 %v2840
    %v3571 = vunpack.c.l.b16 %v2841
    %v3572 = vunpack.c.h.b16 %v2841
    %v3573 = vunpack.c.l.b16 %v2842
    %v3574 = vunpack.c.l.b16 %v2843
    %v3575 = vunpack.c.h.b16 %v2843
    %v3576 = vunpack.c.l.b16 %v2844
    %v3577 = vunpack.c.l.b16 %v2845
    %v3578 = vunpack.c.h.b16 %v2845
    %v3579 = vunpack.c.l.b16 %v2846
    %v3580 = vunpack.c.l.b16 %v2847
    %v3581 = vunpack.c.h.b16 %v2847
    %v3582 = vunpack.c.l.b16 %v2848
    %v3583 = vunpack.c.l.b16 %v2849
    %v3584 = vunpack.c.h.b16 %v2849
    %v3585 = vunpack.c.l.b16 %v2850
    %v3586 = vunpack.c.l.b16 %v2851
    %v3587 = vunpack.c.h.b16 %v2851
    %v3588 = vunpack.c.l.b16 %v2852
    %v3589 = vunpack.c.l.b16 %v2853
    %v3590 = vunpack.c.h.b16 %v2853
    %v3591 = vunpack.c.l.b16 %v2854
    %v3592 = vunpack.c.l.b16 %v2855
    %v3593 = vunpack.c.h.b16 %v2855
    %v3594 = vunpack.c.l.b16 %v2856
    %v3595 = vunpack.c.l.b16 %v2857
    %v3596 = vunpack.c.h.b16 %v2857
    %v3597 = vunpack.c.l.b16 %v2858
    %v3598 = vunpack.c.l.b16 %v2859
    %v3599 = vunpack.c.h.b16 %v2859
    %v3600 = vunpack.c.l.b16 %v2860
    %v3601 = vunpack.c.l.b16 %v2861
    %v3602 = vunpack.c.h.b16 %v2861
    %v3603 = vunpack.c.l.b16 %v2862
    %v3604 = vunpack.c.l.b16 %v2863
    %v3605 = vunpack.c.h.b16 %v2863
    %v3606 = vunpack.c.l.b16 %v2864
    %v3607 = vunpack.c.l.b16 %v2865
    %v3608 = vunpack.c.h.b16 %v2865
    %v3609 = vunpack.c.l.b16 %v2866
    %v3610 = vunpack.c.l.b16 %v2867
    %v3611 = vunpack.c.h.b16 %v2867
    %v3612 = vunpack.c.l.b16 %v2868
    %v3613 = vunpack.c.l.b16 %v2869
    %v3614 = vunpack.c.h.b16 %v2869
    %v3615 = vunpack.c.l.b16 %v2870
    %v3616 = vunpack.c.l.b16 %v2871
    %v3617 = vunpack.c.h.b16 %v2871
    %v3618 = vunpack.c.l.b16 %v2872
    %v3619 = vunpack.c.l.b16 %v2873
    %v3620 = vunpack.c.h.b16 %v2873
    %v3621 = vunpack.c.l.b16 %v2874
    %v3622 = vunpack.c.l.b16 %v2875
    %v3623 = vunpack.c.h.b16 %v2875
    %v3624 = vunpack.c.l.b16 %v2876
    %v3625 = vunpack.c.l.b16 %v2877
    %v3626 = vunpack.c.h.b16 %v2877
    %v3627 = vunpack.c.l.b16 %v2878
    %v3628 = vunpack.c.l.b16 %v2879
    %v3629 = vunpack.c.h.b16 %v2879
    %v3630 = vunpack.c.l.b16 %v2880
    %v3631 = vunpack.c.l.b16 %v2881
    %v3632 = vunpack.c.h.b16 %v2881
    %v3633 = vunpack.c.l.b16 %v2882
    %v3634 = vunpack.c.l.b16 %v2883
    %v3635 = vunpack.c.h.b16 %v2883
    %v3636 = vunpack.c.l.b16 %v2884
    %v3637 = vunpack.c.l.b16 %v2885
    %v3638 = vunpack.c.h.b16 %v2885
    %v3639 = vunpack.c.l.b16 %v2886
    %v3640 = vunpack.c.l.b16 %v2887
    %v3641 = vunpack.c.h.b16 %v2887
    %v3642 = vunpack.c.l.b16 %v2888
    %v3643 = vunpack.c.l.b16 %v2889
    %v3644 = vunpack.c.h.b16 %v2889
    %v3645 = vunpack.c.l.b16 %v2890
    %v3646 = vunpack.c.l.b16 %v2891
    %v3647 = vunpack.c.h.b16 %v2891
    %v3648 = vunpack.c.l.b16 %v2892
    %v3649 = vunpack.c.l.b16 %v2893
    %v3650 = vunpack.c.h.b16 %v2893
    %v3651 = vunpack.c.l.b16 %v2894
    %v3652 = vunpack.c.l.b16 %v2895
    %v3653 = vunpack.c.h.b16 %v2895
    %v3654 = vunpack.c.l.b16 %v2896
    %v3655 = vunpack.c.l.b16 %v2897
    %v3656 = vunpack.c.h.b16 %v2897
    %v3657 = vunpack.c.l.b16 %v2898
    %v3658 = vunpack.c.l.b16 %v2899
    %v3659 = vunpack.c.h.b16 %v2899
    %v3660 = vunpack.c.l.b16 %v2900
    %v3661 = vunpack.c.l.b16 %v2901
    %v3662 = vunpack.c.h.b16 %v2901
    %v3663 = vunpack.c.l.b16 %v2902
    %v3664 = vunpack.c.l.b16 %v2903
    %v3665 = vunpack.c.h.b16 %v2903
    %v3666 = vunpack.c.l.b16 %v2904
    %v3667 = vunpack.c.l.b16 %v2905
    %v3668 = vunpack.c.h.b16 %v2905
    %v3669 = vunpack.c.l.b16 %v2906
    %v3670 = vunpack.c.l.b16 %v2907
    %v3671 = vunpack.c.h.b16 %v2907
    %v3672 = vunpack.c.l.b16 %v2908
    %v3673 = vunpack.c.l.b16 %v2909
    %v3674 = vunpack.c.h.b16 %v2909
    %v3675 = vunpack.c.l.b16 %v2910
    %v3676 = vunpack.c.l.b16 %v2911
    %v3677 = vunpack.c.h.b16 %v2911
    %v3678 = vunpack.c.l.b16 %v2912
    %v3679 = vunpack.c.l.b16 %v2913
    %v3680 = vunpack.c.h.b16 %v2913
    %v3681 = vunpack.c.l.b16 %v2914
    %v3682 = vunpack.c.l.b16 %v2915
    %v3683 = vunpack.c.h.b16 %v2915
    %v3684 = vunpack.c.l.b16 %v2916
    %v3685 = vunpack.c.l.b16 %v2917
    %v3686 = vunpack.c.h.b16 %v2917
    %v3687 = vunpack.c.l.b16 %v2918
    %v3688 = vunpack.c.l.b16 %v2919
    %v3689 = vunpack.c.h.b16 %v2919
    %v3690 = vunpack.c.l.b16 %v2920
    %v3691 = vunpack.c.l.b16 %v2921
    %v3692 = vunpack.c.h.b16 %v2921
    %v3693 = vunpack.c.l.b16 %v2922
    %v3694 = vunpack.c.l.b16 %v2923
    %v3695 = vunpack.c.h.b16 %v2923
    %v3696 = vunpack.c.l.b16 %v2924
    %v3697 = vunpack.c.l.b16 %v2925
    %v3698 = vunpack.c.h.b16 %v2925
    %v3699 = vunpack.c.l.b16 %v2926
    %v3700 = vunpack.c.l.b16 %v2927
    %v3701 = vunpack.c.h.b16 %v2927
    %v3702 = vunpack.c.l.b16 %v2928
    %v3703 = vunpack.c.l.b16 %v2929
    %v3704 = vunpack.c.h.b16 %v2929
    %v3705 = vunpack.c.l.b16 %v2930
    %v3706 = vunpack.c.l.b16 %v2931
    %v3707 = vunpack.c.h.b16 %v2931
    %v3708 = vunpack.c.l.b16 %v2932
    %v3709 = vunpack.c.l.b16 %v2933
    %v3710 = vunpack.c.h.b16 %v2933
    %v3711 = vunpack.c.l.b16 %v2934
    %v3712 = vunpack.c.l.b16 %v2935
    %v3713 = vunpack.c.h.b16 %v2935
    %v3714 = vunpack.c.l.b16 %v2936
    %v3715 = vunpack.c.l.b16 %v2937
    %v3716 = vunpack.c.h.b16 %v2937
    %v3717 = vunpack.c.l.b16 %v2938
    %v3718 = vunpack.c.l.b16 %v2939
    %v3719 = vunpack.c.h.b16 %v2939
    %v3720 = vunpack.c.l.b16 %v2940
    %v3721 = vunpack.c.l.b16 %v2941
    %v3722 = vunpack.c.h.b16 %v2941
    %v3723 = vunpack.c.l.b16 %v2942
    %v3724 = vunpack.c.l.b16 %v2943
    %v3725 = vunpack.c.h.b16 %v2943
    %v3726 = vunpack.c.l.b16 %v2944
    %v3727 = vunpack.c.l.b16 %v2945
    %v3728 = vunpack.c.h.b16 %v2945
    %v3729 = vunpack.c.l.b16 %v2946
    %v3730 = vunpack.c.l.b16 %v2947
    %v3731 = vunpack.c.h.b16 %v2947
    %v3732 = vunpack.c.l.b16 %v2948
    %v3733 = vunpack.c.l.b16 %v2949
    %v3734 = vunpack.c.h.b16 %v2949
    %v3735 = vunpack.c.l.b16 %v2950
    %v3736 = vunpack.c.l.b16 %v2951
    %v3737 = vunpack.c.h.b16 %v2951
    %v3738 = vunpack.c.l.b16 %v2952
    %v3739 = vunpack.c.l.b16 %v2953
    %v3740 = vunpack.c.h.b16 %v2953
    %v3741 = vunpack.c.l.b16 %v2954
    %v3742 = vunpack.c.l.b16 %v2955
    %v3743 = vunpack.c.h.b16 %v2955
    %v3744 = vunpack.c.l.b16 %v2956
    %v3745 = vunpack.c.l.b16 %v2957
    %v3746 = vunpack.c.h.b16 %v2957
    %v3747 = vunpack.c.l.b16 %v2958
    %v3748 = vunpack.c.l.b16 %v2959
    %v3749 = vunpack.c.h.b16 %v2959
    %v3750 = vunpack.c.l.b16 %v2960
    %v3751 = vunpack.c.l.b16 %v2961
    %v3752 = vunpack.c.h.b16 %v2961
    %v3753 = vunpack.c.l.b16 %v2962
    %v3754 = vunpack.c.l.b16 %v2963
    %v3755 = vunpack.c.h.b16 %v2963
    %v3756 = vunpack.c.l.b16 %v2964
    %v3757 = vunpack.c.l.b16 %v2965
    %v3758 = vunpack.c.h.b16 %v2965
    %v3759 = vunpack.c.l.b16 %v2966
    %v3760 = vunpack.c.l.b16 %v2967
    %v3761 = vunpack.c.h.b16 %v2967
    %v3762 = vunpack.c.l.b16 %v2968
    %v3763 = vunpack.c.l.b16 %v2969
    %v3764 = vunpack.c.h.b16 %v2969
    %v3765 = vunpack.c.l.b16 %v2970
    %v3766 = vunpack.c.l.b16 %v2971
    %v3767 = vunpack.c.h.b16 %v2971
    %v3768 = vunpack.c.l.b16 %v2972
    %v3769 = vunpack.c.l.b16 %v2973
    %v3770 = vunpack.c.h.b16 %v2973
    %v3771 = vunpack.c.l.b16 %v2974
    %v3772 = vunpack.c.l.b16 %v2975
    %v3773 = vunpack.c.h.b16 %v2975
    %v3774 = vunpack.c.l.b16 %v2976
    %v3775 = vunpack.c.l.b16 %v2977
    %v3776 = vunpack.c.h.b16 %v2977
    %v3777 = vunpack.c.l.b16 %v2978
    %v3778 = vunpack.c.l.b16 %v2979
    %v3779 = vunpack.c.h.b16 %v2979
    %v3780 = vunpack.c.l.b16 %v2980
    %v3781 = vunpack.c.l.b16 %v2981
    %v3782 = vunpack.c.h.b16 %v2981
    %v3783 = vunpack.c.l.b16 %v2982
    %v3784 = vunpack.c.l.b16 %v2983
    %v3785 = vunpack.c.h.b16 %v2983
    %v3786 = vunpack.c.l.b16 %v2984
    %v3787 = vunpack.c.l.b16 %v2985
    %v3788 = vunpack.c.h.b16 %v2985
    %v3789 = vunpack.c.l.b16 %v2986
    %v3790 = vunpack.c.l.b16 %v2987
    %v3791 = vunpack.c.h.b16 %v2987
    %v3792 = vunpack.c.l.b16 %v2988
    %v3793 = vunpack.c.l.b16 %v2989
    %v3794 = vunpack.c.h.b16 %v2989
    %v3795 = vunpack.c.l.b16 %v2990
    %v3796 = vunpack.c.l.b16 %v2991
    %v3797 = vunpack.c.h.b16 %v2991
    %v3798 = vunpack.c.l.b16 %v2992
    %v3799 = vunpack.c.l.b16 %v2993
    %v3800 = vunpack.c.h.b16 %v2993
    %v3801 = vunpack.c.l.b16 %v2994
    %v3802 = vunpack.c.l.b16 %v2995
    %v3803 = vunpack.c.h.b16 %v2995
    %v3804 = vunpack.c.l.b16 %v2996
    %v3805 = vpack.c.b16 %v3328, %v3325
    %v3806 = vpack.c.b16 %v3329, %v3326
    %v3807 = vpack.c.b16 %v3330, %v3327
    %v3808 = vpack.c.b16 %v3334, %v3331
    %v3809 = vpack.c.b16 %v3335, %v3332
    %v3810 = vpack.c.b16 %v3336, %v3333
    %v3811 = vpack.c.b16 %v3340, %v3337
    %v3812 = vpack.c.b16 %v3341, %v3338
    %v3813 = vpack.c.b16 %v3342, %v3339
    %v3814 = vpack.c.b16 %v3346, %v3343
    %v3815 = vpack.c.b16 %v3347, %v3344
    %v3816 = vpack.c.b16 %v3348, %v3345
    %v3817 = vpack.c.b16 %v3352, %v3349
    %v3818 = vpack.c.b16 %v3353, %v3350
    %v3819 = vpack.c.b16 %v3354, %v3351
    %v3820 = vpack.c.b16 %v3358, %v3355
    %v3821 = vpack.c.b16 %v3359, %v3356
    %v3822 = vpack.c.b16 %v3360, %v3357
    %v3823 = vpack.c.b16 %v3364, %v3361
    %v3824 = vpack.c.b16 %v3365, %v3362
    %v3825 = vpack.c.b16 %v3366, %v3363
    %v3826 = vpack.c.b16 %v3370, %v3367
    %v3827 = vpack.c.b16 %v3371, %v3368
    %v3828 = vpack.c.b16 %v3372, %v3369
    %v3829 = vpack.c.b16 %v3376, %v3373
    %v3830 = vpack.c.b16 %v3377, %v3374
    %v3831 = vpack.c.b16 %v3378, %v3375
    %v3832 = vpack.c.b16 %v3382, %v3379
    %v3833 = vpack.c.b16 %v3383, %v3380
    %v3834 = vpack.c.b16 %v3384, %v3381
    %v3835 = vpack.c.b16 %v3388, %v3385
    %v3836 = vpack.c.b16 %v3389, %v3386
    %v3837 = vpack.c.b16 %v3390, %v3387
    %v3838 = vpack.c.b16 %v3394, %v3391
    %v3839 = vpack.c.b16 %v3395, %v3392
    %v3840 = vpack.c.b16 %v3396, %v3393
    %v3841 = vpack.c.b16 %v3400, %v3397
    %v3842 = vpack.c.b16 %v3401, %v3398
    %v3843 = vpack.c.b16 %v3402, %v3399
    %v3844 = vpack.c.b16 %v3406, %v3403
    %v3845 = vpack.c.b16 %v3407, %v3404
    %v3846 = vpack.c.b16 %v3408, %v3405
    %v3847 = vpack.c.b16 %v3412, %v3409
    %v3848 = vpack.c.b16 %v3413, %v3410
    %v3849 = vpack.c.b16 %v3414, %v3411
    %v3850 = vpack.c.b16 %v3418, %v3415
    %v3851 = vpack.c.b16 %v3419, %v3416
    %v3852 = vpack.c.b16 %v3420, %v3417
    %v3853 = vpack.c.b16 %v3424, %v3421
    %v3854 = vpack.c.b16 %v3425, %v3422
    %v3855 = vpack.c.b16 %v3426, %v3423
    %v3856 = vpack.c.b16 %v3430, %v3427
    %v3857 = vpack.c.b16 %v3431, %v3428
    %v3858 = vpack.c.b16 %v3432, %v3429
    %v3859 = vpack.c.b16 %v3436, %v3433
    %v3860 = vpack.c.b16 %v3437, %v3434
    %v3861 = vpack.c.b16 %v3438, %v3435
    %v3862 = vpack.c.b16 %v3442, %v3439
    %v3863 = vpack.c.b16 %v3443, %v3440
    %v3864 = vpack.c.b16 %v3444, %v3441
    %v3865 = vpack.c.b16 %v3448, %v3445
    %v3866 = vpack.c.b16 %v3449, %v3446
    %v3867 = vpack.c.b16 %v3450, %v3447
    %v3868 = vpack.c.b16 %v3454, %v3451
    %v3869 = vpack.c.b16 %v3455, %v3452
    %v3870 = vpack.c.b16 %v3456, %v3453
    %v3871 = vpack.c.b16 %v3460, %v3457
    %v3872 = vpack.c.b16 %v3461, %v3458
    %v3873 = vpack.c.b16 %v3462, %v3459
    %v3874 = vpack.c.b16 %v3466, %v3463
    %v3875 = vpack.c.b16 %v3467, %v3464
    %v3876 = vpack.c.b16 %v3468, %v3465
    %v3877 = vpack.c.b16 %v3472, %v3469
    %v3878 = vpack.c.b16 %v3473, %v3470
    %v3879 = vpack.c.b16 %v3474, %v3471
    %v3880 = vpack.c.b16 %v3478, %v3475
    %v3881 = vpack.c.b16 %v3479, %v3476
    %v3882 = vpack.c.b16 %v3480, %v3477
    %v3883 = vpack.c.b16 %v3484, %v3481
    %v3884 = vpack.c.b16 %v3485, %v3482
    %v3885 = vpack.c.b16 %v3486, %v3483
    %v3886 = vpack.c.b16 %v3490, %v3487
    %v3887 = vpack.c.b16 %v3491, %v3488
    %v3888 = vpack.c.b16 %v3492, %v3489
    %v3889 = vpack.c.b16 %v3496, %v3493
    %v3890 = vpack.c.b16 %v3497, %v3494
    %v3891 = vpack.c.b16 %v3498, %v3495
    %v3892 = vpack.c.b16 %v3502, %v3499
    %v3893 = vpack.c.b16 %v3503, %v3500
    %v3894 = vpack.c.b16 %v3504, %v3501
    %v3895 = vpack.c.b16 %v3508, %v3505
    %v3896 = vpack.c.b16 %v3509, %v3506
    %v3897 = vpack.c.b16 %v3510, %v3507
    %v3898 = vpack.c.b16 %v3514, %v3511
    %v3899 = vpack.c.b16 %v3515, %v3512
    %v3900 = vpack.c.b16 %v3516, %v3513
    %v3901 = vpack.c.b16 %v3520, %v3517
    %v3902 = vpack.c.b16 %v3521, %v3518
    %v3903 = vpack.c.b16 %v3522, %v3519
    %v3904 = vpack.c.b16 %v3526, %v3523
    %v3905 = vpack.c.b16 %v3527, %v3524
    %v3906 = vpack.c.b16 %v3528, %v3525
    %v3907 = vpack.c.b16 %v3532, %v3529
    %v3908 = vpack.c.b16 %v3533, %v3530
    %v3909 = vpack.c.b16 %v3534, %v3531
    %v3910 = vpack.c.b16 %v3538, %v3535
    %v3911 = vpack.c.b16 %v3539, %v3536
    %v3912 = vpack.c.b16 %v3540, %v3537
    %v3913 = vpack.c.b16 %v3544, %v3541
    %v3914 = vpack.c.b16 %v3545, %v3542
    %v3915 = vpack.c.b16 %v3546, %v3543
    %v3916 = vpack.c.b16 %v3550, %v3547
    %v3917 = vpack.c.b16 %v3551, %v3548
    %v3918 = vpack.c.b16 %v3552, %v3549
    %v3919 = vpack.c.b16 %v3556, %v3553
    %v3920 = vpack.c.b16 %v3557, %v3554
    %v3921 = vpack.c.b16 %v3558, %v3555
    %v3922 = vpack.c.b16 %v3562, %v3559
    %v3923 = vpack.c.b16 %v3563, %v3560
    %v3924 = vpack.c.b16 %v3564, %v3561
    %v3925 = vpack.c.b16 %v3568, %v3565
    %v3926 = vpack.c.b16 %v3569, %v3566
    %v3927 = vpack.c.b16 %v3570, %v3567
    %v3928 = vpack.c.b16 %v3574, %v3571
    %v3929 = vpack.c.b16 %v3575, %v3572
    %v3930 = vpack.c.b16 %v3576, %v3573
    %v3931 = vpack.c.b16 %v3580, %v3577
    %v3932 = vpack.c.b16 %v3581, %v3578
    %v3933 = vpack.c.b16 %v3582, %v3579
    %v3934 = vpack.c.b16 %v3586, %v3583
    %v3935 = vpack.c.b16 %v3587, %v3584
    %v3936 = vpack.c.b16 %v3588, %v3585
    %v3937 = vpack.c.b16 %v3592, %v3589
    %v3938 = vpack.c.b16 %v3593, %v3590
    %v3939 = vpack.c.b16 %v3594, %v3591
    %v3940 = vpack.c.b16 %v3598, %v3595
    %v3941 = vpack.c.b16 %v3599, %v3596
    %v3942 = vpack.c.b16 %v3600, %v3597
    %v3943 = vpack.c.b16 %v3604, %v3601
    %v3944 = vpack.c.b16 %v3605, %v3602
    %v3945 = vpack.c.b16 %v3606, %v3603
    %v3946 = vpack.c.b16 %v3610, %v3607
    %v3947 = vpack.c.b16 %v3611, %v3608
    %v3948 = vpack.c.b16 %v3612, %v3609
    %v3949 = vpack.c.b16 %v3616, %v3613
    %v3950 = vpack.c.b16 %v3617, %v3614
    %v3951 = vpack.c.b16 %v3618, %v3615
    %v3952 = vpack.c.b16 %v3622, %v3619
    %v3953 = vpack.c.b16 %v3623, %v3620
    %v3954 = vpack.c.b16 %v3624, %v3621
    %v3955 = vpack.c.b16 %v3628, %v3625
    %v3956 = vpack.c.b16 %v3629, %v3626
    %v3957 = vpack.c.b16 %v3630, %v3627
    %v3958 = vpack.c.b16 %v3634, %v3631
    %v3959 = vpack.c.b16 %v3635, %v3632
    %v3960 = vpack.c.b16 %v3636, %v3633
    %v3961 = vpack.c.b16 %v3640, %v3637
    %v3962 = vpack.c.b16 %v3641, %v3638
    %v3963 = vpack.c.b16 %v3642, %v3639
    %v3964 = vpack.c.b16 %v3646, %v3643
    %v3965 = vpack.c.b16 %v3647, %v3644
    %v3966 = vpack.c.b16 %v3648, %v3645
    %v3967 = vpack.c.b16 %v3652, %v3649
    %v3968 = vpack.c.b16 %v3653, %v3650
    %v3969 = vpack.c.b16 %v3654, %v3651
    %v3970 = vpack.c.b16 %v3658, %v3655
    %v3971 = vpack.c.b16 %v3659, %v3656
    %v3972 = vpack.c.b16 %v3660, %v3657
    %v3973 = vpack.c.b16 %v3664, %v3661
    %v3974 = vpack.c.b16 %v3665, %v3662
    %v3975 = vpack.c.b16 %v3666, %v3663
    %v3976 = vpack.c.b16 %v3670, %v3667
    %v3977 = vpack.c.b16 %v3671, %v3668
    %v3978 = vpack.c.b16 %v3672, %v3669
    %v3979 = vpack.c.b16 %v3676, %v3673
    %v3980 = vpack.c.b16 %v3677, %v3674
    %v3981 = vpack.c.b16 %v3678, %v3675
    %v3982 = vpack.c.b16 %v3682, %v3679
    %v3983 = vpack.c.b16 %v3683, %v3680
    %v3984 = vpack.c.b16 %v3684, %v3681
    %v3985 = vpack.c.b16 %v3688, %v3685
    %v3986 = vpack.c.b16 %v3689, %v3686
    %v3987 = vpack.c.b16 %v3690, %v3687
    %v3988 = vpack.c.b16 %v3694, %v3691
    %v3989 = vpack.c.b16 %v3695, %v3692
    %v3990 = vpack.c.b16 %v3696, %v3693
    %v3991 = vpack.c.b16 %v3700, %v3697
    %v3992 = vpack.c.b16 %v3701, %v3698
    %v3993 = vpack.c.b16 %v3702, %v3699
    %v3994 = vpack.c.b16 %v3706, %v3703
    %v3995 = vpack.c.b16 %v3707, %v3704
    %v3996 = vpack.c.b16 %v3708, %v3705
    %v3997 = vpack.c.b16 %v3712, %v3709
    %v3998 = vpack.c.b16 %v3713, %v3710
    %v3999 = vpack.c.b16 %v3714, %v3711
    %v4000 = vpack.c.b16 %v3718, %v3715
    %v4001 = vpack.c.b16 %v3719, %v3716
    %v4002 = vpack.c.b16 %v3720, %v3717
    %v4003 = vpack.c.b16 %v3724, %v3721
    %v4004 = vpack.c.b16 %v3725, %v3722
    %v4005 = vpack.c.b16 %v3726, %v3723
    %v4006 = vpack.c.b16 %v3730, %v3727
    %v4007 = vpack.c.b16 %v3731, %v3728
    %v4008 = vpack.c.b16 %v3732, %v3729
    %v4009 = vpack.c.b16 %v3736, %v3733
    %v4010 = vpack.c.b16 %v3737, %v3734
    %v4011 = vpack.c.b16 %v3738, %v3735
    %v4012 = vpack.c.b16 %v3742, %v3739
    %v4013 = vpack.c.b16 %v3743, %v3740
    %v4014 = vpack.c.b16 %v3744, %v3741
    %v4015 = vpack.c.b16 %v3748, %v3745
    %v4016 = vpack.c.b16 %v3749, %v3746
    %v4017 = vpack.c.b16 %v3750, %v3747
    %v4018 = vpack.c.b16 %v3754, %v3751
    %v4019 = vpack.c.b16 %v3755, %v3752
    %v4020 = vpack.c.b16 %v3756, %v3753
    %v4021 = vpack.c.b16 %v3760, %v3757
    %v4022 = vpack.c.b16 %v3761, %v3758
    %v4023 = vpack.c.b16 %v3762, %v3759
    %v4024 = vpack.c.b16 %v3766, %v3763
    %v4025 = vpack.c.b16 %v3767, %v3764
    %v4026 = vpack.c.b16 %v3768, %v3765
    %v4027 = vpack.c.b16 %v3772, %v3769
    %v4028 = vpack.c.b16 %v3773, %v3770
    %v4029 = vpack.c.b16 %v3774, %v3771
    %v4030 = vpack.c.b16 %v3778, %v3775
    %v4031 = vpack.c.b16 %v3779, %v3776
    %v4032 = vpack.c.b16 %v3780, %v3777
    %v4033 = vpack.c.b16 %v3784, %v3781
    %v4034 = vpack.c.b16 %v3785, %v3782
    %v4035 = vpack.c.b16 %v3786, %v3783
    %v4036 = vpack.c.b16 %v3790, %v3787
    %v4037 = vpack.c.b16 %v3791, %v3788
    %v4038 = vpack.c.b16 %v3792, %v3789
    %v4039 = vpack.c.b16 %v3796, %v3793
    %v4040 = vpack.c.b16 %v3797, %v3794
    %v4041 = vpack.c.b16 %v3798, %v3795
    %v4042 = vpack.c.b16 %v3802, %v3799
    %v4043 = vpack.c.b16 %v3803, %v3800
    %v4044 = vpack.c.b16 %v3804, %v3801
    %4285 = vmatpush.bf16.msra.mxu0 %v3826
    %4286 = vmatpush.bf16.msra.mxu0 %v3823
    %4287 = vmatpush.bf16.msra.mxu0 %v3820
    %4288 = vmatpush.bf16.msra.mxu0 %v3817
    %4289 = vmatpush.bf16.msra.mxu0 %v3814
    %4290 = vmatpush.bf16.msra.mxu0 %v3811
    %4291 = vmatpush.bf16.msra.mxu0 %v3808
    %4292 = vmatpush.bf16.msra.mxu0 %v3805
    %4293 = vmatmul.bf16.gmra.mxu0 %v2101
    %v4294 = vpop.f32.mrf.mxu0
    %v4295 = vadd.f32 %v2999, %v4294
    %v4296 = vpop.f32.mrf.mxu0
    %v4297 = vadd.f32 %v2999, %v4296
    %4298 = vmatmul.bf16.gmra.mxu0 %v2103
    %v4299 = vpop.f32.mrf.mxu0
    %v4300 = vadd.f32 %v2999, %v4299
    %v4301 = vpop.f32.mrf.mxu0
    %v4302 = vadd.f32 %v2999, %v4301
    %4303 = vmatmul.bf16.gmra.mxu0 %v2105
    %v4304 = vpop.f32.mrf.mxu0
    %v4305 = vadd.f32 %v2999, %v4304
    %v4306 = vpop.f32.mrf.mxu0
    %v4307 = vadd.f32 %v2999, %v4306
    %4308 = vmatmul.bf16.gmra.mxu0 %v2107
    %v4309 = vpop.f32.mrf.mxu0
    %v4310 = vadd.f32 %v2999, %v4309
    %v4311 = vpop.f32.mrf.mxu0
    %v4312 = vadd.f32 %v2999, %v4311
    %4313 = vmatmul.bf16.gmra.mxu0 %v2109
    %v4314 = vpop.f32.mrf.mxu0
    %v4315 = vadd.f32 %v2999, %v4314
    %v4316 = vpop.f32.mrf.mxu0
    %v4317 = vadd.f32 %v2999, %v4316
    %4318 = vmatmul.bf16.gmra.mxu0 %v2111
    %v4319 = vpop.f32.mrf.mxu0
    %v4320 = vadd.f32 %v2999, %v4319
    %v4321 = vpop.f32.mrf.mxu0
    %v4322 = vadd.f32 %v2999, %v4321
    %4323 = vmatmul.bf16.gmra.mxu0 %v2113
    %v4324 = vpop.f32.mrf.mxu0
    %v4325 = vadd.f32 %v2999, %v4324
    %v4326 = vpop.f32.mrf.mxu0
    %v4327 = vadd.f32 %v2999, %v4326
    %4328 = vmatmul.bf16.gmra.mxu0 %v2115
    %v4329 = vpop.f32.mrf.mxu0
    %v4330 = vadd.f32 %v2999, %v4329
    %v4331 = vpop.f32.mrf.mxu0
    %v4332 = vadd.f32 %v2999, %v4331
    %4333 = vdwg.mxu0
    %4334 = vmatpush.bf16.msra.mxu0 %v3850
    %4335 = vmatpush.bf16.msra.mxu0 %v3847
    %4336 = vmatpush.bf16.msra.mxu0 %v3844
    %4337 = vmatpush.bf16.msra.mxu0 %v3841
    %4338 = vmatpush.bf16.msra.mxu0 %v3838
    %4339 = vmatpush.bf16.msra.mxu0 %v3835
    %4340 = vmatpush.bf16.msra.mxu0 %v3832
    %4341 = vmatpush.bf16.msra.mxu0 %v3829
    %4342 = vmatmul.bf16.gmra.mxu0 %v2525
    %v4343 = vpop.f32.mrf.mxu0
    %v4344 = vadd.f32 %v4295, %v4343
    %v4345 = vpop.f32.mrf.mxu0
    %v4346 = vadd.f32 %v4297, %v4345
    %4347 = vmatmul.bf16.gmra.mxu0 %v2529
    %v4348 = vpop.f32.mrf.mxu0
    %v4349 = vadd.f32 %v4300, %v4348
    %v4350 = vpop.f32.mrf.mxu0
    %v4351 = vadd.f32 %v4302, %v4350
    %4352 = vmatmul.bf16.gmra.mxu0 %v2533
    %v4353 = vpop.f32.mrf.mxu0
    %v4354 = vadd.f32 %v4305, %v4353
    %v4355 = vpop.f32.mrf.mxu0
    %v4356 = vadd.f32 %v4307, %v4355
    %4357 = vmatmul.bf16.gmra.mxu0 %v2537
    %v4358 = vpop.f32.mrf.mxu0
    %v4359 = vadd.f32 %v4310, %v4358
    %v4360 = vpop.f32.mrf.mxu0
    %v4361 = vadd.f32 %v4312, %v4360
    %4362 = vmatmul.bf16.gmra.mxu0 %v2541
    %v4363 = vpop.f32.mrf.mxu0
    %v4364 = vadd.f32 %v4315, %v4363
    %v4365 = vpop.f32.mrf.mxu0
    %v4366 = vadd.f32 %v4317, %v4365
    %4367 = vmatmul.bf16.gmra.mxu0 %v2545
    %v4368 = vpop.f32.mrf.mxu0
    %v4369 = vadd.f32 %v4320, %v4368
    %v4370 = vpop.f32.mrf.mxu0
    %v4371 = vadd.f32 %v4322, %v4370
    %4372 = vmatmul.bf16.gmra.mxu0 %v2549
    %v4373 = vpop.f32.mrf.mxu0
    %v4374 = vadd.f32 %v4325, %v4373
    %v4375 = vpop.f32.mrf.mxu0
    %v4376 = vadd.f32 %v4327, %v4375
    %4377 = vmatmul.bf16.gmra.mxu0 %v2553
    %v4378 = vpop.f32.mrf.mxu0
    %v4379 = vadd.f32 %v4330, %v4378
    %v4380 = vpop.f32.mrf.mxu0
    %v4381 = vadd.f32 %v4332, %v4380
    %4382 = vdwg.mxu0
    %4383 = vmatpush.bf16.msra.mxu0 %v3874
    %4384 = vmatpush.bf16.msra.mxu0 %v3871
    %4385 = vmatpush.bf16.msra.mxu0 %v3868
    %4386 = vmatpush.bf16.msra.mxu0 %v3865
    %4387 = vmatpush.bf16.msra.mxu0 %v3862
    %4388 = vmatpush.bf16.msra.mxu0 %v3859
    %4389 = vmatpush.bf16.msra.mxu0 %v3856
    %4390 = vmatpush.bf16.msra.mxu0 %v3853
    %4391 = vmatmul.bf16.gmra.mxu0 %v2246
    %v4392 = vpop.f32.mrf.mxu0
    %v4393 = vadd.f32 %v4344, %v4392
    %v4394 = vpop.f32.mrf.mxu0
    %v4395 = vadd.f32 %v4346, %v4394
    %4396 = vmatmul.bf16.gmra.mxu0 %v2247
    %v4397 = vpop.f32.mrf.mxu0
    %v4398 = vadd.f32 %v4349, %v4397
    %v4399 = vpop.f32.mrf.mxu0
    %v4400 = vadd.f32 %v4351, %v4399
    %4401 = vmatmul.bf16.gmra.mxu0 %v2248
    %v4402 = vpop.f32.mrf.mxu0
    %v4403 = vadd.f32 %v4354, %v4402
    %v4404 = vpop.f32.mrf.mxu0
    %v4405 = vadd.f32 %v4356, %v4404
    %4406 = vmatmul.bf16.gmra.mxu0 %v2249
    %v4407 = vpop.f32.mrf.mxu0
    %v4408 = vadd.f32 %v4359, %v4407
    %v4409 = vpop.f32.mrf.mxu0
    %v4410 = vadd.f32 %v4361, %v4409
    %4411 = vmatmul.bf16.gmra.mxu0 %v2250
    %v4412 = vpop.f32.mrf.mxu0
    %v4413 = vadd.f32 %v4364, %v4412
    %v4414 = vpop.f32.mrf.mxu0
    %v4415 = vadd.f32 %v4366, %v4414
    %4416 = vmatmul.bf16.gmra.mxu0 %v2251
    %v4417 = vpop.f32.mrf.mxu0
    %v4418 = vadd.f32 %v4369, %v4417
    %v4419 = vpop.f32.mrf.mxu0
    %v4420 = vadd.f32 %v4371, %v4419
    %4421 = vmatmul.bf16.gmra.mxu0 %v2252
    %v4422 = vpop.f32.mrf.mxu0
    %v4423 = vadd.f32 %v4374, %v4422
    %v4424 = vpop.f32.mrf.mxu0
    %v4425 = vadd.f32 %v4376, %v4424
    %4426 = vmatmul.bf16.gmra.mxu0 %v2253
    %v4427 = vpop.f32.mrf.mxu0
    %v4428 = vadd.f32 %v4379, %v4427
    %v4429 = vpop.f32.mrf.mxu0
    %v4430 = vadd.f32 %v4381, %v4429
    %4431 = vdwg.mxu0
    %4432 = vmatpush.bf16.msra.mxu0 %v3898
    %4433 = vmatpush.bf16.msra.mxu0 %v3895
    %4434 = vmatpush.bf16.msra.mxu0 %v3892
    %4435 = vmatpush.bf16.msra.mxu0 %v3889
    %4436 = vmatpush.bf16.msra.mxu0 %v3886
    %4437 = vmatpush.bf16.msra.mxu0 %v3883
    %4438 = vmatpush.bf16.msra.mxu0 %v3880
    %4439 = vmatpush.bf16.msra.mxu0 %v3877
    %4440 = vmatmul.bf16.gmra.mxu0 %v2557
    %v4441 = vpop.f32.mrf.mxu0
    %v4442 = vadd.f32 %v4393, %v4441
    %v4443 = vpop.f32.mrf.mxu0
    %v4444 = vadd.f32 %v4395, %v4443
    %4445 = vmatmul.bf16.gmra.mxu0 %v2561
    %v4446 = vpop.f32.mrf.mxu0
    %v4447 = vadd.f32 %v4398, %v4446
    %v4448 = vpop.f32.mrf.mxu0
    %v4449 = vadd.f32 %v4400, %v4448
    %4450 = vmatmul.bf16.gmra.mxu0 %v2565
    %v4451 = vpop.f32.mrf.mxu0
    %v4452 = vadd.f32 %v4403, %v4451
    %v4453 = vpop.f32.mrf.mxu0
    %v4454 = vadd.f32 %v4405, %v4453
    %4455 = vmatmul.bf16.gmra.mxu0 %v2569
    %v4456 = vpop.f32.mrf.mxu0
    %v4457 = vadd.f32 %v4408, %v4456
    %v4458 = vpop.f32.mrf.mxu0
    %v4459 = vadd.f32 %v4410, %v4458
    %4460 = vmatmul.bf16.gmra.mxu0 %v2573
    %v4461 = vpop.f32.mrf.mxu0
    %v4462 = vadd.f32 %v4413, %v4461
    %v4463 = vpop.f32.mrf.mxu0
    %v4464 = vadd.f32 %v4415, %v4463
    %4465 = vmatmul.bf16.gmra.mxu0 %v2577
    %v4466 = vpop.f32.mrf.mxu0
    %v4467 = vadd.f32 %v4418, %v4466
    %v4468 = vpop.f32.mrf.mxu0
    %v4469 = vadd.f32 %v4420, %v4468
    %4470 = vmatmul.bf16.gmra.mxu0 %v2581
    %v4471 = vpop.f32.mrf.mxu0
    %v4472 = vadd.f32 %v4423, %v4471
    %v4473 = vpop.f32.mrf.mxu0
    %v4474 = vadd.f32 %v4425, %v4473
    %4475 = vmatmul.bf16.gmra.mxu0 %v2585
    %v4476 = vpop.f32.mrf.mxu0
    %v4477 = vadd.f32 %v4428, %v4476
    %v4478 = vpop.f32.mrf.mxu0
    %v4479 = vadd.f32 %v4430, %v4478
    %4480 = vdwg.mxu0
    %4481 = vmatpush.bf16.msra.mxu0 %v3922
    %4482 = vmatpush.bf16.msra.mxu0 %v3919
    %4483 = vmatpush.bf16.msra.mxu0 %v3916
    %4484 = vmatpush.bf16.msra.mxu0 %v3913
    %4485 = vmatpush.bf16.msra.mxu0 %v3910
    %4486 = vmatpush.bf16.msra.mxu0 %v3907
    %4487 = vmatpush.bf16.msra.mxu0 %v3904
    %4488 = vmatpush.bf16.msra.mxu0 %v3901
    %4489 = vmatmul.bf16.gmra.mxu0 %v2343
    %v4490 = vpop.f32.mrf.mxu0
    %v4491 = vadd.f32 %v4442, %v4490
    %v4492 = vpop.f32.mrf.mxu0
    %v4493 = vadd.f32 %v4444, %v4492
    %4494 = vmatmul.bf16.gmra.mxu0 %v2344
    %v4495 = vpop.f32.mrf.mxu0
    %v4496 = vadd.f32 %v4447, %v4495
    %v4497 = vpop.f32.mrf.mxu0
    %v4498 = vadd.f32 %v4449, %v4497
    %4499 = vmatmul.bf16.gmra.mxu0 %v2345
    %v4500 = vpop.f32.mrf.mxu0
    %v4501 = vadd.f32 %v4452, %v4500
    %v4502 = vpop.f32.mrf.mxu0
    %v4503 = vadd.f32 %v4454, %v4502
    %4504 = vmatmul.bf16.gmra.mxu0 %v2346
    %v4505 = vpop.f32.mrf.mxu0
    %v4506 = vadd.f32 %v4457, %v4505
    %v4507 = vpop.f32.mrf.mxu0
    %v4508 = vadd.f32 %v4459, %v4507
    %4509 = vmatmul.bf16.gmra.mxu0 %v2347
    %v4510 = vpop.f32.mrf.mxu0
    %v4511 = vadd.f32 %v4462, %v4510
    %v4512 = vpop.f32.mrf.mxu0
    %v4513 = vadd.f32 %v4464, %v4512
    %4514 = vmatmul.bf16.gmra.mxu0 %v2348
    %v4515 = vpop.f32.mrf.mxu0
    %v4516 = vadd.f32 %v4467, %v4515
    %v4517 = vpop.f32.mrf.mxu0
    %v4518 = vadd.f32 %v4469, %v4517
    %4519 = vmatmul.bf16.gmra.mxu0 %v2349
    %v4520 = vpop.f32.mrf.mxu0
    %v4521 = vadd.f32 %v4472, %v4520
    %v4522 = vpop.f32.mrf.mxu0
    %v4523 = vadd.f32 %v4474, %v4522
    %4524 = vmatmul.bf16.gmra.mxu0 %v2350
    %v4525 = vpop.f32.mrf.mxu0
    %v4526 = vadd.f32 %v4477, %v4525
    %v4527 = vpop.f32.mrf.mxu0
    %v4528 = vadd.f32 %v4479, %v4527
    %4529 = vdwg.mxu0
    %4530 = vmatpush.bf16.msra.mxu0 %v3946
    %4531 = vmatpush.bf16.msra.mxu0 %v3943
    %4532 = vmatpush.bf16.msra.mxu0 %v3940
    %4533 = vmatpush.bf16.msra.mxu0 %v3937
    %4534 = vmatpush.bf16.msra.mxu0 %v3934
    %4535 = vmatpush.bf16.msra.mxu0 %v3931
    %4536 = vmatpush.bf16.msra.mxu0 %v3928
    %4537 = vmatpush.bf16.msra.mxu0 %v3925
    %4538 = vmatmul.bf16.gmra.mxu0 %v2590
    %v4539 = vpop.f32.mrf.mxu0
    %v4540 = vadd.f32 %v4491, %v4539
    %v4541 = vpop.f32.mrf.mxu0
    %v4542 = vadd.f32 %v4493, %v4541
    %4543 = vmatmul.bf16.gmra.mxu0 %v2594
    %v4544 = vpop.f32.mrf.mxu0
    %v4545 = vadd.f32 %v4496, %v4544
    %v4546 = vpop.f32.mrf.mxu0
    %v4547 = vadd.f32 %v4498, %v4546
    %4548 = vmatmul.bf16.gmra.mxu0 %v2598
    %v4549 = vpop.f32.mrf.mxu0
    %v4550 = vadd.f32 %v4501, %v4549
    %v4551 = vpop.f32.mrf.mxu0
    %v4552 = vadd.f32 %v4503, %v4551
    %4553 = vmatmul.bf16.gmra.mxu0 %v2602
    %v4554 = vpop.f32.mrf.mxu0
    %v4555 = vadd.f32 %v4506, %v4554
    %v4556 = vpop.f32.mrf.mxu0
    %v4557 = vadd.f32 %v4508, %v4556
    %4558 = vmatmul.bf16.gmra.mxu0 %v2606
    %v4559 = vpop.f32.mrf.mxu0
    %v4560 = vadd.f32 %v4511, %v4559
    %v4561 = vpop.f32.mrf.mxu0
    %v4562 = vadd.f32 %v4513, %v4561
    %4563 = vmatmul.bf16.gmra.mxu0 %v2610
    %v4564 = vpop.f32.mrf.mxu0
    %v4565 = vadd.f32 %v4516, %v4564
    %v4566 = vpop.f32.mrf.mxu0
    %v4567 = vadd.f32 %v4518, %v4566
    %4568 = vmatmul.bf16.gmra.mxu0 %v2614
    %v4569 = vpop.f32.mrf.mxu0
    %v4570 = vadd.f32 %v4521, %v4569
    %v4571 = vpop.f32.mrf.mxu0
    %v4572 = vadd.f32 %v4523, %v4571
    %4573 = vmatmul.bf16.gmra.mxu0 %v2618
    %v4574 = vpop.f32.mrf.mxu0
    %v4575 = vadd.f32 %v4526, %v4574
    %v4576 = vpop.f32.mrf.mxu0
    %v4577 = vadd.f32 %v4528, %v4576
    %4578 = vdwg.mxu0
    %4579 = vmatpush.bf16.msra.mxu0 %v3970
    %4580 = vmatpush.bf16.msra.mxu0 %v3967
    %4581 = vmatpush.bf16.msra.mxu0 %v3964
    %4582 = vmatpush.bf16.msra.mxu0 %v3961
    %4583 = vmatpush.bf16.msra.mxu0 %v3958
    %4584 = vmatpush.bf16.msra.mxu0 %v3955
    %4585 = vmatpush.bf16.msra.mxu0 %v3952
    %4586 = vmatpush.bf16.msra.mxu0 %v3949
    %4587 = vmatmul.bf16.gmra.mxu0 %v2441
    %v4588 = vpop.f32.mrf.mxu0
    %v4589 = vadd.f32 %v4540, %v4588
    %v4590 = vpop.f32.mrf.mxu0
    %v4591 = vadd.f32 %v4542, %v4590
    %4592 = vmatmul.bf16.gmra.mxu0 %v2442
    %v4593 = vpop.f32.mrf.mxu0
    %v4594 = vadd.f32 %v4545, %v4593
    %v4595 = vpop.f32.mrf.mxu0
    %v4596 = vadd.f32 %v4547, %v4595
    %4597 = vmatmul.bf16.gmra.mxu0 %v2443
    %v4598 = vpop.f32.mrf.mxu0
    %v4599 = vadd.f32 %v4550, %v4598
    %v4600 = vpop.f32.mrf.mxu0
    %v4601 = vadd.f32 %v4552, %v4600
    %4602 = vmatmul.bf16.gmra.mxu0 %v2444
    %v4603 = vpop.f32.mrf.mxu0
    %v4604 = vadd.f32 %v4555, %v4603
    %v4605 = vpop.f32.mrf.mxu0
    %v4606 = vadd.f32 %v4557, %v4605
    %4607 = vmatmul.bf16.gmra.mxu0 %v2445
    %v4608 = vpop.f32.mrf.mxu0
    %v4609 = vadd.f32 %v4560, %v4608
    %v4610 = vpop.f32.mrf.mxu0
    %v4611 = vadd.f32 %v4562, %v4610
    %4612 = vmatmul.bf16.gmra.mxu0 %v2446
    %v4613 = vpop.f32.mrf.mxu0
    %v4614 = vadd.f32 %v4565, %v4613
    %v4615 = vpop.f32.mrf.mxu0
    %v4616 = vadd.f32 %v4567, %v4615
    %4617 = vmatmul.bf16.gmra.mxu0 %v2447
    %v4618 = vpop.f32.mrf.mxu0
    %v4619 = vadd.f32 %v4570, %v4618
    %v4620 = vpop.f32.mrf.mxu0
    %v4621 = vadd.f32 %v4572, %v4620
    %4622 = vmatmul.bf16.gmra.mxu0 %v2448
    %v4623 = vpop.f32.mrf.mxu0
    %v4624 = vadd.f32 %v4575, %v4623
    %v4625 = vpop.f32.mrf.mxu0
    %v4626 = vadd.f32 %v4577, %v4625
    %4627 = vdwg.mxu0
    %4628 = vmatpush.bf16.msra.mxu0 %v3994
    %4629 = vmatpush.bf16.msra.mxu0 %v3991
    %4630 = vmatpush.bf16.msra.mxu0 %v3988
    %4631 = vmatpush.bf16.msra.mxu0 %v3985
    %4632 = vmatpush.bf16.msra.mxu0 %v3982
    %4633 = vmatpush.bf16.msra.mxu0 %v3979
    %4634 = vmatpush.bf16.msra.mxu0 %v3976
    %4635 = vmatpush.bf16.msra.mxu0 %v3973
    %4636 = vmatmul.bf16.gmra.mxu0 %v2622
    %v4637 = vpop.f32.mrf.mxu0
    %v4638 = vadd.f32 %v4589, %v4637
    %v4639 = vpop.f32.mrf.mxu0
    %v4640 = vadd.f32 %v4591, %v4639
    %4641 = vmatmul.bf16.gmra.mxu0 %v2626
    %v4642 = vpop.f32.mrf.mxu0
    %v4643 = vadd.f32 %v4594, %v4642
    %v4644 = vpop.f32.mrf.mxu0
    %v4645 = vadd.f32 %v4596, %v4644
    %4646 = vmatmul.bf16.gmra.mxu0 %v2630
    %v4647 = vpop.f32.mrf.mxu0
    %v4648 = vadd.f32 %v4599, %v4647
    %v4649 = vpop.f32.mrf.mxu0
    %v4650 = vadd.f32 %v4601, %v4649
    %4651 = vmatmul.bf16.gmra.mxu0 %v2634
    %v4652 = vpop.f32.mrf.mxu0
    %v4653 = vadd.f32 %v4604, %v4652
    %v4654 = vpop.f32.mrf.mxu0
    %v4655 = vadd.f32 %v4606, %v4654
    %4656 = vmatmul.bf16.gmra.mxu0 %v2638
    %v4657 = vpop.f32.mrf.mxu0
    %v4658 = vadd.f32 %v4609, %v4657
    %v4659 = vpop.f32.mrf.mxu0
    %v4660 = vadd.f32 %v4611, %v4659
    %4661 = vmatmul.bf16.gmra.mxu0 %v2642
    %v4662 = vpop.f32.mrf.mxu0
    %v4663 = vadd.f32 %v4614, %v4662
    %v4664 = vpop.f32.mrf.mxu0
    %v4665 = vadd.f32 %v4616, %v4664
    %4666 = vmatmul.bf16.gmra.mxu0 %v2646
    %v4667 = vpop.f32.mrf.mxu0
    %v4668 = vadd.f32 %v4619, %v4667
    %v4669 = vpop.f32.mrf.mxu0
    %v4670 = vadd.f32 %v4621, %v4669
    %4671 = vmatmul.bf16.gmra.mxu0 %v2650
    %v4672 = vpop.f32.mrf.mxu0
    %v4673 = vadd.f32 %v4624, %v4672
    %v4674 = vpop.f32.mrf.mxu0
    %v4675 = vadd.f32 %v4626, %v4674
    %4676 = vdwg.mxu0
    %4677 = vmatpush.bf16.msra.mxu0 %v4018
    %4678 = vmatpush.bf16.msra.mxu0 %v4015
    %4679 = vmatpush.bf16.msra.mxu0 %v4012
    %4680 = vmatpush.bf16.msra.mxu0 %v4009
    %4681 = vmatpush.bf16.msra.mxu0 %v4006
    %4682 = vmatpush.bf16.msra.mxu0 %v4003
    %4683 = vmatpush.bf16.msra.mxu0 %v4000
    %4684 = vmatpush.bf16.msra.mxu0 %v3997
    %4685 = vmatmul.bf16.gmra.mxu0 %v2506
    %v4686 = vpop.f32.mrf.mxu0
    %v4687 = vadd.f32 %v4638, %v4686
    %v4688 = vpop.f32.mrf.mxu0
    %v4689 = vadd.f32 %v4640, %v4688
    %4690 = vmatmul.bf16.gmra.mxu0 %v2507
    %v4691 = vpop.f32.mrf.mxu0
    %v4692 = vadd.f32 %v4643, %v4691
    %v4693 = vpop.f32.mrf.mxu0
    %v4694 = vadd.f32 %v4645, %v4693
    %4695 = vmatmul.bf16.gmra.mxu0 %v2508
    %v4696 = vpop.f32.mrf.mxu0
    %v4697 = vadd.f32 %v4648, %v4696
    %v4698 = vpop.f32.mrf.mxu0
    %v4699 = vadd.f32 %v4650, %v4698
    %4700 = vmatmul.bf16.gmra.mxu0 %v2509
    %v4701 = vpop.f32.mrf.mxu0
    %v4702 = vadd.f32 %v4653, %v4701
    %v4703 = vpop.f32.mrf.mxu0
    %v4704 = vadd.f32 %v4655, %v4703
    %4705 = vmatmul.bf16.gmra.mxu0 %v2510
    %v4706 = vpop.f32.mrf.mxu0
    %v4707 = vadd.f32 %v4658, %v4706
    %v4708 = vpop.f32.mrf.mxu0
    %v4709 = vadd.f32 %v4660, %v4708
    %4710 = vmatmul.bf16.gmra.mxu0 %v2511
    %v4711 = vpop.f32.mrf.mxu0
    %v4712 = vadd.f32 %v4663, %v4711
    %v4713 = vpop.f32.mrf.mxu0
    %v4714 = vadd.f32 %v4665, %v4713
    %4715 = vmatmul.bf16.gmra.mxu0 %v2512
    %v4716 = vpop.f32.mrf.mxu0
    %v4717 = vadd.f32 %v4668, %v4716
    %v4718 = vpop.f32.mrf.mxu0
    %v4719 = vadd.f32 %v4670, %v4718
    %4720 = vmatmul.bf16.gmra.mxu0 %v2513
    %v4721 = vpop.f32.mrf.mxu0
    %v4722 = vadd.f32 %v4673, %v4721
    %v4723 = vpop.f32.mrf.mxu0
    %v4724 = vadd.f32 %v4675, %v4723
    %4725 = vdwg.mxu0
    %4726 = vmatpush.bf16.msra.mxu0 %v4042
    %4727 = vmatpush.bf16.msra.mxu0 %v4039
    %4728 = vmatpush.bf16.msra.mxu0 %v4036
    %4729 = vmatpush.bf16.msra.mxu0 %v4033
    %4730 = vmatpush.bf16.msra.mxu0 %v4030
    %4731 = vmatpush.bf16.msra.mxu0 %v4027
    %4732 = vmatpush.bf16.msra.mxu0 %v4024
    %4733 = vmatpush.bf16.msra.mxu0 %v4021
    %4734 = vmatmul.bf16.gmra.mxu0 %v2654
    %v4735 = vpop.f32.mrf.mxu0
    %v4736 = vadd.f32 %v4687, %v4735
    %v4737 = vpop.f32.mrf.mxu0
    %v4738 = vadd.f32 %v4689, %v4737
    %4739 = vmatmul.bf16.gmra.mxu0 %v2657
    %v4740 = vpop.f32.mrf.mxu0
    %v4741 = vadd.f32 %v4692, %v4740
    %v4742 = vpop.f32.mrf.mxu0
    %v4743 = vadd.f32 %v4694, %v4742
    %4744 = vmatmul.bf16.gmra.mxu0 %v2660
    %v4745 = vpop.f32.mrf.mxu0
    %v4746 = vadd.f32 %v4697, %v4745
    %v4747 = vpop.f32.mrf.mxu0
    %v4748 = vadd.f32 %v4699, %v4747
    %4749 = vmatmul.bf16.gmra.mxu0 %v2663
    %v4750 = vpop.f32.mrf.mxu0
    %v4751 = vadd.f32 %v4702, %v4750
    %v4752 = vpop.f32.mrf.mxu0
    %v4753 = vadd.f32 %v4704, %v4752
    %4754 = vmatmul.bf16.gmra.mxu0 %v2666
    %v4755 = vpop.f32.mrf.mxu0
    %v4756 = vadd.f32 %v4707, %v4755
    %v4757 = vpop.f32.mrf.mxu0
    %v4758 = vadd.f32 %v4709, %v4757
    %4759 = vmatmul.bf16.gmra.mxu0 %v2669
    %v4760 = vpop.f32.mrf.mxu0
    %v4761 = vadd.f32 %v4712, %v4760
    %v4762 = vpop.f32.mrf.mxu0
    %v4763 = vadd.f32 %v4714, %v4762
    %4764 = vmatmul.bf16.gmra.mxu0 %v2672
    %v4765 = vpop.f32.mrf.mxu0
    %v4766 = vadd.f32 %v4717, %v4765
    %v4767 = vpop.f32.mrf.mxu0
    %v4768 = vadd.f32 %v4719, %v4767
    %4769 = vmatmul.bf16.gmra.mxu0 %v2675
    %v4770 = vpop.f32.mrf.mxu0
    %v4771 = vadd.f32 %v4722, %v4770
    %v4772 = vpop.f32.mrf.mxu0
    %v4773 = vadd.f32 %v4724, %v4772
    %4774 = vdwg.mxu0
    %4775 = vmatpush.bf16.msra.mxu0 %v3827
    %4776 = vmatpush.bf16.msra.mxu0 %v3824
    %4777 = vmatpush.bf16.msra.mxu0 %v3821
    %4778 = vmatpush.bf16.msra.mxu0 %v3818
    %4779 = vmatpush.bf16.msra.mxu0 %v3815
    %4780 = vmatpush.bf16.msra.mxu0 %v3812
    %4781 = vmatpush.bf16.msra.mxu0 %v3809
    %4782 = vmatpush.bf16.msra.mxu0 %v3806
    %4783 = vmatmul.bf16.gmra.mxu0 %v2101
    %v4784 = vpop.f32.mrf.mxu0
    %v4785 = vadd.f32 %v3000, %v4784
    %v4786 = vpop.f32.mrf.mxu0
    %v4787 = vadd.f32 %v3000, %v4786
    %4788 = vmatmul.bf16.gmra.mxu0 %v2103
    %v4789 = vpop.f32.mrf.mxu0
    %v4790 = vadd.f32 %v3000, %v4789
    %v4791 = vpop.f32.mrf.mxu0
    %v4792 = vadd.f32 %v3000, %v4791
    %4793 = vmatmul.bf16.gmra.mxu0 %v2105
    %v4794 = vpop.f32.mrf.mxu0
    %v4795 = vadd.f32 %v3000, %v4794
    %v4796 = vpop.f32.mrf.mxu0
    %v4797 = vadd.f32 %v3000, %v4796
    %4798 = vmatmul.bf16.gmra.mxu0 %v2107
    %v4799 = vpop.f32.mrf.mxu0
    %v4800 = vadd.f32 %v3000, %v4799
    %v4801 = vpop.f32.mrf.mxu0
    %v4802 = vadd.f32 %v3000, %v4801
    %4803 = vmatmul.bf16.gmra.mxu0 %v2109
    %v4804 = vpop.f32.mrf.mxu0
    %v4805 = vadd.f32 %v3000, %v4804
    %v4806 = vpop.f32.mrf.mxu0
    %v4807 = vadd.f32 %v3000, %v4806
    %4808 = vmatmul.bf16.gmra.mxu0 %v2111
    %v4809 = vpop.f32.mrf.mxu0
    %v4810 = vadd.f32 %v3000, %v4809
    %v4811 = vpop.f32.mrf.mxu0
    %v4812 = vadd.f32 %v3000, %v4811
    %4813 = vmatmul.bf16.gmra.mxu0 %v2113
    %v4814 = vpop.f32.mrf.mxu0
    %v4815 = vadd.f32 %v3000, %v4814
    %v4816 = vpop.f32.mrf.mxu0
    %v4817 = vadd.f32 %v3000, %v4816
    %4818 = vmatmul.bf16.gmra.mxu0 %v2115
    %v4819 = vpop.f32.mrf.mxu0
    %v4820 = vadd.f32 %v3000, %v4819
    %v4821 = vpop.f32.mrf.mxu0
    %v4822 = vadd.f32 %v3000, %v4821
    %4823 = vdwg.mxu0
    %4824 = vmatpush.bf16.msra.mxu0 %v3851
    %4825 = vmatpush.bf16.msra.mxu0 %v3848
    %4826 = vmatpush.bf16.msra.mxu0 %v3845
    %4827 = vmatpush.bf16.msra.mxu0 %v3842
    %4828 = vmatpush.bf16.msra.mxu0 %v3839
    %4829 = vmatpush.bf16.msra.mxu0 %v3836
    %4830 = vmatpush.bf16.msra.mxu0 %v3833
    %4831 = vmatpush.bf16.msra.mxu0 %v3830
    %4832 = vmatmul.bf16.gmra.mxu0 %v2525
    %v4833 = vpop.f32.mrf.mxu0
    %v4834 = vadd.f32 %v4785, %v4833
    %v4835 = vpop.f32.mrf.mxu0
    %v4836 = vadd.f32 %v4787, %v4835
    %4837 = vmatmul.bf16.gmra.mxu0 %v2529
    %v4838 = vpop.f32.mrf.mxu0
    %v4839 = vadd.f32 %v4790, %v4838
    %v4840 = vpop.f32.mrf.mxu0
    %v4841 = vadd.f32 %v4792, %v4840
    %4842 = vmatmul.bf16.gmra.mxu0 %v2533
    %v4843 = vpop.f32.mrf.mxu0
    %v4844 = vadd.f32 %v4795, %v4843
    %v4845 = vpop.f32.mrf.mxu0
    %v4846 = vadd.f32 %v4797, %v4845
    %4847 = vmatmul.bf16.gmra.mxu0 %v2537
    %v4848 = vpop.f32.mrf.mxu0
    %v4849 = vadd.f32 %v4800, %v4848
    %v4850 = vpop.f32.mrf.mxu0
    %v4851 = vadd.f32 %v4802, %v4850
    %4852 = vmatmul.bf16.gmra.mxu0 %v2541
    %v4853 = vpop.f32.mrf.mxu0
    %v4854 = vadd.f32 %v4805, %v4853
    %v4855 = vpop.f32.mrf.mxu0
    %v4856 = vadd.f32 %v4807, %v4855
    %4857 = vmatmul.bf16.gmra.mxu0 %v2545
    %v4858 = vpop.f32.mrf.mxu0
    %v4859 = vadd.f32 %v4810, %v4858
    %v4860 = vpop.f32.mrf.mxu0
    %v4861 = vadd.f32 %v4812, %v4860
    %4862 = vmatmul.bf16.gmra.mxu0 %v2549
    %v4863 = vpop.f32.mrf.mxu0
    %v4864 = vadd.f32 %v4815, %v4863
    %v4865 = vpop.f32.mrf.mxu0
    %v4866 = vadd.f32 %v4817, %v4865
    %4867 = vmatmul.bf16.gmra.mxu0 %v2553
    %v4868 = vpop.f32.mrf.mxu0
    %v4869 = vadd.f32 %v4820, %v4868
    %v4870 = vpop.f32.mrf.mxu0
    %v4871 = vadd.f32 %v4822, %v4870
    %4872 = vdwg.mxu0
    %4873 = vmatpush.bf16.msra.mxu0 %v3875
    %4874 = vmatpush.bf16.msra.mxu0 %v3872
    %4875 = vmatpush.bf16.msra.mxu0 %v3869
    %4876 = vmatpush.bf16.msra.mxu0 %v3866
    %4877 = vmatpush.bf16.msra.mxu0 %v3863
    %4878 = vmatpush.bf16.msra.mxu0 %v3860
    %4879 = vmatpush.bf16.msra.mxu0 %v3857
    %4880 = vmatpush.bf16.msra.mxu0 %v3854
    %4881 = vmatmul.bf16.gmra.mxu0 %v2246
    %v4882 = vpop.f32.mrf.mxu0
    %v4883 = vadd.f32 %v4834, %v4882
    %v4884 = vpop.f32.mrf.mxu0
    %v4885 = vadd.f32 %v4836, %v4884
    %4886 = vmatmul.bf16.gmra.mxu0 %v2247
    %v4887 = vpop.f32.mrf.mxu0
    %v4888 = vadd.f32 %v4839, %v4887
    %v4889 = vpop.f32.mrf.mxu0
    %v4890 = vadd.f32 %v4841, %v4889
    %4891 = vmatmul.bf16.gmra.mxu0 %v2248
    %v4892 = vpop.f32.mrf.mxu0
    %v4893 = vadd.f32 %v4844, %v4892
    %v4894 = vpop.f32.mrf.mxu0
    %v4895 = vadd.f32 %v4846, %v4894
    %4896 = vmatmul.bf16.gmra.mxu0 %v2249
    %v4897 = vpop.f32.mrf.mxu0
    %v4898 = vadd.f32 %v4849, %v4897
    %v4899 = vpop.f32.mrf.mxu0
    %v4900 = vadd.f32 %v4851, %v4899
    %4901 = vmatmul.bf16.gmra.mxu0 %v2250
    %v4902 = vpop.f32.mrf.mxu0
    %v4903 = vadd.f32 %v4854, %v4902
    %v4904 = vpop.f32.mrf.mxu0
    %v4905 = vadd.f32 %v4856, %v4904
    %4906 = vmatmul.bf16.gmra.mxu0 %v2251
    %v4907 = vpop.f32.mrf.mxu0
    %v4908 = vadd.f32 %v4859, %v4907
    %v4909 = vpop.f32.mrf.mxu0
    %v4910 = vadd.f32 %v4861, %v4909
    %4911 = vmatmul.bf16.gmra.mxu0 %v2252
    %v4912 = vpop.f32.mrf.mxu0
    %v4913 = vadd.f32 %v4864, %v4912
    %v4914 = vpop.f32.mrf.mxu0
    %v4915 = vadd.f32 %v4866, %v4914
    %4916 = vmatmul.bf16.gmra.mxu0 %v2253
    %v4917 = vpop.f32.mrf.mxu0
    %v4918 = vadd.f32 %v4869, %v4917
    %v4919 = vpop.f32.mrf.mxu0
    %v4920 = vadd.f32 %v4871, %v4919
    %4921 = vdwg.mxu0
    %4922 = vmatpush.bf16.msra.mxu0 %v3899
    %4923 = vmatpush.bf16.msra.mxu0 %v3896
    %4924 = vmatpush.bf16.msra.mxu0 %v3893
    %4925 = vmatpush.bf16.msra.mxu0 %v3890
    %4926 = vmatpush.bf16.msra.mxu0 %v3887
    %4927 = vmatpush.bf16.msra.mxu0 %v3884
    %4928 = vmatpush.bf16.msra.mxu0 %v3881
    %4929 = vmatpush.bf16.msra.mxu0 %v3878
    %4930 = vmatmul.bf16.gmra.mxu0 %v2557
    %v4931 = vpop.f32.mrf.mxu0
    %v4932 = vadd.f32 %v4883, %v4931
    %v4933 = vpop.f32.mrf.mxu0
    %v4934 = vadd.f32 %v4885, %v4933
    %4935 = vmatmul.bf16.gmra.mxu0 %v2561
    %v4936 = vpop.f32.mrf.mxu0
    %v4937 = vadd.f32 %v4888, %v4936
    %v4938 = vpop.f32.mrf.mxu0
    %v4939 = vadd.f32 %v4890, %v4938
    %4940 = vmatmul.bf16.gmra.mxu0 %v2565
    %v4941 = vpop.f32.mrf.mxu0
    %v4942 = vadd.f32 %v4893, %v4941
    %v4943 = vpop.f32.mrf.mxu0
    %v4944 = vadd.f32 %v4895, %v4943
    %4945 = vmatmul.bf16.gmra.mxu0 %v2569
    %v4946 = vpop.f32.mrf.mxu0
    %v4947 = vadd.f32 %v4898, %v4946
    %v4948 = vpop.f32.mrf.mxu0
    %v4949 = vadd.f32 %v4900, %v4948
    %4950 = vmatmul.bf16.gmra.mxu0 %v2573
    %v4951 = vpop.f32.mrf.mxu0
    %v4952 = vadd.f32 %v4903, %v4951
    %v4953 = vpop.f32.mrf.mxu0
    %v4954 = vadd.f32 %v4905, %v4953
    %4955 = vmatmul.bf16.gmra.mxu0 %v2577
    %v4956 = vpop.f32.mrf.mxu0
    %v4957 = vadd.f32 %v4908, %v4956
    %v4958 = vpop.f32.mrf.mxu0
    %v4959 = vadd.f32 %v4910, %v4958
    %4960 = vmatmul.bf16.gmra.mxu0 %v2581
    %v4961 = vpop.f32.mrf.mxu0
    %v4962 = vadd.f32 %v4913, %v4961
    %v4963 = vpop.f32.mrf.mxu0
    %v4964 = vadd.f32 %v4915, %v4963
    %4965 = vmatmul.bf16.gmra.mxu0 %v2585
    %v4966 = vpop.f32.mrf.mxu0
    %v4967 = vadd.f32 %v4918, %v4966
    %v4968 = vpop.f32.mrf.mxu0
    %v4969 = vadd.f32 %v4920, %v4968
    %4970 = vdwg.mxu0
    %4971 = vmatpush.bf16.msra.mxu0 %v3923
    %4972 = vmatpush.bf16.msra.mxu0 %v3920
    %4973 = vmatpush.bf16.msra.mxu0 %v3917
    %4974 = vmatpush.bf16.msra.mxu0 %v3914
    %4975 = vmatpush.bf16.msra.mxu0 %v3911
    %4976 = vmatpush.bf16.msra.mxu0 %v3908
    %4977 = vmatpush.bf16.msra.mxu0 %v3905
    %4978 = vmatpush.bf16.msra.mxu0 %v3902
    %4979 = vmatmul.bf16.gmra.mxu0 %v2343
    %v4980 = vpop.f32.mrf.mxu0
    %v4981 = vadd.f32 %v4932, %v4980
    %v4982 = vpop.f32.mrf.mxu0
    %v4983 = vadd.f32 %v4934, %v4982
    %4984 = vmatmul.bf16.gmra.mxu0 %v2344
    %v4985 = vpop.f32.mrf.mxu0
    %v4986 = vadd.f32 %v4937, %v4985
    %v4987 = vpop.f32.mrf.mxu0
    %v4988 = vadd.f32 %v4939, %v4987
    %4989 = vmatmul.bf16.gmra.mxu0 %v2345
    %v4990 = vpop.f32.mrf.mxu0
    %v4991 = vadd.f32 %v4942, %v4990
    %v4992 = vpop.f32.mrf.mxu0
    %v4993 = vadd.f32 %v4944, %v4992
    %4994 = vmatmul.bf16.gmra.mxu0 %v2346
    %v4995 = vpop.f32.mrf.mxu0
    %v4996 = vadd.f32 %v4947, %v4995
    %v4997 = vpop.f32.mrf.mxu0
    %v4998 = vadd.f32 %v4949, %v4997
    %4999 = vmatmul.bf16.gmra.mxu0 %v2347
    %v5000 = vpop.f32.mrf.mxu0
    %v5001 = vadd.f32 %v4952, %v5000
    %v5002 = vpop.f32.mrf.mxu0
    %v5003 = vadd.f32 %v4954, %v5002
    %5004 = vmatmul.bf16.gmra.mxu0 %v2348
    %v5005 = vpop.f32.mrf.mxu0
    %v5006 = vadd.f32 %v4957, %v5005
    %v5007 = vpop.f32.mrf.mxu0
    %v5008 = vadd.f32 %v4959, %v5007
    %5009 = vmatmul.bf16.gmra.mxu0 %v2349
    %v5010 = vpop.f32.mrf.mxu0
    %v5011 = vadd.f32 %v4962, %v5010
    %v5012 = vpop.f32.mrf.mxu0
    %v5013 = vadd.f32 %v4964, %v5012
    %5014 = vmatmul.bf16.gmra.mxu0 %v2350
    %v5015 = vpop.f32.mrf.mxu0
    %v5016 = vadd.f32 %v4967, %v5015
    %v5017 = vpop.f32.mrf.mxu0
    %v5018 = vadd.f32 %v4969, %v5017
    %5019 = vdwg.mxu0
    %5020 = vmatpush.bf16.msra.mxu0 %v3947
    %5021 = vmatpush.bf16.msra.mxu0 %v3944
    %5022 = vmatpush.bf16.msra.mxu0 %v3941
    %5023 = vmatpush.bf16.msra.mxu0 %v3938
    %5024 = vmatpush.bf16.msra.mxu0 %v3935
    %5025 = vmatpush.bf16.msra.mxu0 %v3932
    %5026 = vmatpush.bf16.msra.mxu0 %v3929
    %5027 = vmatpush.bf16.msra.mxu0 %v3926
    %5028 = vmatmul.bf16.gmra.mxu0 %v2590
    %v5029 = vpop.f32.mrf.mxu0
    %v5030 = vadd.f32 %v4981, %v5029
    %v5031 = vpop.f32.mrf.mxu0
    %v5032 = vadd.f32 %v4983, %v5031
    %5033 = vmatmul.bf16.gmra.mxu0 %v2594
    %v5034 = vpop.f32.mrf.mxu0
    %v5035 = vadd.f32 %v4986, %v5034
    %v5036 = vpop.f32.mrf.mxu0
    %v5037 = vadd.f32 %v4988, %v5036
    %5038 = vmatmul.bf16.gmra.mxu0 %v2598
    %v5039 = vpop.f32.mrf.mxu0
    %v5040 = vadd.f32 %v4991, %v5039
    %v5041 = vpop.f32.mrf.mxu0
    %v5042 = vadd.f32 %v4993, %v5041
    %5043 = vmatmul.bf16.gmra.mxu0 %v2602
    %v5044 = vpop.f32.mrf.mxu0
    %v5045 = vadd.f32 %v4996, %v5044
    %v5046 = vpop.f32.mrf.mxu0
    %v5047 = vadd.f32 %v4998, %v5046
    %5048 = vmatmul.bf16.gmra.mxu0 %v2606
    %v5049 = vpop.f32.mrf.mxu0
    %v5050 = vadd.f32 %v5001, %v5049
    %v5051 = vpop.f32.mrf.mxu0
    %v5052 = vadd.f32 %v5003, %v5051
    %5053 = vmatmul.bf16.gmra.mxu0 %v2610
    %v5054 = vpop.f32.mrf.mxu0
    %v5055 = vadd.f32 %v5006, %v5054
    %v5056 = vpop.f32.mrf.mxu0
    %v5057 = vadd.f32 %v5008, %v5056
    %5058 = vmatmul.bf16.gmra.mxu0 %v2614
    %v5059 = vpop.f32.mrf.mxu0
    %v5060 = vadd.f32 %v5011, %v5059
    %v5061 = vpop.f32.mrf.mxu0
    %v5062 = vadd.f32 %v5013, %v5061
    %5063 = vmatmul.bf16.gmra.mxu0 %v2618
    %v5064 = vpop.f32.mrf.mxu0
    %v5065 = vadd.f32 %v5016, %v5064
    %v5066 = vpop.f32.mrf.mxu0
    %v5067 = vadd.f32 %v5018, %v5066
    %5068 = vdwg.mxu0
    %5069 = vmatpush.bf16.msra.mxu0 %v3971
    %5070 = vmatpush.bf16.msra.mxu0 %v3968
    %5071 = vmatpush.bf16.msra.mxu0 %v3965
    %5072 = vmatpush.bf16.msra.mxu0 %v3962
    %5073 = vmatpush.bf16.msra.mxu0 %v3959
    %5074 = vmatpush.bf16.msra.mxu0 %v3956
    %5075 = vmatpush.bf16.msra.mxu0 %v3953
    %5076 = vmatpush.bf16.msra.mxu0 %v3950
    %5077 = vmatmul.bf16.gmra.mxu0 %v2441
    %v5078 = vpop.f32.mrf.mxu0
    %v5079 = vadd.f32 %v5030, %v5078
    %v5080 = vpop.f32.mrf.mxu0
    %v5081 = vadd.f32 %v5032, %v5080
    %5082 = vmatmul.bf16.gmra.mxu0 %v2442
    %v5083 = vpop.f32.mrf.mxu0
    %v5084 = vadd.f32 %v5035, %v5083
    %v5085 = vpop.f32.mrf.mxu0
    %v5086 = vadd.f32 %v5037, %v5085
    %5087 = vmatmul.bf16.gmra.mxu0 %v2443
    %v5088 = vpop.f32.mrf.mxu0
    %v5089 = vadd.f32 %v5040, %v5088
    %v5090 = vpop.f32.mrf.mxu0
    %v5091 = vadd.f32 %v5042, %v5090
    %5092 = vmatmul.bf16.gmra.mxu0 %v2444
    %v5093 = vpop.f32.mrf.mxu0
    %v5094 = vadd.f32 %v5045, %v5093
    %v5095 = vpop.f32.mrf.mxu0
    %v5096 = vadd.f32 %v5047, %v5095
    %5097 = vmatmul.bf16.gmra.mxu0 %v2445
    %v5098 = vpop.f32.mrf.mxu0
    %v5099 = vadd.f32 %v5050, %v5098
    %v5100 = vpop.f32.mrf.mxu0
    %v5101 = vadd.f32 %v5052, %v5100
    %5102 = vmatmul.bf16.gmra.mxu0 %v2446
    %v5103 = vpop.f32.mrf.mxu0
    %v5104 = vadd.f32 %v5055, %v5103
    %v5105 = vpop.f32.mrf.mxu0
    %v5106 = vadd.f32 %v5057, %v5105
    %5107 = vmatmul.bf16.gmra.mxu0 %v2447
    %v5108 = vpop.f32.mrf.mxu0
    %v5109 = vadd.f32 %v5060, %v5108
    %v5110 = vpop.f32.mrf.mxu0
    %v5111 = vadd.f32 %v5062, %v5110
    %5112 = vmatmul.bf16.gmra.mxu0 %v2448
    %v5113 = vpop.f32.mrf.mxu0
    %v5114 = vadd.f32 %v5065, %v5113
    %v5115 = vpop.f32.mrf.mxu0
    %v5116 = vadd.f32 %v5067, %v5115
    %5117 = vdwg.mxu0
    %5118 = vmatpush.bf16.msra.mxu0 %v3995
    %5119 = vmatpush.bf16.msra.mxu0 %v3992
    %5120 = vmatpush.bf16.msra.mxu0 %v3989
    %5121 = vmatpush.bf16.msra.mxu0 %v3986
    %5122 = vmatpush.bf16.msra.mxu0 %v3983
    %5123 = vmatpush.bf16.msra.mxu0 %v3980
    %5124 = vmatpush.bf16.msra.mxu0 %v3977
    %5125 = vmatpush.bf16.msra.mxu0 %v3974
    %5126 = vmatmul.bf16.gmra.mxu0 %v2622
    %v5127 = vpop.f32.mrf.mxu0
    %v5128 = vadd.f32 %v5079, %v5127
    %v5129 = vpop.f32.mrf.mxu0
    %v5130 = vadd.f32 %v5081, %v5129
    %5131 = vmatmul.bf16.gmra.mxu0 %v2626
    %v5132 = vpop.f32.mrf.mxu0
    %v5133 = vadd.f32 %v5084, %v5132
    %v5134 = vpop.f32.mrf.mxu0
    %v5135 = vadd.f32 %v5086, %v5134
    %5136 = vmatmul.bf16.gmra.mxu0 %v2630
    %v5137 = vpop.f32.mrf.mxu0
    %v5138 = vadd.f32 %v5089, %v5137
    %v5139 = vpop.f32.mrf.mxu0
    %v5140 = vadd.f32 %v5091, %v5139
    %5141 = vmatmul.bf16.gmra.mxu0 %v2634
    %v5142 = vpop.f32.mrf.mxu0
    %v5143 = vadd.f32 %v5094, %v5142
    %v5144 = vpop.f32.mrf.mxu0
    %v5145 = vadd.f32 %v5096, %v5144
    %5146 = vmatmul.bf16.gmra.mxu0 %v2638
    %v5147 = vpop.f32.mrf.mxu0
    %v5148 = vadd.f32 %v5099, %v5147
    %v5149 = vpop.f32.mrf.mxu0
    %v5150 = vadd.f32 %v5101, %v5149
    %5151 = vmatmul.bf16.gmra.mxu0 %v2642
    %v5152 = vpop.f32.mrf.mxu0
    %v5153 = vadd.f32 %v5104, %v5152
    %v5154 = vpop.f32.mrf.mxu0
    %v5155 = vadd.f32 %v5106, %v5154
    %5156 = vmatmul.bf16.gmra.mxu0 %v2646
    %v5157 = vpop.f32.mrf.mxu0
    %v5158 = vadd.f32 %v5109, %v5157
    %v5159 = vpop.f32.mrf.mxu0
    %v5160 = vadd.f32 %v5111, %v5159
    %5161 = vmatmul.bf16.gmra.mxu0 %v2650
    %v5162 = vpop.f32.mrf.mxu0
    %v5163 = vadd.f32 %v5114, %v5162
    %v5164 = vpop.f32.mrf.mxu0
    %v5165 = vadd.f32 %v5116, %v5164
    %5166 = vdwg.mxu0
    %5167 = vmatpush.bf16.msra.mxu0 %v4019
    %5168 = vmatpush.bf16.msra.mxu0 %v4016
    %5169 = vmatpush.bf16.msra.mxu0 %v4013
    %5170 = vmatpush.bf16.msra.mxu0 %v4010
    %5171 = vmatpush.bf16.msra.mxu0 %v4007
    %5172 = vmatpush.bf16.msra.mxu0 %v4004
    %5173 = vmatpush.bf16.msra.mxu0 %v4001
    %5174 = vmatpush.bf16.msra.mxu0 %v3998
    %5175 = vmatmul.bf16.gmra.mxu0 %v2506
    %v5176 = vpop.f32.mrf.mxu0
    %v5177 = vadd.f32 %v5128, %v5176
    %v5178 = vpop.f32.mrf.mxu0
    %v5179 = vadd.f32 %v5130, %v5178
    %5180 = vmatmul.bf16.gmra.mxu0 %v2507
    %v5181 = vpop.f32.mrf.mxu0
    %v5182 = vadd.f32 %v5133, %v5181
    %v5183 = vpop.f32.mrf.mxu0
    %v5184 = vadd.f32 %v5135, %v5183
    %5185 = vmatmul.bf16.gmra.mxu0 %v2508
    %v5186 = vpop.f32.mrf.mxu0
    %v5187 = vadd.f32 %v5138, %v5186
    %v5188 = vpop.f32.mrf.mxu0
    %v5189 = vadd.f32 %v5140, %v5188
    %5190 = vmatmul.bf16.gmra.mxu0 %v2509
    %v5191 = vpop.f32.mrf.mxu0
    %v5192 = vadd.f32 %v5143, %v5191
    %v5193 = vpop.f32.mrf.mxu0
    %v5194 = vadd.f32 %v5145, %v5193
    %5195 = vmatmul.bf16.gmra.mxu0 %v2510
    %v5196 = vpop.f32.mrf.mxu0
    %v5197 = vadd.f32 %v5148, %v5196
    %v5198 = vpop.f32.mrf.mxu0
    %v5199 = vadd.f32 %v5150, %v5198
    %5200 = vmatmul.bf16.gmra.mxu0 %v2511
    %v5201 = vpop.f32.mrf.mxu0
    %v5202 = vadd.f32 %v5153, %v5201
    %v5203 = vpop.f32.mrf.mxu0
    %v5204 = vadd.f32 %v5155, %v5203
    %5205 = vmatmul.bf16.gmra.mxu0 %v2512
    %v5206 = vpop.f32.mrf.mxu0
    %v5207 = vadd.f32 %v5158, %v5206
    %v5208 = vpop.f32.mrf.mxu0
    %v5209 = vadd.f32 %v5160, %v5208
    %5210 = vmatmul.bf16.gmra.mxu0 %v2513
    %v5211 = vpop.f32.mrf.mxu0
    %v5212 = vadd.f32 %v5163, %v5211
    %v5213 = vpop.f32.mrf.mxu0
    %v5214 = vadd.f32 %v5165, %v5213
    %5215 = vdwg.mxu0
    %5216 = vmatpush.bf16.msra.mxu0 %v4043
    %5217 = vmatpush.bf16.msra.mxu0 %v4040
    %5218 = vmatpush.bf16.msra.mxu0 %v4037
    %5219 = vmatpush.bf16.msra.mxu0 %v4034
    %5220 = vmatpush.bf16.msra.mxu0 %v4031
    %5221 = vmatpush.bf16.msra.mxu0 %v4028
    %5222 = vmatpush.bf16.msra.mxu0 %v4025
    %5223 = vmatpush.bf16.msra.mxu0 %v4022
    %5224 = vmatmul.bf16.gmra.mxu0 %v2654
    %v5225 = vpop.f32.mrf.mxu0
    %v5226 = vadd.f32 %v5177, %v5225
    %v5227 = vpop.f32.mrf.mxu0
    %v5228 = vadd.f32 %v5179, %v5227
    %5229 = vmatmul.bf16.gmra.mxu0 %v2657
    %v5230 = vpop.f32.mrf.mxu0
    %v5231 = vadd.f32 %v5182, %v5230
    %v5232 = vpop.f32.mrf.mxu0
    %v5233 = vadd.f32 %v5184, %v5232
    %5234 = vmatmul.bf16.gmra.mxu0 %v2660
    %v5235 = vpop.f32.mrf.mxu0
    %v5236 = vadd.f32 %v5187, %v5235
    %v5237 = vpop.f32.mrf.mxu0
    %v5238 = vadd.f32 %v5189, %v5237
    %5239 = vmatmul.bf16.gmra.mxu0 %v2663
    %v5240 = vpop.f32.mrf.mxu0
    %v5241 = vadd.f32 %v5192, %v5240
    %v5242 = vpop.f32.mrf.mxu0
    %v5243 = vadd.f32 %v5194, %v5242
    %5244 = vmatmul.bf16.gmra.mxu0 %v2666
    %v5245 = vpop.f32.mrf.mxu0
    %v5246 = vadd.f32 %v5197, %v5245
    %v5247 = vpop.f32.mrf.mxu0
    %v5248 = vadd.f32 %v5199, %v5247
    %5249 = vmatmul.bf16.gmra.mxu0 %v2669
    %v5250 = vpop.f32.mrf.mxu0
    %v5251 = vadd.f32 %v5202, %v5250
    %v5252 = vpop.f32.mrf.mxu0
    %v5253 = vadd.f32 %v5204, %v5252
    %5254 = vmatmul.bf16.gmra.mxu0 %v2672
    %v5255 = vpop.f32.mrf.mxu0
    %v5256 = vadd.f32 %v5207, %v5255
    %v5257 = vpop.f32.mrf.mxu0
    %v5258 = vadd.f32 %v5209, %v5257
    %5259 = vmatmul.bf16.gmra.mxu0 %v2675
    %v5260 = vpop.f32.mrf.mxu0
    %v5261 = vadd.f32 %v5212, %v5260
    %v5262 = vpop.f32.mrf.mxu0
    %v5263 = vadd.f32 %v5214, %v5262
    %5264 = vdwg.mxu0
    %5265 = vmatpush.bf16.msra.mxu0 %v3828
    %5266 = vmatpush.bf16.msra.mxu0 %v3825
    %5267 = vmatpush.bf16.msra.mxu0 %v3822
    %5268 = vmatpush.bf16.msra.mxu0 %v3819
    %5269 = vmatpush.bf16.msra.mxu0 %v3816
    %5270 = vmatpush.bf16.msra.mxu0 %v3813
    %5271 = vmatpush.bf16.msra.mxu0 %v3810
    %5272 = vmatpush.bf16.msra.mxu0 %v3807
    %5273 = vmatmul.bf16.gmra.mxu0 %v2101
    %v5274 = vpop.f32.mrf.mxu0
    %v5275 = vadd.f32 %v3001, %v5274
    %v5276 = vpop.f32.mrf.mxu0
    %v5277 = vadd.f32 %v3001, %v5276
    %5278 = vmatmul.bf16.gmra.mxu0 %v2103
    %v5279 = vpop.f32.mrf.mxu0
    %v5280 = vadd.f32 %v3001, %v5279
    %v5281 = vpop.f32.mrf.mxu0
    %v5282 = vadd.f32 %v3001, %v5281
    %5283 = vmatmul.bf16.gmra.mxu0 %v2105
    %v5284 = vpop.f32.mrf.mxu0
    %v5285 = vadd.f32 %v3001, %v5284
    %v5286 = vpop.f32.mrf.mxu0
    %v5287 = vadd.f32 %v3001, %v5286
    %5288 = vmatmul.bf16.gmra.mxu0 %v2107
    %v5289 = vpop.f32.mrf.mxu0
    %v5290 = vadd.f32 %v3001, %v5289
    %v5291 = vpop.f32.mrf.mxu0
    %v5292 = vadd.f32 %v3001, %v5291
    %5293 = vmatmul.bf16.gmra.mxu0 %v2109
    %v5294 = vpop.f32.mrf.mxu0
    %v5295 = vadd.f32 %v3001, %v5294
    %v5296 = vpop.f32.mrf.mxu0
    %v5297 = vadd.f32 %v3001, %v5296
    %5298 = vmatmul.bf16.gmra.mxu0 %v2111
    %v5299 = vpop.f32.mrf.mxu0
    %v5300 = vadd.f32 %v3001, %v5299
    %v5301 = vpop.f32.mrf.mxu0
    %v5302 = vadd.f32 %v3001, %v5301
    %5303 = vmatmul.bf16.gmra.mxu0 %v2113
    %v5304 = vpop.f32.mrf.mxu0
    %v5305 = vadd.f32 %v3001, %v5304
    %v5306 = vpop.f32.mrf.mxu0
    %v5307 = vadd.f32 %v3001, %v5306
    %5308 = vmatmul.bf16.gmra.mxu0 %v2115
    %v5309 = vpop.f32.mrf.mxu0
    %v5310 = vadd.f32 %v3001, %v5309
    %v5311 = vpop.f32.mrf.mxu0
    %v5312 = vadd.f32 %v3001, %v5311
    %5313 = vdwg.mxu0
    %5314 = vmatpush.bf16.msra.mxu0 %v3852
    %5315 = vmatpush.bf16.msra.mxu0 %v3849
    %5316 = vmatpush.bf16.msra.mxu0 %v3846
    %5317 = vmatpush.bf16.msra.mxu0 %v3843
    %5318 = vmatpush.bf16.msra.mxu0 %v3840
    %5319 = vmatpush.bf16.msra.mxu0 %v3837
    %5320 = vmatpush.bf16.msra.mxu0 %v3834
    %5321 = vmatpush.bf16.msra.mxu0 %v3831
    %5322 = vmatmul.bf16.gmra.mxu0 %v2525
    %v5323 = vpop.f32.mrf.mxu0
    %v5324 = vadd.f32 %v5275, %v5323
    %v5325 = vpop.f32.mrf.mxu0
    %v5326 = vadd.f32 %v5277, %v5325
    %5327 = vmatmul.bf16.gmra.mxu0 %v2529
    %v5328 = vpop.f32.mrf.mxu0
    %v5329 = vadd.f32 %v5280, %v5328
    %v5330 = vpop.f32.mrf.mxu0
    %v5331 = vadd.f32 %v5282, %v5330
    %5332 = vmatmul.bf16.gmra.mxu0 %v2533
    %v5333 = vpop.f32.mrf.mxu0
    %v5334 = vadd.f32 %v5285, %v5333
    %v5335 = vpop.f32.mrf.mxu0
    %v5336 = vadd.f32 %v5287, %v5335
    %5337 = vmatmul.bf16.gmra.mxu0 %v2537
    %v5338 = vpop.f32.mrf.mxu0
    %v5339 = vadd.f32 %v5290, %v5338
    %v5340 = vpop.f32.mrf.mxu0
    %v5341 = vadd.f32 %v5292, %v5340
    %5342 = vmatmul.bf16.gmra.mxu0 %v2541
    %v5343 = vpop.f32.mrf.mxu0
    %v5344 = vadd.f32 %v5295, %v5343
    %v5345 = vpop.f32.mrf.mxu0
    %v5346 = vadd.f32 %v5297, %v5345
    %5347 = vmatmul.bf16.gmra.mxu0 %v2545
    %v5348 = vpop.f32.mrf.mxu0
    %v5349 = vadd.f32 %v5300, %v5348
    %v5350 = vpop.f32.mrf.mxu0
    %v5351 = vadd.f32 %v5302, %v5350
    %5352 = vmatmul.bf16.gmra.mxu0 %v2549
    %v5353 = vpop.f32.mrf.mxu0
    %v5354 = vadd.f32 %v5305, %v5353
    %v5355 = vpop.f32.mrf.mxu0
    %v5356 = vadd.f32 %v5307, %v5355
    %5357 = vmatmul.bf16.gmra.mxu0 %v2553
    %v5358 = vpop.f32.mrf.mxu0
    %v5359 = vadd.f32 %v5310, %v5358
    %v5360 = vpop.f32.mrf.mxu0
    %v5361 = vadd.f32 %v5312, %v5360
    %5362 = vdwg.mxu0
    %5363 = vmatpush.bf16.msra.mxu0 %v3876
    %5364 = vmatpush.bf16.msra.mxu0 %v3873
    %5365 = vmatpush.bf16.msra.mxu0 %v3870
    %5366 = vmatpush.bf16.msra.mxu0 %v3867
    %5367 = vmatpush.bf16.msra.mxu0 %v3864
    %5368 = vmatpush.bf16.msra.mxu0 %v3861
    %5369 = vmatpush.bf16.msra.mxu0 %v3858
    %5370 = vmatpush.bf16.msra.mxu0 %v3855
    %5371 = vmatmul.bf16.gmra.mxu0 %v2246
    %v5372 = vpop.f32.mrf.mxu0
    %v5373 = vadd.f32 %v5324, %v5372
    %v5374 = vpop.f32.mrf.mxu0
    %v5375 = vadd.f32 %v5326, %v5374
    %5376 = vmatmul.bf16.gmra.mxu0 %v2247
    %v5377 = vpop.f32.mrf.mxu0
    %v5378 = vadd.f32 %v5329, %v5377
    %v5379 = vpop.f32.mrf.mxu0
    %v5380 = vadd.f32 %v5331, %v5379
    %5381 = vmatmul.bf16.gmra.mxu0 %v2248
    %v5382 = vpop.f32.mrf.mxu0
    %v5383 = vadd.f32 %v5334, %v5382
    %v5384 = vpop.f32.mrf.mxu0
    %v5385 = vadd.f32 %v5336, %v5384
    %5386 = vmatmul.bf16.gmra.mxu0 %v2249
    %v5387 = vpop.f32.mrf.mxu0
    %v5388 = vadd.f32 %v5339, %v5387
    %v5389 = vpop.f32.mrf.mxu0
    %v5390 = vadd.f32 %v5341, %v5389
    %5391 = vmatmul.bf16.gmra.mxu0 %v2250
    %v5392 = vpop.f32.mrf.mxu0
    %v5393 = vadd.f32 %v5344, %v5392
    %v5394 = vpop.f32.mrf.mxu0
    %v5395 = vadd.f32 %v5346, %v5394
    %5396 = vmatmul.bf16.gmra.mxu0 %v2251
    %v5397 = vpop.f32.mrf.mxu0
    %v5398 = vadd.f32 %v5349, %v5397
    %v5399 = vpop.f32.mrf.mxu0
    %v5400 = vadd.f32 %v5351, %v5399
    %5401 = vmatmul.bf16.gmra.mxu0 %v2252
    %v5402 = vpop.f32.mrf.mxu0
    %v5403 = vadd.f32 %v5354, %v5402
    %v5404 = vpop.f32.mrf.mxu0
    %v5405 = vadd.f32 %v5356, %v5404
    %5406 = vmatmul.bf16.gmra.mxu0 %v2253
    %v5407 = vpop.f32.mrf.mxu0
    %v5408 = vadd.f32 %v5359, %v5407
    %v5409 = vpop.f32.mrf.mxu0
    %v5410 = vadd.f32 %v5361, %v5409
    %5411 = vdwg.mxu0
    %5412 = vmatpush.bf16.msra.mxu0 %v3900
    %5413 = vmatpush.bf16.msra.mxu0 %v3897
    %5414 = vmatpush.bf16.msra.mxu0 %v3894
    %5415 = vmatpush.bf16.msra.mxu0 %v3891
    %5416 = vmatpush.bf16.msra.mxu0 %v3888
    %5417 = vmatpush.bf16.msra.mxu0 %v3885
    %5418 = vmatpush.bf16.msra.mxu0 %v3882
    %5419 = vmatpush.bf16.msra.mxu0 %v3879
    %5420 = vmatmul.bf16.gmra.mxu0 %v2557
    %v5421 = vpop.f32.mrf.mxu0
    %v5422 = vadd.f32 %v5373, %v5421
    %v5423 = vpop.f32.mrf.mxu0
    %v5424 = vadd.f32 %v5375, %v5423
    %5425 = vmatmul.bf16.gmra.mxu0 %v2561
    %v5426 = vpop.f32.mrf.mxu0
    %v5427 = vadd.f32 %v5378, %v5426
    %v5428 = vpop.f32.mrf.mxu0
    %v5429 = vadd.f32 %v5380, %v5428
    %5430 = vmatmul.bf16.gmra.mxu0 %v2565
    %v5431 = vpop.f32.mrf.mxu0
    %v5432 = vadd.f32 %v5383, %v5431
    %v5433 = vpop.f32.mrf.mxu0
    %v5434 = vadd.f32 %v5385, %v5433
    %5435 = vmatmul.bf16.gmra.mxu0 %v2569
    %v5436 = vpop.f32.mrf.mxu0
    %v5437 = vadd.f32 %v5388, %v5436
    %v5438 = vpop.f32.mrf.mxu0
    %v5439 = vadd.f32 %v5390, %v5438
    %5440 = vmatmul.bf16.gmra.mxu0 %v2573
    %v5441 = vpop.f32.mrf.mxu0
    %v5442 = vadd.f32 %v5393, %v5441
    %v5443 = vpop.f32.mrf.mxu0
    %v5444 = vadd.f32 %v5395, %v5443
    %5445 = vmatmul.bf16.gmra.mxu0 %v2577
    %v5446 = vpop.f32.mrf.mxu0
    %v5447 = vadd.f32 %v5398, %v5446
    %v5448 = vpop.f32.mrf.mxu0
    %v5449 = vadd.f32 %v5400, %v5448
    %5450 = vmatmul.bf16.gmra.mxu0 %v2581
    %v5451 = vpop.f32.mrf.mxu0
    %v5452 = vadd.f32 %v5403, %v5451
    %v5453 = vpop.f32.mrf.mxu0
    %v5454 = vadd.f32 %v5405, %v5453
    %5455 = vmatmul.bf16.gmra.mxu0 %v2585
    %v5456 = vpop.f32.mrf.mxu0
    %v5457 = vadd.f32 %v5408, %v5456
    %v5458 = vpop.f32.mrf.mxu0
    %v5459 = vadd.f32 %v5410, %v5458
    %5460 = vdwg.mxu0
    %5461 = vmatpush.bf16.msra.mxu0 %v3924
    %5462 = vmatpush.bf16.msra.mxu0 %v3921
    %5463 = vmatpush.bf16.msra.mxu0 %v3918
    %5464 = vmatpush.bf16.msra.mxu0 %v3915
    %5465 = vmatpush.bf16.msra.mxu0 %v3912
    %5466 = vmatpush.bf16.msra.mxu0 %v3909
    %5467 = vmatpush.bf16.msra.mxu0 %v3906
    %5468 = vmatpush.bf16.msra.mxu0 %v3903
    %5469 = vmatmul.bf16.gmra.mxu0 %v2343
    %v5470 = vpop.f32.mrf.mxu0
    %v5471 = vadd.f32 %v5422, %v5470
    %v5472 = vpop.f32.mrf.mxu0
    %v5473 = vadd.f32 %v5424, %v5472
    %5474 = vmatmul.bf16.gmra.mxu0 %v2344
    %v5475 = vpop.f32.mrf.mxu0
    %v5476 = vadd.f32 %v5427, %v5475
    %v5477 = vpop.f32.mrf.mxu0
    %v5478 = vadd.f32 %v5429, %v5477
    %5479 = vmatmul.bf16.gmra.mxu0 %v2345
    %v5480 = vpop.f32.mrf.mxu0
    %v5481 = vadd.f32 %v5432, %v5480
    %v5482 = vpop.f32.mrf.mxu0
    %v5483 = vadd.f32 %v5434, %v5482
    %5484 = vmatmul.bf16.gmra.mxu0 %v2346
    %v5485 = vpop.f32.mrf.mxu0
    %v5486 = vadd.f32 %v5437, %v5485
    %v5487 = vpop.f32.mrf.mxu0
    %v5488 = vadd.f32 %v5439, %v5487
    %5489 = vmatmul.bf16.gmra.mxu0 %v2347
    %v5490 = vpop.f32.mrf.mxu0
    %v5491 = vadd.f32 %v5442, %v5490
    %v5492 = vpop.f32.mrf.mxu0
    %v5493 = vadd.f32 %v5444, %v5492
    %5494 = vmatmul.bf16.gmra.mxu0 %v2348
    %v5495 = vpop.f32.mrf.mxu0
    %v5496 = vadd.f32 %v5447, %v5495
    %v5497 = vpop.f32.mrf.mxu0
    %v5498 = vadd.f32 %v5449, %v5497
    %5499 = vmatmul.bf16.gmra.mxu0 %v2349
    %v5500 = vpop.f32.mrf.mxu0
    %v5501 = vadd.f32 %v5452, %v5500
    %v5502 = vpop.f32.mrf.mxu0
    %v5503 = vadd.f32 %v5454, %v5502
    %5504 = vmatmul.bf16.gmra.mxu0 %v2350
    %v5505 = vpop.f32.mrf.mxu0
    %v5506 = vadd.f32 %v5457, %v5505
    %v5507 = vpop.f32.mrf.mxu0
    %v5508 = vadd.f32 %v5459, %v5507
    %5509 = vdwg.mxu0
    %5510 = vmatpush.bf16.msra.mxu0 %v3948
    %5511 = vmatpush.bf16.msra.mxu0 %v3945
    %5512 = vmatpush.bf16.msra.mxu0 %v3942
    %5513 = vmatpush.bf16.msra.mxu0 %v3939
    %5514 = vmatpush.bf16.msra.mxu0 %v3936
    %5515 = vmatpush.bf16.msra.mxu0 %v3933
    %5516 = vmatpush.bf16.msra.mxu0 %v3930
    %5517 = vmatpush.bf16.msra.mxu0 %v3927
    %5518 = vmatmul.bf16.gmra.mxu0 %v2590
    %v5519 = vpop.f32.mrf.mxu0
    %v5520 = vadd.f32 %v5471, %v5519
    %v5521 = vpop.f32.mrf.mxu0
    %v5522 = vadd.f32 %v5473, %v5521
    %5523 = vmatmul.bf16.gmra.mxu0 %v2594
    %v5524 = vpop.f32.mrf.mxu0
    %v5525 = vadd.f32 %v5476, %v5524
    %v5526 = vpop.f32.mrf.mxu0
    %v5527 = vadd.f32 %v5478, %v5526
    %5528 = vmatmul.bf16.gmra.mxu0 %v2598
    %v5529 = vpop.f32.mrf.mxu0
    %v5530 = vadd.f32 %v5481, %v5529
    %v5531 = vpop.f32.mrf.mxu0
    %v5532 = vadd.f32 %v5483, %v5531
    %5533 = vmatmul.bf16.gmra.mxu0 %v2602
    %v5534 = vpop.f32.mrf.mxu0
    %v5535 = vadd.f32 %v5486, %v5534
    %v5536 = vpop.f32.mrf.mxu0
    %v5537 = vadd.f32 %v5488, %v5536
    %5538 = vmatmul.bf16.gmra.mxu0 %v2606
    %v5539 = vpop.f32.mrf.mxu0
    %v5540 = vadd.f32 %v5491, %v5539
    %v5541 = vpop.f32.mrf.mxu0
    %v5542 = vadd.f32 %v5493, %v5541
    %5543 = vmatmul.bf16.gmra.mxu0 %v2610
    %v5544 = vpop.f32.mrf.mxu0
    %v5545 = vadd.f32 %v5496, %v5544
    %v5546 = vpop.f32.mrf.mxu0
    %v5547 = vadd.f32 %v5498, %v5546
    %5548 = vmatmul.bf16.gmra.mxu0 %v2614
    %v5549 = vpop.f32.mrf.mxu0
    %v5550 = vadd.f32 %v5501, %v5549
    %v5551 = vpop.f32.mrf.mxu0
    %v5552 = vadd.f32 %v5503, %v5551
    %5553 = vmatmul.bf16.gmra.mxu0 %v2618
    %v5554 = vpop.f32.mrf.mxu0
    %v5555 = vadd.f32 %v5506, %v5554
    %v5556 = vpop.f32.mrf.mxu0
    %v5557 = vadd.f32 %v5508, %v5556
    %5558 = vdwg.mxu0
    %5559 = vmatpush.bf16.msra.mxu0 %v3972
    %5560 = vmatpush.bf16.msra.mxu0 %v3969
    %5561 = vmatpush.bf16.msra.mxu0 %v3966
    %5562 = vmatpush.bf16.msra.mxu0 %v3963
    %5563 = vmatpush.bf16.msra.mxu0 %v3960
    %5564 = vmatpush.bf16.msra.mxu0 %v3957
    %5565 = vmatpush.bf16.msra.mxu0 %v3954
    %5566 = vmatpush.bf16.msra.mxu0 %v3951
    %5567 = vmatmul.bf16.gmra.mxu0 %v2441
    %v5568 = vpop.f32.mrf.mxu0
    %v5569 = vadd.f32 %v5520, %v5568
    %v5570 = vpop.f32.mrf.mxu0
    %v5571 = vadd.f32 %v5522, %v5570
    %5572 = vmatmul.bf16.gmra.mxu0 %v2442
    %v5573 = vpop.f32.mrf.mxu0
    %v5574 = vadd.f32 %v5525, %v5573
    %v5575 = vpop.f32.mrf.mxu0
    %v5576 = vadd.f32 %v5527, %v5575
    %5577 = vmatmul.bf16.gmra.mxu0 %v2443
    %v5578 = vpop.f32.mrf.mxu0
    %v5579 = vadd.f32 %v5530, %v5578
    %v5580 = vpop.f32.mrf.mxu0
    %v5581 = vadd.f32 %v5532, %v5580
    %5582 = vmatmul.bf16.gmra.mxu0 %v2444
    %v5583 = vpop.f32.mrf.mxu0
    %v5584 = vadd.f32 %v5535, %v5583
    %v5585 = vpop.f32.mrf.mxu0
    %v5586 = vadd.f32 %v5537, %v5585
    %5587 = vmatmul.bf16.gmra.mxu0 %v2445
    %v5588 = vpop.f32.mrf.mxu0
    %v5589 = vadd.f32 %v5540, %v5588
    %v5590 = vpop.f32.mrf.mxu0
    %v5591 = vadd.f32 %v5542, %v5590
    %5592 = vmatmul.bf16.gmra.mxu0 %v2446
    %v5593 = vpop.f32.mrf.mxu0
    %v5594 = vadd.f32 %v5545, %v5593
    %v5595 = vpop.f32.mrf.mxu0
    %v5596 = vadd.f32 %v5547, %v5595
    %5597 = vmatmul.bf16.gmra.mxu0 %v2447
    %v5598 = vpop.f32.mrf.mxu0
    %v5599 = vadd.f32 %v5550, %v5598
    %v5600 = vpop.f32.mrf.mxu0
    %v5601 = vadd.f32 %v5552, %v5600
    %5602 = vmatmul.bf16.gmra.mxu0 %v2448
    %v5603 = vpop.f32.mrf.mxu0
    %v5604 = vadd.f32 %v5555, %v5603
    %v5605 = vpop.f32.mrf.mxu0
    %v5606 = vadd.f32 %v5557, %v5605
    %5607 = vdwg.mxu0
    %5608 = vmatpush.bf16.msra.mxu0 %v3996
    %5609 = vmatpush.bf16.msra.mxu0 %v3993
    %5610 = vmatpush.bf16.msra.mxu0 %v3990
    %5611 = vmatpush.bf16.msra.mxu0 %v3987
    %5612 = vmatpush.bf16.msra.mxu0 %v3984
    %5613 = vmatpush.bf16.msra.mxu0 %v3981
    %5614 = vmatpush.bf16.msra.mxu0 %v3978
    %5615 = vmatpush.bf16.msra.mxu0 %v3975
    %5616 = vmatmul.bf16.gmra.mxu0 %v2622
    %v5617 = vpop.f32.mrf.mxu0
    %v5618 = vadd.f32 %v5569, %v5617
    %v5619 = vpop.f32.mrf.mxu0
    %v5620 = vadd.f32 %v5571, %v5619
    %5621 = vmatmul.bf16.gmra.mxu0 %v2626
    %v5622 = vpop.f32.mrf.mxu0
    %v5623 = vadd.f32 %v5574, %v5622
    %v5624 = vpop.f32.mrf.mxu0
    %v5625 = vadd.f32 %v5576, %v5624
    %5626 = vmatmul.bf16.gmra.mxu0 %v2630
    %v5627 = vpop.f32.mrf.mxu0
    %v5628 = vadd.f32 %v5579, %v5627
    %v5629 = vpop.f32.mrf.mxu0
    %v5630 = vadd.f32 %v5581, %v5629
    %5631 = vmatmul.bf16.gmra.mxu0 %v2634
    %v5632 = vpop.f32.mrf.mxu0
    %v5633 = vadd.f32 %v5584, %v5632
    %v5634 = vpop.f32.mrf.mxu0
    %v5635 = vadd.f32 %v5586, %v5634
    %5636 = vmatmul.bf16.gmra.mxu0 %v2638
    %v5637 = vpop.f32.mrf.mxu0
    %v5638 = vadd.f32 %v5589, %v5637
    %v5639 = vpop.f32.mrf.mxu0
    %v5640 = vadd.f32 %v5591, %v5639
    %5641 = vmatmul.bf16.gmra.mxu0 %v2642
    %v5642 = vpop.f32.mrf.mxu0
    %v5643 = vadd.f32 %v5594, %v5642
    %v5644 = vpop.f32.mrf.mxu0
    %v5645 = vadd.f32 %v5596, %v5644
    %5646 = vmatmul.bf16.gmra.mxu0 %v2646
    %v5647 = vpop.f32.mrf.mxu0
    %v5648 = vadd.f32 %v5599, %v5647
    %v5649 = vpop.f32.mrf.mxu0
    %v5650 = vadd.f32 %v5601, %v5649
    %5651 = vmatmul.bf16.gmra.mxu0 %v2650
    %v5652 = vpop.f32.mrf.mxu0
    %v5653 = vadd.f32 %v5604, %v5652
    %v5654 = vpop.f32.mrf.mxu0
    %v5655 = vadd.f32 %v5606, %v5654
    %5656 = vdwg.mxu0
    %5657 = vmatpush.bf16.msra.mxu0 %v4020
    %5658 = vmatpush.bf16.msra.mxu0 %v4017
    %5659 = vmatpush.bf16.msra.mxu0 %v4014
    %5660 = vmatpush.bf16.msra.mxu0 %v4011
    %5661 = vmatpush.bf16.msra.mxu0 %v4008
    %5662 = vmatpush.bf16.msra.mxu0 %v4005
    %5663 = vmatpush.bf16.msra.mxu0 %v4002
    %5664 = vmatpush.bf16.msra.mxu0 %v3999
    %5665 = vmatmul.bf16.gmra.mxu0 %v2506
    %v5666 = vpop.f32.mrf.mxu0
    %v5667 = vadd.f32 %v5618, %v5666
    %v5668 = vpop.f32.mrf.mxu0
    %v5669 = vadd.f32 %v5620, %v5668
    %5670 = vmatmul.bf16.gmra.mxu0 %v2507
    %v5671 = vpop.f32.mrf.mxu0
    %v5672 = vadd.f32 %v5623, %v5671
    %v5673 = vpop.f32.mrf.mxu0
    %v5674 = vadd.f32 %v5625, %v5673
    %5675 = vmatmul.bf16.gmra.mxu0 %v2508
    %v5676 = vpop.f32.mrf.mxu0
    %v5677 = vadd.f32 %v5628, %v5676
    %v5678 = vpop.f32.mrf.mxu0
    %v5679 = vadd.f32 %v5630, %v5678
    %5680 = vmatmul.bf16.gmra.mxu0 %v2509
    %v5681 = vpop.f32.mrf.mxu0
    %v5682 = vadd.f32 %v5633, %v5681
    %v5683 = vpop.f32.mrf.mxu0
    %v5684 = vadd.f32 %v5635, %v5683
    %5685 = vmatmul.bf16.gmra.mxu0 %v2510
    %v5686 = vpop.f32.mrf.mxu0
    %v5687 = vadd.f32 %v5638, %v5686
    %v5688 = vpop.f32.mrf.mxu0
    %v5689 = vadd.f32 %v5640, %v5688
    %5690 = vmatmul.bf16.gmra.mxu0 %v2511
    %v5691 = vpop.f32.mrf.mxu0
    %v5692 = vadd.f32 %v5643, %v5691
    %v5693 = vpop.f32.mrf.mxu0
    %v5694 = vadd.f32 %v5645, %v5693
    %5695 = vmatmul.bf16.gmra.mxu0 %v2512
    %v5696 = vpop.f32.mrf.mxu0
    %v5697 = vadd.f32 %v5648, %v5696
    %v5698 = vpop.f32.mrf.mxu0
    %v5699 = vadd.f32 %v5650, %v5698
    %5700 = vmatmul.bf16.gmra.mxu0 %v2513
    %v5701 = vpop.f32.mrf.mxu0
    %v5702 = vadd.f32 %v5653, %v5701
    %v5703 = vpop.f32.mrf.mxu0
    %v5704 = vadd.f32 %v5655, %v5703
    %5705 = vdwg.mxu0
    %5706 = vmatpush.bf16.msra.mxu0 %v4044
    %5707 = vmatpush.bf16.msra.mxu0 %v4041
    %5708 = vmatpush.bf16.msra.mxu0 %v4038
    %5709 = vmatpush.bf16.msra.mxu0 %v4035
    %5710 = vmatpush.bf16.msra.mxu0 %v4032
    %5711 = vmatpush.bf16.msra.mxu0 %v4029
    %5712 = vmatpush.bf16.msra.mxu0 %v4026
    %5713 = vmatpush.bf16.msra.mxu0 %v4023
    %5714 = vmatmul.bf16.gmra.mxu0 %v2654
    %v5715 = vpop.f32.mrf.mxu0
    %v5716 = vadd.f32 %v5667, %v5715
    %v5717 = vpop.f32.mrf.mxu0
    %v5718 = vadd.f32 %v5669, %v5717
    %5719 = vmatmul.bf16.gmra.mxu0 %v2657
    %v5720 = vpop.f32.mrf.mxu0
    %v5721 = vadd.f32 %v5672, %v5720
    %v5722 = vpop.f32.mrf.mxu0
    %v5723 = vadd.f32 %v5674, %v5722
    %5724 = vmatmul.bf16.gmra.mxu0 %v2660
    %v5725 = vpop.f32.mrf.mxu0
    %v5726 = vadd.f32 %v5677, %v5725
    %v5727 = vpop.f32.mrf.mxu0
    %v5728 = vadd.f32 %v5679, %v5727
    %5729 = vmatmul.bf16.gmra.mxu0 %v2663
    %v5730 = vpop.f32.mrf.mxu0
    %v5731 = vadd.f32 %v5682, %v5730
    %v5732 = vpop.f32.mrf.mxu0
    %v5733 = vadd.f32 %v5684, %v5732
    %5734 = vmatmul.bf16.gmra.mxu0 %v2666
    %v5735 = vpop.f32.mrf.mxu0
    %v5736 = vadd.f32 %v5687, %v5735
    %v5737 = vpop.f32.mrf.mxu0
    %v5738 = vadd.f32 %v5689, %v5737
    %5739 = vmatmul.bf16.gmra.mxu0 %v2669
    %v5740 = vpop.f32.mrf.mxu0
    %v5741 = vadd.f32 %v5692, %v5740
    %v5742 = vpop.f32.mrf.mxu0
    %v5743 = vadd.f32 %v5694, %v5742
    %5744 = vmatmul.bf16.gmra.mxu0 %v2672
    %v5745 = vpop.f32.mrf.mxu0
    %v5746 = vadd.f32 %v5697, %v5745
    %v5747 = vpop.f32.mrf.mxu0
    %v5748 = vadd.f32 %v5699, %v5747
    %5749 = vmatmul.bf16.gmra.mxu0 %v2675
    %v5750 = vpop.f32.mrf.mxu0
    %v5751 = vadd.f32 %v5702, %v5750
    %v5752 = vpop.f32.mrf.mxu0
    %v5753 = vadd.f32 %v5704, %v5752
    %5754 = vdwg.mxu0
    %v5779 = vrot.slane %v4736, 2
    %v5780 = vrot.slane %v5226, 2
    %v5781 = vrot.slane %v5716, 2
    %v5782 = vrot.slane %v4741, 2
    %v5783 = vrot.slane %v5231, 2
    %v5784 = vrot.slane %v5721, 2
    %v5785 = vrot.slane %v4746, 2
    %v5786 = vrot.slane %v5236, 2
    %v5787 = vrot.slane %v5726, 2
    %v5788 = vrot.slane %v4751, 2
    %v5789 = vrot.slane %v5241, 2
    %v5790 = vrot.slane %v5731, 2
    %v5791 = vrot.slane %v4756, 2
    %v5792 = vrot.slane %v5246, 2
    %v5793 = vrot.slane %v5736, 2
    %v5794 = vrot.slane %v4761, 2
    %v5795 = vrot.slane %v5251, 2
    %v5796 = vrot.slane %v5741, 2
    %v5797 = vrot.slane %v4766, 2
    %v5798 = vrot.slane %v5256, 2
    %v5799 = vrot.slane %v5746, 2
    %v5800 = vrot.slane %v4771, 2
    %v5801 = vrot.slane %v5261, 2
    %v5802 = vrot.slane %v5751, 2
    %v5827 = vmax.f32 %v4736, %v5779
    %v5828 = vmax.f32 %v5226, %v5780
    %v5829 = vmax.f32 %v5716, %v5781
    %v5830 = vmax.f32 %v4741, %v5782
    %v5831 = vmax.f32 %v5231, %v5783
    %v5832 = vmax.f32 %v5721, %v5784
    %v5833 = vmax.f32 %v4746, %v5785
    %v5834 = vmax.f32 %v5236, %v5786
    %v5835 = vmax.f32 %v5726, %v5787
    %v5836 = vmax.f32 %v4751, %v5788
    %v5837 = vmax.f32 %v5241, %v5789
    %v5838 = vmax.f32 %v5731, %v5790
    %v5839 = vmax.f32 %v4756, %v5791
    %v5840 = vmax.f32 %v5246, %v5792
    %v5841 = vmax.f32 %v5736, %v5793
    %v5842 = vmax.f32 %v4761, %v5794
    %v5843 = vmax.f32 %v5251, %v5795
    %v5844 = vmax.f32 %v5741, %v5796
    %v5845 = vmax.f32 %v4766, %v5797
    %v5846 = vmax.f32 %v5256, %v5798
    %v5847 = vmax.f32 %v5746, %v5799
    %v5848 = vmax.f32 %v4771, %v5800
    %v5849 = vmax.f32 %v5261, %v5801
    %v5850 = vmax.f32 %v5751, %v5802
    %5875 = vrot.lane.b32.xlu0 %v5827, 88
    %v5876 = vpop.permute.xlu0 %5875
    %5877 = vrot.lane.b32.xlu0 %v5828, 88
    %v5878 = vpop.permute.xlu0 %5877
    %5879 = vrot.lane.b32.xlu0 %v5829, 88
    %v5880 = vpop.permute.xlu0 %5879
    %5881 = vrot.lane.b32.xlu0 %v5830, 88
    %v5882 = vpop.permute.xlu0 %5881
    %5883 = vrot.lane.b32.xlu0 %v5831, 88
    %v5884 = vpop.permute.xlu0 %5883
    %5885 = vrot.lane.b32.xlu0 %v5832, 88
    %v5886 = vpop.permute.xlu0 %5885
    %5887 = vrot.lane.b32.xlu0 %v5833, 88
    %v5888 = vpop.permute.xlu0 %5887
    %5889 = vrot.lane.b32.xlu0 %v5834, 88
    %v5890 = vpop.permute.xlu0 %5889
    %5891 = vrot.lane.b32.xlu0 %v5835, 88
    %v5892 = vpop.permute.xlu0 %5891
    %5893 = vrot.lane.b32.xlu0 %v5836, 88
    %v5894 = vpop.permute.xlu0 %5893
    %5895 = vrot.lane.b32.xlu0 %v5837, 88
    %v5896 = vpop.permute.xlu0 %5895
    %5897 = vrot.lane.b32.xlu0 %v5838, 88
    %v5898 = vpop.permute.xlu0 %5897
    %5899 = vrot.lane.b32.xlu0 %v5839, 88
    %v5900 = vpop.permute.xlu0 %5899
    %5901 = vrot.lane.b32.xlu0 %v5840, 88
    %v5902 = vpop.permute.xlu0 %5901
    %5903 = vrot.lane.b32.xlu0 %v5841, 88
    %v5904 = vpop.permute.xlu0 %5903
    %5905 = vrot.lane.b32.xlu0 %v5842, 88
    %v5906 = vpop.permute.xlu0 %5905
    %5907 = vrot.lane.b32.xlu0 %v5843, 88
    %v5908 = vpop.permute.xlu0 %5907
    %5909 = vrot.lane.b32.xlu0 %v5844, 88
    %v5910 = vpop.permute.xlu0 %5909
    %5911 = vrot.lane.b32.xlu0 %v5845, 88
    %v5912 = vpop.permute.xlu0 %5911
    %5913 = vrot.lane.b32.xlu0 %v5846, 88
    %v5914 = vpop.permute.xlu0 %5913
    %5915 = vrot.lane.b32.xlu0 %v5847, 88
    %v5916 = vpop.permute.xlu0 %5915
    %5917 = vrot.lane.b32.xlu0 %v5848, 88
    %v5918 = vpop.permute.xlu0 %5917
    %5919 = vrot.lane.b32.xlu0 %v5849, 88
    %v5920 = vpop.permute.xlu0 %5919
    %5921 = vrot.lane.b32.xlu0 %v5850, 88
    %v5922 = vpop.permute.xlu0 %5921
    %vm5923 = vcmask 719872
    %v5924 = vsel %vm5923, %v5876, %v5878
    %v5925 = vsel %vm5923, %v5878, %v5880
    %v5926 = vsel %vm5923, %v5882, %v5884
    %v5927 = vsel %vm5923, %v5884, %v5886
    %v5928 = vsel %vm5923, %v5888, %v5890
    %v5929 = vsel %vm5923, %v5890, %v5892
    %v5930 = vsel %vm5923, %v5894, %v5896
    %v5931 = vsel %vm5923, %v5896, %v5898
    %v5932 = vsel %vm5923, %v5900, %v5902
    %v5933 = vsel %vm5923, %v5902, %v5904
    %v5934 = vsel %vm5923, %v5906, %v5908
    %v5935 = vsel %vm5923, %v5908, %v5910
    %v5936 = vsel %vm5923, %v5912, %v5914
    %v5937 = vsel %vm5923, %v5914, %v5916
    %v5938 = vsel %vm5923, %v5918, %v5920
    %v5939 = vsel %vm5923, %v5920, %v5922
    %v5964 = vmax.f32 %v5827, %v5924
    %v5965 = vmax.f32 %v5828, %v5925
    %v5966 = vmax.f32 %v5829, %v5880
    %v5967 = vmax.f32 %v5830, %v5926
    %v5968 = vmax.f32 %v5831, %v5927
    %v5969 = vmax.f32 %v5832, %v5886
    %v5970 = vmax.f32 %v5833, %v5928
    %v5971 = vmax.f32 %v5834, %v5929
    %v5972 = vmax.f32 %v5835, %v5892
    %v5973 = vmax.f32 %v5836, %v5930
    %v5974 = vmax.f32 %v5837, %v5931
    %v5975 = vmax.f32 %v5838, %v5898
    %v5976 = vmax.f32 %v5839, %v5932
    %v5977 = vmax.f32 %v5840, %v5933
    %v5978 = vmax.f32 %v5841, %v5904
    %v5979 = vmax.f32 %v5842, %v5934
    %v5980 = vmax.f32 %v5843, %v5935
    %v5981 = vmax.f32 %v5844, %v5910
    %v5982 = vmax.f32 %v5845, %v5936
    %v5983 = vmax.f32 %v5846, %v5937
    %v5984 = vmax.f32 %v5847, %v5916
    %v5985 = vmax.f32 %v5848, %v5938
    %v5986 = vmax.f32 %v5849, %v5939
    %v5987 = vmax.f32 %v5850, %v5922
    %v5988 = vmax.f32 %v5964, 0.0
    %v5989 = vmax.f32 %v5965, 0.0
    %v5990 = vmax.f32 %v5966, 0.0
    %v5991 = vmax.f32 %v5967, 0.0
    %v5992 = vmax.f32 %v5968, 0.0
    %v5993 = vmax.f32 %v5969, 0.0
    %v5994 = vmax.f32 %v5970, 0.0
    %v5995 = vmax.f32 %v5971, 0.0
    %v5996 = vmax.f32 %v5972, 0.0
    %v5997 = vmax.f32 %v5973, 0.0
    %v5998 = vmax.f32 %v5974, 0.0
    %v5999 = vmax.f32 %v5975, 0.0
    %v6000 = vmax.f32 %v5976, 0.0
    %v6001 = vmax.f32 %v5977, 0.0
    %v6002 = vmax.f32 %v5978, 0.0
    %v6003 = vmax.f32 %v5979, 0.0
    %v6004 = vmax.f32 %v5980, 0.0
    %v6005 = vmax.f32 %v5981, 0.0
    %v6006 = vmax.f32 %v5982, 0.0
    %v6007 = vmax.f32 %v5983, 0.0
    %v6008 = vmax.f32 %v5984, 0.0
    %v6009 = vmax.f32 %v5985, 0.0
    %v6010 = vmax.f32 %v5986, 0.0
    %v6011 = vmax.f32 %v5987, 0.0
    %v6012 = vpack.c.bf16 %v5989, %v5988
    %v6013 = vpack.c.bf16 %v5990, %v5990
    %v6014 = vpack.c.bf16 %v5992, %v5991
    %v6015 = vpack.c.bf16 %v5993, %v5993
    %v6016 = vpack.c.bf16 %v5995, %v5994
    %v6017 = vpack.c.bf16 %v5996, %v5996
    %v6018 = vpack.c.bf16 %v5998, %v5997
    %v6019 = vpack.c.bf16 %v5999, %v5999
    %v6020 = vpack.c.bf16 %v6001, %v6000
    %v6021 = vpack.c.bf16 %v6002, %v6002
    %v6022 = vpack.c.bf16 %v6004, %v6003
    %v6023 = vpack.c.bf16 %v6005, %v6005
    %v6024 = vpack.c.bf16 %v6007, %v6006
    %v6025 = vpack.c.bf16 %v6008, %v6008
    %v6026 = vpack.c.bf16 %v6010, %v6009
    %v6027 = vpack.c.bf16 %v6011, %v6011
    %v6052 = vrot.slane %v4738, 2
    %v6053 = vrot.slane %v5228, 2
    %v6054 = vrot.slane %v5718, 2
    %v6055 = vrot.slane %v4743, 2
    %v6056 = vrot.slane %v5233, 2
    %v6057 = vrot.slane %v5723, 2
    %v6058 = vrot.slane %v4748, 2
    %v6059 = vrot.slane %v5238, 2
    %v6060 = vrot.slane %v5728, 2
    %v6061 = vrot.slane %v4753, 2
    %v6062 = vrot.slane %v5243, 2
    %v6063 = vrot.slane %v5733, 2
    %v6064 = vrot.slane %v4758, 2
    %v6065 = vrot.slane %v5248, 2
    %v6066 = vrot.slane %v5738, 2
    %v6067 = vrot.slane %v4763, 2
    %v6068 = vrot.slane %v5253, 2
    %v6069 = vrot.slane %v5743, 2
    %v6070 = vrot.slane %v4768, 2
    %v6071 = vrot.slane %v5258, 2
    %v6072 = vrot.slane %v5748, 2
    %v6073 = vrot.slane %v4773, 2
    %v6074 = vrot.slane %v5263, 2
    %v6075 = vrot.slane %v5753, 2
    %v6100 = vmax.f32 %v4738, %v6052
    %v6101 = vmax.f32 %v5228, %v6053
    %v6102 = vmax.f32 %v5718, %v6054
    %v6103 = vmax.f32 %v4743, %v6055
    %v6104 = vmax.f32 %v5233, %v6056
    %v6105 = vmax.f32 %v5723, %v6057
    %v6106 = vmax.f32 %v4748, %v6058
    %v6107 = vmax.f32 %v5238, %v6059
    %v6108 = vmax.f32 %v5728, %v6060
    %v6109 = vmax.f32 %v4753, %v6061
    %v6110 = vmax.f32 %v5243, %v6062
    %v6111 = vmax.f32 %v5733, %v6063
    %v6112 = vmax.f32 %v4758, %v6064
    %v6113 = vmax.f32 %v5248, %v6065
    %v6114 = vmax.f32 %v5738, %v6066
    %v6115 = vmax.f32 %v4763, %v6067
    %v6116 = vmax.f32 %v5253, %v6068
    %v6117 = vmax.f32 %v5743, %v6069
    %v6118 = vmax.f32 %v4768, %v6070
    %v6119 = vmax.f32 %v5258, %v6071
    %v6120 = vmax.f32 %v5748, %v6072
    %v6121 = vmax.f32 %v4773, %v6073
    %v6122 = vmax.f32 %v5263, %v6074
    %v6123 = vmax.f32 %v5753, %v6075
    %6148 = vrot.lane.b32.xlu0 %v6100, 88
    %v6149 = vpop.permute.xlu0 %6148
    %6150 = vrot.lane.b32.xlu0 %v6101, 88
    %v6151 = vpop.permute.xlu0 %6150
    %6152 = vrot.lane.b32.xlu0 %v6102, 88
    %v6153 = vpop.permute.xlu0 %6152
    %6154 = vrot.lane.b32.xlu0 %v6103, 88
    %v6155 = vpop.permute.xlu0 %6154
    %6156 = vrot.lane.b32.xlu0 %v6104, 88
    %v6157 = vpop.permute.xlu0 %6156
    %6158 = vrot.lane.b32.xlu0 %v6105, 88
    %v6159 = vpop.permute.xlu0 %6158
    %6160 = vrot.lane.b32.xlu0 %v6106, 88
    %v6161 = vpop.permute.xlu0 %6160
    %6162 = vrot.lane.b32.xlu0 %v6107, 88
    %v6163 = vpop.permute.xlu0 %6162
    %6164 = vrot.lane.b32.xlu0 %v6108, 88
    %v6165 = vpop.permute.xlu0 %6164
    %6166 = vrot.lane.b32.xlu0 %v6109, 88
    %v6167 = vpop.permute.xlu0 %6166
    %6168 = vrot.lane.b32.xlu0 %v6110, 88
    %v6169 = vpop.permute.xlu0 %6168
    %6170 = vrot.lane.b32.xlu0 %v6111, 88
    %v6171 = vpop.permute.xlu0 %6170
    %6172 = vrot.lane.b32.xlu0 %v6112, 88
    %v6173 = vpop.permute.xlu0 %6172
    %6174 = vrot.lane.b32.xlu0 %v6113, 88
    %v6175 = vpop.permute.xlu0 %6174
    %6176 = vrot.lane.b32.xlu0 %v6114, 88
    %v6177 = vpop.permute.xlu0 %6176
    %6178 = vrot.lane.b32.xlu0 %v6115, 88
    %v6179 = vpop.permute.xlu0 %6178
    %6180 = vrot.lane.b32.xlu0 %v6116, 88
    %v6181 = vpop.permute.xlu0 %6180
    %6182 = vrot.lane.b32.xlu0 %v6117, 88
    %v6183 = vpop.permute.xlu0 %6182
    %6184 = vrot.lane.b32.xlu0 %v6118, 88
    %v6185 = vpop.permute.xlu0 %6184
    %6186 = vrot.lane.b32.xlu0 %v6119, 88
    %v6187 = vpop.permute.xlu0 %6186
    %6188 = vrot.lane.b32.xlu0 %v6120, 88
    %v6189 = vpop.permute.xlu0 %6188
    %6190 = vrot.lane.b32.xlu0 %v6121, 88
    %v6191 = vpop.permute.xlu0 %6190
    %6192 = vrot.lane.b32.xlu0 %v6122, 88
    %v6193 = vpop.permute.xlu0 %6192
    %6194 = vrot.lane.b32.xlu0 %v6123, 88
    %v6195 = vpop.permute.xlu0 %6194
    %v6196 = vsel %vm5923, %v6149, %v6151
    %v6197 = vsel %vm5923, %v6151, %v6153
    %v6198 = vsel %vm5923, %v6155, %v6157
    %v6199 = vsel %vm5923, %v6157, %v6159
    %v6200 = vsel %vm5923, %v6161, %v6163
    %v6201 = vsel %vm5923, %v6163, %v6165
    %v6202 = vsel %vm5923, %v6167, %v6169
    %v6203 = vsel %vm5923, %v6169, %v6171
    %v6204 = vsel %vm5923, %v6173, %v6175
    %v6205 = vsel %vm5923, %v6175, %v6177
    %v6206 = vsel %vm5923, %v6179, %v6181
    %v6207 = vsel %vm5923, %v6181, %v6183
    %v6208 = vsel %vm5923, %v6185, %v6187
    %v6209 = vsel %vm5923, %v6187, %v6189
    %v6210 = vsel %vm5923, %v6191, %v6193
    %v6211 = vsel %vm5923, %v6193, %v6195
    %v6236 = vmax.f32 %v6100, %v6196
    %v6237 = vmax.f32 %v6101, %v6197
    %v6238 = vmax.f32 %v6102, %v6153
    %v6239 = vmax.f32 %v6103, %v6198
    %v6240 = vmax.f32 %v6104, %v6199
    %v6241 = vmax.f32 %v6105, %v6159
    %v6242 = vmax.f32 %v6106, %v6200
    %v6243 = vmax.f32 %v6107, %v6201
    %v6244 = vmax.f32 %v6108, %v6165
    %v6245 = vmax.f32 %v6109, %v6202
    %v6246 = vmax.f32 %v6110, %v6203
    %v6247 = vmax.f32 %v6111, %v6171
    %v6248 = vmax.f32 %v6112, %v6204
    %v6249 = vmax.f32 %v6113, %v6205
    %v6250 = vmax.f32 %v6114, %v6177
    %v6251 = vmax.f32 %v6115, %v6206
    %v6252 = vmax.f32 %v6116, %v6207
    %v6253 = vmax.f32 %v6117, %v6183
    %v6254 = vmax.f32 %v6118, %v6208
    %v6255 = vmax.f32 %v6119, %v6209
    %v6256 = vmax.f32 %v6120, %v6189
    %v6257 = vmax.f32 %v6121, %v6210
    %v6258 = vmax.f32 %v6122, %v6211
    %v6259 = vmax.f32 %v6123, %v6195
    %v6260 = vmax.f32 %v6236, 0.0
    %v6261 = vmax.f32 %v6237, 0.0
    %v6262 = vmax.f32 %v6238, 0.0
    %v6263 = vmax.f32 %v6239, 0.0
    %v6264 = vmax.f32 %v6240, 0.0
    %v6265 = vmax.f32 %v6241, 0.0
    %v6266 = vmax.f32 %v6242, 0.0
    %v6267 = vmax.f32 %v6243, 0.0
    %v6268 = vmax.f32 %v6244, 0.0
    %v6269 = vmax.f32 %v6245, 0.0
    %v6270 = vmax.f32 %v6246, 0.0
    %v6271 = vmax.f32 %v6247, 0.0
    %v6272 = vmax.f32 %v6248, 0.0
    %v6273 = vmax.f32 %v6249, 0.0
    %v6274 = vmax.f32 %v6250, 0.0
    %v6275 = vmax.f32 %v6251, 0.0
    %v6276 = vmax.f32 %v6252, 0.0
    %v6277 = vmax.f32 %v6253, 0.0
    %v6278 = vmax.f32 %v6254, 0.0
    %v6279 = vmax.f32 %v6255, 0.0
    %v6280 = vmax.f32 %v6256, 0.0
    %v6281 = vmax.f32 %v6257, 0.0
    %v6282 = vmax.f32 %v6258, 0.0
    %v6283 = vmax.f32 %v6259, 0.0
    %v6284 = vpack.c.bf16 %v6261, %v6260
    %v6285 = vpack.c.bf16 %v6262, %v6262
    %v6286 = vpack.c.bf16 %v6264, %v6263
    %v6287 = vpack.c.bf16 %v6265, %v6265
    %v6288 = vpack.c.bf16 %v6267, %v6266
    %v6289 = vpack.c.bf16 %v6268, %v6268
    %v6290 = vpack.c.bf16 %v6270, %v6269
    %v6291 = vpack.c.bf16 %v6271, %v6271
    %v6292 = vpack.c.bf16 %v6273, %v6272
    %v6293 = vpack.c.bf16 %v6274, %v6274
    %v6294 = vpack.c.bf16 %v6276, %v6275
    %v6295 = vpack.c.bf16 %v6277, %v6277
    %v6296 = vpack.c.bf16 %v6279, %v6278
    %v6297 = vpack.c.bf16 %v6280, %v6280
    %v6298 = vpack.c.bf16 %v6282, %v6281
    %v6299 = vpack.c.bf16 %v6283, %v6283
    %v6316 = vunpack.c.l.b16 %v6012
    %v6317 = vunpack.c.h.b16 %v6012
    %v6318 = vunpack.c.l.b16 %v6013
    %v6319 = vunpack.c.l.b16 %v6014
    %v6320 = vunpack.c.h.b16 %v6014
    %v6321 = vunpack.c.l.b16 %v6015
    %v6322 = vunpack.c.l.b16 %v6016
    %v6323 = vunpack.c.h.b16 %v6016
    %v6324 = vunpack.c.l.b16 %v6017
    %v6325 = vunpack.c.l.b16 %v6018
    %v6326 = vunpack.c.h.b16 %v6018
    %v6327 = vunpack.c.l.b16 %v6019
    %v6328 = vunpack.c.l.b16 %v6020
    %v6329 = vunpack.c.h.b16 %v6020
    %v6330 = vunpack.c.l.b16 %v6021
    %v6331 = vunpack.c.l.b16 %v6022
    %v6332 = vunpack.c.h.b16 %v6022
    %v6333 = vunpack.c.l.b16 %v6023
    %v6334 = vunpack.c.l.b16 %v6024
    %v6335 = vunpack.c.h.b16 %v6024
    %v6336 = vunpack.c.l.b16 %v6025
    %v6337 = vunpack.c.l.b16 %v6026
    %v6338 = vunpack.c.h.b16 %v6026
    %v6339 = vunpack.c.l.b16 %v6027
    %v6340 = vpack.c.b16 %v6316, %v6316
    %v6341 = vpack.c.b16 %v6317, %v6317
    %v6342 = vpack.c.b16 %v6318, %v6318
    %v6343 = vpack.c.b16 %v6319, %v6319
    %v6344 = vpack.c.b16 %v6320, %v6320
    %v6345 = vpack.c.b16 %v6321, %v6321
    %v6346 = vpack.c.b16 %v6322, %v6322
    %v6347 = vpack.c.b16 %v6323, %v6323
    %v6348 = vpack.c.b16 %v6324, %v6324
    %v6349 = vpack.c.b16 %v6325, %v6325
    %v6350 = vpack.c.b16 %v6326, %v6326
    %v6351 = vpack.c.b16 %v6327, %v6327
    %v6352 = vpack.c.b16 %v6328, %v6328
    %v6353 = vpack.c.b16 %v6329, %v6329
    %v6354 = vpack.c.b16 %v6330, %v6330
    %v6355 = vpack.c.b16 %v6331, %v6331
    %v6356 = vpack.c.b16 %v6332, %v6332
    %v6357 = vpack.c.b16 %v6333, %v6333
    %v6358 = vpack.c.b16 %v6334, %v6334
    %v6359 = vpack.c.b16 %v6335, %v6335
    %v6360 = vpack.c.b16 %v6336, %v6336
    %v6361 = vpack.c.b16 %v6337, %v6337
    %v6362 = vpack.c.b16 %v6338, %v6338
    %v6363 = vpack.c.b16 %v6339, %v6339
    %v6364 = vunpack.c.l.b16 %v6340
    %v6365 = vunpack.c.l.b16 %v6341
    %v6366 = vunpack.c.l.b16 %v6342
    %v6367 = vunpack.c.l.b16 %v6343
    %v6368 = vunpack.c.l.b16 %v6344
    %v6369 = vunpack.c.l.b16 %v6345
    %v6370 = vunpack.c.l.b16 %v6346
    %v6371 = vunpack.c.l.b16 %v6347
    %v6372 = vunpack.c.l.b16 %v6348
    %v6373 = vunpack.c.l.b16 %v6349
    %v6374 = vunpack.c.l.b16 %v6350
    %v6375 = vunpack.c.l.b16 %v6351
    %v6376 = vunpack.c.l.b16 %v6352
    %v6377 = vunpack.c.l.b16 %v6353
    %v6378 = vunpack.c.l.b16 %v6354
    %v6379 = vunpack.c.l.b16 %v6355
    %v6380 = vunpack.c.l.b16 %v6356
    %v6381 = vunpack.c.l.b16 %v6357
    %v6382 = vunpack.c.l.b16 %v6358
    %v6383 = vunpack.c.l.b16 %v6359
    %v6384 = vunpack.c.l.b16 %v6360
    %v6385 = vunpack.c.l.b16 %v6361
    %v6386 = vunpack.c.l.b16 %v6362
    %v6387 = vunpack.c.l.b16 %v6363
    %v6388 = vrot.slane %v6367, 7
    %vm6389 = vcmask 1041409
    %v6390 = vsel %vm6389, %v6388, %v6364
    %v6391 = vrot.slane %v6370, 6
    %vm6392 = vcmask 1042434
    %v6393 = vsel %vm6392, %v6391, %v6390
    %v6394 = vrot.slane %v6373, 5
    %vm6395 = vcmask 1043459
    %v6396 = vsel %vm6395, %v6394, %v6393
    %v6397 = vrot.slane %v6376, 4
    %vm6398 = vcmask 1044484
    %v6399 = vsel %vm6398, %v6397, %v6396
    %v6400 = vrot.slane %v6379, 3
    %vm6401 = vcmask 1045509
    %v6402 = vsel %vm6401, %v6400, %v6399
    %v6403 = vrot.slane %v6382, 2
    %vm6404 = vcmask 1046534
    %v6405 = vsel %vm6404, %v6403, %v6402
    %v6406 = vrot.slane %v6385, 1
    %vm6407 = vcmask 1047559
    %v6408 = vsel %vm6407, %v6406, %v6405
    %v6409 = vrot.slane %v6368, 7
    %v6410 = vsel %vm6389, %v6409, %v6365
    %v6411 = vrot.slane %v6371, 6
    %v6412 = vsel %vm6392, %v6411, %v6410
    %v6413 = vrot.slane %v6374, 5
    %v6414 = vsel %vm6395, %v6413, %v6412
    %v6415 = vrot.slane %v6377, 4
    %v6416 = vsel %vm6398, %v6415, %v6414
    %v6417 = vrot.slane %v6380, 3
    %v6418 = vsel %vm6401, %v6417, %v6416
    %v6419 = vrot.slane %v6383, 2
    %v6420 = vsel %vm6404, %v6419, %v6418
    %v6421 = vrot.slane %v6386, 1
    %v6422 = vsel %vm6407, %v6421, %v6420
    %v6423 = vrot.slane %v6369, 7
    %v6424 = vsel %vm6389, %v6423, %v6366
    %v6425 = vrot.slane %v6372, 6
    %v6426 = vsel %vm6392, %v6425, %v6424
    %v6427 = vrot.slane %v6375, 5
    %v6428 = vsel %vm6395, %v6427, %v6426
    %v6429 = vrot.slane %v6378, 4
    %v6430 = vsel %vm6398, %v6429, %v6428
    %v6431 = vrot.slane %v6381, 3
    %v6432 = vsel %vm6401, %v6431, %v6430
    %v6433 = vrot.slane %v6384, 2
    %v6434 = vsel %vm6404, %v6433, %v6432
    %v6435 = vrot.slane %v6387, 1
    %v6436 = vsel %vm6407, %v6435, %v6434
    %v6437 = vpack.c.b16 %v6408, %v6408
    %v6438 = vpack.c.b16 %v6422, %v6422
    %v6439 = vpack.c.b16 %v6436, %v6436
    %v6442 = vrot.slane %v6364, 4
    %v6443 = vrot.slane %v6367, 3
    %v6444 = vsel %vm6389, %v6443, %v6442
    %v6445 = vrot.slane %v6370, 2
    %v6446 = vsel %vm6392, %v6445, %v6444
    %v6447 = vrot.slane %v6373, 1
    %v6448 = vsel %vm6395, %v6447, %v6446
    %v6449 = vsel %vm6398, %v6376, %v6448
    %v6450 = vrot.slane %v6379, 7
    %v6451 = vsel %vm6401, %v6450, %v6449
    %v6452 = vrot.slane %v6382, 6
    %v6453 = vsel %vm6404, %v6452, %v6451
    %v6454 = vrot.slane %v6385, 5
    %v6455 = vsel %vm6407, %v6454, %v6453
    %v6456 = vrot.slane %v6365, 4
    %v6457 = vrot.slane %v6368, 3
    %v6458 = vsel %vm6389, %v6457, %v6456
    %v6459 = vrot.slane %v6371, 2
    %v6460 = vsel %vm6392, %v6459, %v6458
    %v6461 = vrot.slane %v6374, 1
    %v6462 = vsel %vm6395, %v6461, %v6460
    %v6463 = vsel %vm6398, %v6377, %v6462
    %v6464 = vrot.slane %v6380, 7
    %v6465 = vsel %vm6401, %v6464, %v6463
    %v6466 = vrot.slane %v6383, 6
    %v6467 = vsel %vm6404, %v6466, %v6465
    %v6468 = vrot.slane %v6386, 5
    %v6469 = vsel %vm6407, %v6468, %v6467
    %v6470 = vrot.slane %v6366, 4
    %v6471 = vrot.slane %v6369, 3
    %v6472 = vsel %vm6389, %v6471, %v6470
    %v6473 = vrot.slane %v6372, 2
    %v6474 = vsel %vm6392, %v6473, %v6472
    %v6475 = vrot.slane %v6375, 1
    %v6476 = vsel %vm6395, %v6475, %v6474
    %v6477 = vsel %vm6398, %v6378, %v6476
    %v6478 = vrot.slane %v6381, 7
    %v6479 = vsel %vm6401, %v6478, %v6477
    %v6480 = vrot.slane %v6384, 6
    %v6481 = vsel %vm6404, %v6480, %v6479
    %v6482 = vrot.slane %v6387, 5
    %v6483 = vsel %vm6407, %v6482, %v6481
    %v6484 = vpack.c.b16 %v6455, %v6455
    %v6485 = vpack.c.b16 %v6469, %v6469
    %v6486 = vpack.c.b16 %v6483, %v6483
    %6487 = vrot.lane.b32.xlu0 %v6484, 24
    %v6488 = vpop.permute.xlu0 %6487
    %6489 = vrot.lane.b32.xlu0 %v6485, 24
    %v6490 = vpop.permute.xlu0 %6489
    %6491 = vrot.lane.b32.xlu0 %v6486, 24
    %v6492 = vpop.permute.xlu0 %6491
    %vm6493 = vcmask 195584
    %v6494 = vsel %vm6493, %v6488, %v6490
    %v6495 = vsel %vm6493, %v6490, %v6492
    %v6513 = vunpack.c.l.b16 %v6284
    %v6514 = vunpack.c.h.b16 %v6284
    %v6515 = vunpack.c.l.b16 %v6285
    %v6516 = vunpack.c.l.b16 %v6286
    %v6517 = vunpack.c.h.b16 %v6286
    %v6518 = vunpack.c.l.b16 %v6287
    %v6519 = vunpack.c.l.b16 %v6288
    %v6520 = vunpack.c.h.b16 %v6288
    %v6521 = vunpack.c.l.b16 %v6289
    %v6522 = vunpack.c.l.b16 %v6290
    %v6523 = vunpack.c.h.b16 %v6290
    %v6524 = vunpack.c.l.b16 %v6291
    %v6525 = vunpack.c.l.b16 %v6292
    %v6526 = vunpack.c.h.b16 %v6292
    %v6527 = vunpack.c.l.b16 %v6293
    %v6528 = vunpack.c.l.b16 %v6294
    %v6529 = vunpack.c.h.b16 %v6294
    %v6530 = vunpack.c.l.b16 %v6295
    %v6531 = vunpack.c.l.b16 %v6296
    %v6532 = vunpack.c.h.b16 %v6296
    %v6533 = vunpack.c.l.b16 %v6297
    %v6534 = vunpack.c.l.b16 %v6298
    %v6535 = vunpack.c.h.b16 %v6298
    %v6536 = vunpack.c.l.b16 %v6299
    %v6537 = vpack.c.b16 %v6513, %v6513
    %v6538 = vpack.c.b16 %v6514, %v6514
    %v6539 = vpack.c.b16 %v6515, %v6515
    %v6540 = vpack.c.b16 %v6516, %v6516
    %v6541 = vpack.c.b16 %v6517, %v6517
    %v6542 = vpack.c.b16 %v6518, %v6518
    %v6543 = vpack.c.b16 %v6519, %v6519
    %v6544 = vpack.c.b16 %v6520, %v6520
    %v6545 = vpack.c.b16 %v6521, %v6521
    %v6546 = vpack.c.b16 %v6522, %v6522
    %v6547 = vpack.c.b16 %v6523, %v6523
    %v6548 = vpack.c.b16 %v6524, %v6524
    %v6549 = vpack.c.b16 %v6525, %v6525
    %v6550 = vpack.c.b16 %v6526, %v6526
    %v6551 = vpack.c.b16 %v6527, %v6527
    %v6552 = vpack.c.b16 %v6528, %v6528
    %v6553 = vpack.c.b16 %v6529, %v6529
    %v6554 = vpack.c.b16 %v6530, %v6530
    %v6555 = vpack.c.b16 %v6531, %v6531
    %v6556 = vpack.c.b16 %v6532, %v6532
    %v6557 = vpack.c.b16 %v6533, %v6533
    %v6558 = vpack.c.b16 %v6534, %v6534
    %v6559 = vpack.c.b16 %v6535, %v6535
    %v6560 = vpack.c.b16 %v6536, %v6536
    %v6561 = vunpack.c.l.b16 %v6537
    %v6562 = vunpack.c.l.b16 %v6538
    %v6563 = vunpack.c.l.b16 %v6539
    %v6564 = vunpack.c.l.b16 %v6540
    %v6565 = vunpack.c.l.b16 %v6541
    %v6566 = vunpack.c.l.b16 %v6542
    %v6567 = vunpack.c.l.b16 %v6543
    %v6568 = vunpack.c.l.b16 %v6544
    %v6569 = vunpack.c.l.b16 %v6545
    %v6570 = vunpack.c.l.b16 %v6546
    %v6571 = vunpack.c.l.b16 %v6547
    %v6572 = vunpack.c.l.b16 %v6548
    %v6573 = vunpack.c.l.b16 %v6549
    %v6574 = vunpack.c.l.b16 %v6550
    %v6575 = vunpack.c.l.b16 %v6551
    %v6576 = vunpack.c.l.b16 %v6552
    %v6577 = vunpack.c.l.b16 %v6553
    %v6578 = vunpack.c.l.b16 %v6554
    %v6579 = vunpack.c.l.b16 %v6555
    %v6580 = vunpack.c.l.b16 %v6556
    %v6581 = vunpack.c.l.b16 %v6557
    %v6582 = vunpack.c.l.b16 %v6558
    %v6583 = vunpack.c.l.b16 %v6559
    %v6584 = vunpack.c.l.b16 %v6560
    %v6585 = vrot.slane %v6564, 7
    %v6586 = vsel %vm6389, %v6585, %v6561
    %v6587 = vrot.slane %v6567, 6
    %v6588 = vsel %vm6392, %v6587, %v6586
    %v6589 = vrot.slane %v6570, 5
    %v6590 = vsel %vm6395, %v6589, %v6588
    %v6591 = vrot.slane %v6573, 4
    %v6592 = vsel %vm6398, %v6591, %v6590
    %v6593 = vrot.slane %v6576, 3
    %v6594 = vsel %vm6401, %v6593, %v6592
    %v6595 = vrot.slane %v6579, 2
    %v6596 = vsel %vm6404, %v6595, %v6594
    %v6597 = vrot.slane %v6582, 1
    %v6598 = vsel %vm6407, %v6597, %v6596
    %v6599 = vrot.slane %v6565, 7
    %v6600 = vsel %vm6389, %v6599, %v6562
    %v6601 = vrot.slane %v6568, 6
    %v6602 = vsel %vm6392, %v6601, %v6600
    %v6603 = vrot.slane %v6571, 5
    %v6604 = vsel %vm6395, %v6603, %v6602
    %v6605 = vrot.slane %v6574, 4
    %v6606 = vsel %vm6398, %v6605, %v6604
    %v6607 = vrot.slane %v6577, 3
    %v6608 = vsel %vm6401, %v6607, %v6606
    %v6609 = vrot.slane %v6580, 2
    %v6610 = vsel %vm6404, %v6609, %v6608
    %v6611 = vrot.slane %v6583, 1
    %v6612 = vsel %vm6407, %v6611, %v6610
    %v6613 = vrot.slane %v6566, 7
    %v6614 = vsel %vm6389, %v6613, %v6563
    %v6615 = vrot.slane %v6569, 6
    %v6616 = vsel %vm6392, %v6615, %v6614
    %v6617 = vrot.slane %v6572, 5
    %v6618 = vsel %vm6395, %v6617, %v6616
    %v6619 = vrot.slane %v6575, 4
    %v6620 = vsel %vm6398, %v6619, %v6618
    %v6621 = vrot.slane %v6578, 3
    %v6622 = vsel %vm6401, %v6621, %v6620
    %v6623 = vrot.slane %v6581, 2
    %v6624 = vsel %vm6404, %v6623, %v6622
    %v6625 = vrot.slane %v6584, 1
    %v6626 = vsel %vm6407, %v6625, %v6624
    %v6627 = vpack.c.b16 %v6598, %v6598
    %v6628 = vpack.c.b16 %v6612, %v6612
    %v6629 = vpack.c.b16 %v6626, %v6626
    %6630 = vrot.lane.b32.xlu0 %v6627, 48
    %v6631 = vpop.permute.xlu0 %6630
    %6632 = vrot.lane.b32.xlu0 %v6628, 48
    %v6633 = vpop.permute.xlu0 %6632
    %6634 = vrot.lane.b32.xlu0 %v6629, 48
    %v6635 = vpop.permute.xlu0 %6634
    %vm6636 = vcmask 392192
    %v6637 = vsel %vm6636, %v6631, %v6633
    %v6638 = vsel %vm6636, %v6633, %v6635
    %v6640 = vrot.slane %v6561, 4
    %v6641 = vrot.slane %v6564, 3
    %v6642 = vsel %vm6389, %v6641, %v6640
    %v6643 = vrot.slane %v6567, 2
    %v6644 = vsel %vm6392, %v6643, %v6642
    %v6645 = vrot.slane %v6570, 1
    %v6646 = vsel %vm6395, %v6645, %v6644
    %v6647 = vsel %vm6398, %v6573, %v6646
    %v6648 = vrot.slane %v6576, 7
    %v6649 = vsel %vm6401, %v6648, %v6647
    %v6650 = vrot.slane %v6579, 6
    %v6651 = vsel %vm6404, %v6650, %v6649
    %v6652 = vrot.slane %v6582, 5
    %v6653 = vsel %vm6407, %v6652, %v6651
    %v6654 = vrot.slane %v6562, 4
    %v6655 = vrot.slane %v6565, 3
    %v6656 = vsel %vm6389, %v6655, %v6654
    %v6657 = vrot.slane %v6568, 2
    %v6658 = vsel %vm6392, %v6657, %v6656
    %v6659 = vrot.slane %v6571, 1
    %v6660 = vsel %vm6395, %v6659, %v6658
    %v6661 = vsel %vm6398, %v6574, %v6660
    %v6662 = vrot.slane %v6577, 7
    %v6663 = vsel %vm6401, %v6662, %v6661
    %v6664 = vrot.slane %v6580, 6
    %v6665 = vsel %vm6404, %v6664, %v6663
    %v6666 = vrot.slane %v6583, 5
    %v6667 = vsel %vm6407, %v6666, %v6665
    %v6668 = vrot.slane %v6563, 4
    %v6669 = vrot.slane %v6566, 3
    %v6670 = vsel %vm6389, %v6669, %v6668
    %v6671 = vrot.slane %v6569, 2
    %v6672 = vsel %vm6392, %v6671, %v6670
    %v6673 = vrot.slane %v6572, 1
    %v6674 = vsel %vm6395, %v6673, %v6672
    %v6675 = vsel %vm6398, %v6575, %v6674
    %v6676 = vrot.slane %v6578, 7
    %v6677 = vsel %vm6401, %v6676, %v6675
    %v6678 = vrot.slane %v6581, 6
    %v6679 = vsel %vm6404, %v6678, %v6677
    %v6680 = vrot.slane %v6584, 5
    %v6681 = vsel %vm6407, %v6680, %v6679
    %v6682 = vpack.c.b16 %v6653, %v6653
    %v6683 = vpack.c.b16 %v6667, %v6667
    %v6684 = vpack.c.b16 %v6681, %v6681
    %6685 = vrot.lane.b32.xlu0 %v6682, 72
    %v6686 = vpop.permute.xlu0 %6685
    %6687 = vrot.lane.b32.xlu0 %v6683, 72
    %v6688 = vpop.permute.xlu0 %6687
    %6689 = vrot.lane.b32.xlu0 %v6684, 72
    %v6690 = vpop.permute.xlu0 %6689
    %vm6691 = vcmask 588800
    %v6692 = vsel %vm6691, %v6686, %v6688
    %v6693 = vsel %vm6691, %v6688, %v6690
    %vm6695 = vcmask 195584
    %v6698 = vsel %vm6695, %v6439, %v6488
    %v6702 = vsel %vm2652, %v6495, %v6631
    %vm6704 = vcmask 588800
    %v6707 = vsel %vm6704, %v6638, %v6686
    %v6709 = vld [vmem:[%s5] sm:$0xf]
    %v6710 = vld [vmem:[%s5 + $0x4] sm:$0xf]
    %v6711 = vld [vmem:[%s5 + $0x8] sm:$0xf]
    %v6712 = vld [vmem:[%s5 + $0xc] sm:$0xf]
    %v6713 = vld [vmem:[%s5 + $0x10] sm:$0xf]
    %v6714 = vld [vmem:[%s5 + $0x14] sm:$0xf]
    %v6715 = vld [vmem:[%s5 + $0x18] sm:$0xf]
    %v6716 = vld [vmem:[%s5 + $0x1c] sm:$0xf]
    %v6717 = vld [vmem:[%s5 + $0x20] sm:$0xf]
    %v6718 = vld [vmem:[%s5 + $0x24] sm:$0xf]
    %v6719 = vld [vmem:[%s5 + $0x28] sm:$0xf]
    %v6720 = vld [vmem:[%s5 + $0x2c] sm:$0xf]
    %v6721 = vld [vmem:[%s5 + $0x30] sm:$0xf]
    %v6722 = vld [vmem:[%s5 + $0x34] sm:$0xf]
    %v6723 = vld [vmem:[%s5 + $0x38] sm:$0xf]
    %v6724 = vld [vmem:[%s5 + $0x3c] sm:$0xf]
    %v6725 = vld [vmem:[%s5 + $0x40] sm:$0xf]
    %v6726 = vld [vmem:[%s5 + $0x44] sm:$0xf]
    %v6727 = vld [vmem:[%s5 + $0x48] sm:$0xf]
    %v6728 = vld [vmem:[%s5 + $0x4c] sm:$0xf]
    %v6729 = vld [vmem:[%s5 + $0x50] sm:$0xf]
    %v6730 = vld [vmem:[%s5 + $0x54] sm:$0xf]
    %v6731 = vld [vmem:[%s5 + $0x58] sm:$0xf]
    %v6732 = vld [vmem:[%s5 + $0x5c] sm:$0xf]
    %v6733 = vld [vmem:[%s5 + $0x60] sm:$0xf]
    %v6734 = vld [vmem:[%s5 + $0x64] sm:$0xf]
    %v6735 = vld [vmem:[%s5 + $0x68] sm:$0xf]
    %v6736 = vld [vmem:[%s5 + $0x6c] sm:$0xf]
    %v6737 = vld [vmem:[%s5 + $0x70] sm:$0xf]
    %v6738 = vld [vmem:[%s5 + $0x74] sm:$0xf]
    %v6739 = vld [vmem:[%s5 + $0x78] sm:$0xf]
    %v6740 = vld [vmem:[%s5 + $0x7c] sm:$0xf]
    %v6741 = vld [vmem:[%s5 + $0x80] sm:$0xf]
    %v6742 = vld [vmem:[%s5 + $0x84] sm:$0xf]
    %v6743 = vld [vmem:[%s5 + $0x88] sm:$0xf]
    %v6744 = vld [vmem:[%s5 + $0x8c] sm:$0xf]
    %v6745 = vld [vmem:[%s5 + $0x90] sm:$0xf]
    %v6746 = vld [vmem:[%s5 + $0x94] sm:$0xf]
    %v6747 = vld [vmem:[%s5 + $0x98] sm:$0xf]
    %v6748 = vld [vmem:[%s5 + $0x9c] sm:$0xf]
    %v6749 = vld [vmem:[%s5 + $0xa0] sm:$0xf]
    %v6750 = vld [vmem:[%s5 + $0xa4] sm:$0xf]
    %v6751 = vld [vmem:[%s5 + $0xa8] sm:$0xf]
    %v6752 = vld [vmem:[%s5 + $0xac] sm:$0xf]
    %v6753 = vld [vmem:[%s5 + $0xb0] sm:$0xf]
    %v6754 = vld [vmem:[%s5 + $0xb4] sm:$0xf]
    %v6755 = vld [vmem:[%s5 + $0xb8] sm:$0xf]
    %v6756 = vld [vmem:[%s5 + $0xbc] sm:$0xf]
    %v6757 = vld [vmem:[%s5 + $0xc0] sm:$0xf]
    %v6758 = vld [vmem:[%s5 + $0xc4] sm:$0xf]
    %v6759 = vld [vmem:[%s5 + $0xc8] sm:$0xf]
    %v6760 = vld [vmem:[%s5 + $0xcc] sm:$0xf]
    %v6761 = vld [vmem:[%s5 + $0xd0] sm:$0xf]
    %v6762 = vld [vmem:[%s5 + $0xd4] sm:$0xf]
    %v6763 = vld [vmem:[%s5 + $0xd8] sm:$0xf]
    %v6764 = vld [vmem:[%s5 + $0xdc] sm:$0xf]
    %v6765 = vld [vmem:[%s5 + $0xe0] sm:$0xf]
    %v6766 = vld [vmem:[%s5 + $0xe4] sm:$0xf]
    %v6767 = vld [vmem:[%s5 + $0xe8] sm:$0xf]
    %v6768 = vld [vmem:[%s5 + $0xec] sm:$0xf]
    %v6769 = vld [vmem:[%s5 + $0xf0] sm:$0xf]
    %v6770 = vld [vmem:[%s5 + $0xf4] sm:$0xf]
    %v6771 = vld [vmem:[%s5 + $0xf8] sm:$0xf]
    %v6772 = vld [vmem:[%s5 + $0xfc] sm:$0xf]
    %v6773 = vld [vmem:[%s5 + $0x100] sm:$0xf]
    %v6774 = vld [vmem:[%s5 + $0x104] sm:$0xf]
    %v6775 = vld [vmem:[%s5 + $0x108] sm:$0xf]
    %v6776 = vld [vmem:[%s5 + $0x10c] sm:$0xf]
    %v6777 = vld [vmem:[%s5 + $0x110] sm:$0xf]
    %v6778 = vld [vmem:[%s5 + $0x114] sm:$0xf]
    %v6779 = vld [vmem:[%s5 + $0x118] sm:$0xf]
    %v6780 = vld [vmem:[%s5 + $0x11c] sm:$0xf]
    %v6781 = vld [vmem:[%s5 + $0x120] sm:$0xf]
    %v6782 = vld [vmem:[%s5 + $0x124] sm:$0xf]
    %v6783 = vld [vmem:[%s5 + $0x128] sm:$0xf]
    %v6784 = vld [vmem:[%s5 + $0x12c] sm:$0xf]
    %v6785 = vld [vmem:[%s5 + $0x130] sm:$0xf]
    %v6786 = vld [vmem:[%s5 + $0x134] sm:$0xf]
    %v6787 = vld [vmem:[%s5 + $0x138] sm:$0xf]
    %v6788 = vld [vmem:[%s5 + $0x13c] sm:$0xf]
    %v6789 = vld [vmem:[%s5 + $0x140] sm:$0xf]
    %v6790 = vld [vmem:[%s5 + $0x144] sm:$0xf]
    %v6791 = vld [vmem:[%s5 + $0x148] sm:$0xf]
    %v6792 = vld [vmem:[%s5 + $0x14c] sm:$0xf]
    %v6793 = vld [vmem:[%s5 + $0x150] sm:$0xf]
    %v6794 = vld [vmem:[%s5 + $0x154] sm:$0xf]
    %v6795 = vld [vmem:[%s5 + $0x158] sm:$0xf]
    %v6796 = vld [vmem:[%s5 + $0x15c] sm:$0xf]
    %v6797 = vld [vmem:[%s5 + $0x160] sm:$0xf]
    %v6798 = vld [vmem:[%s5 + $0x164] sm:$0xf]
    %v6799 = vld [vmem:[%s5 + $0x168] sm:$0xf]
    %v6800 = vld [vmem:[%s5 + $0x16c] sm:$0xf]
    %v6801 = vld [vmem:[%s5 + $0x170] sm:$0xf]
    %v6802 = vld [vmem:[%s5 + $0x174] sm:$0xf]
    %v6803 = vld [vmem:[%s5 + $0x178] sm:$0xf]
    %v6804 = vld [vmem:[%s5 + $0x17c] sm:$0xf]
    %v6805 = vld [vmem:[%s5 + $0x180] sm:$0xf]
    %v6806 = vld [vmem:[%s5 + $0x184] sm:$0xf]
    %v6807 = vld [vmem:[%s5 + $0x188] sm:$0xf]
    %v6808 = vld [vmem:[%s5 + $0x18c] sm:$0xf]
    %v6809 = vld [vmem:[%s5 + $0x190] sm:$0xf]
    %v6810 = vld [vmem:[%s5 + $0x194] sm:$0xf]
    %v6811 = vld [vmem:[%s5 + $0x198] sm:$0xf]
    %v6812 = vld [vmem:[%s5 + $0x19c] sm:$0xf]
    %v6813 = vld [vmem:[%s5 + $0x1a0] sm:$0xf]
    %v6814 = vld [vmem:[%s5 + $0x1a4] sm:$0xf]
    %v6815 = vld [vmem:[%s5 + $0x1a8] sm:$0xf]
    %v6816 = vld [vmem:[%s5 + $0x1ac] sm:$0xf]
    %v6817 = vld [vmem:[%s5 + $0x1b0] sm:$0xf]
    %v6818 = vld [vmem:[%s5 + $0x1b4] sm:$0xf]
    %v6819 = vld [vmem:[%s5 + $0x1b8] sm:$0xf]
    %v6820 = vld [vmem:[%s5 + $0x1bc] sm:$0xf]
    %v6821 = vld [vmem:[%s5 + $0x1c0] sm:$0xf]
    %v6822 = vld [vmem:[%s5 + $0x1c4] sm:$0xf]
    %v6823 = vld [vmem:[%s5 + $0x1c8] sm:$0xf]
    %v6824 = vld [vmem:[%s5 + $0x1cc] sm:$0xf]
    %v6825 = vld [vmem:[%s5 + $0x1d0] sm:$0xf]
    %v6826 = vld [vmem:[%s5 + $0x1d4] sm:$0xf]
    %v6827 = vld [vmem:[%s5 + $0x1d8] sm:$0xf]
    %v6828 = vld [vmem:[%s5 + $0x1dc] sm:$0xf]
    %v6829 = vld [vmem:[%s5 + $0x1e0] sm:$0xf]
    %v6830 = vld [vmem:[%s5 + $0x1e4] sm:$0xf]
    %v6831 = vld [vmem:[%s5 + $0x1e8] sm:$0xf]
    %v6832 = vld [vmem:[%s5 + $0x1ec] sm:$0xf]
    %v6833 = vld [vmem:[%s5 + $0x1f0] sm:$0xf]
    %v6834 = vld [vmem:[%s5 + $0x1f4] sm:$0xf]
    %v6835 = vld [vmem:[%s5 + $0x1f8] sm:$0xf]
    %v6836 = vld [vmem:[%s5 + $0x1fc] sm:$0xf]
    %v6837 = vld [vmem:[%s5 + $0x200] sm:$0xf]
    %v6838 = vld [vmem:[%s5 + $0x204] sm:$0xf]
    %v6839 = vld [vmem:[%s5 + $0x208] sm:$0xf]
    %v6840 = vld [vmem:[%s5 + $0x20c] sm:$0xf]
    %v6841 = vld [vmem:[%s5 + $0x210] sm:$0xf]
    %v6842 = vld [vmem:[%s5 + $0x214] sm:$0xf]
    %v6843 = vld [vmem:[%s5 + $0x218] sm:$0xf]
    %v6844 = vld [vmem:[%s5 + $0x21c] sm:$0xf]
    %v6845 = vld [vmem:[%s5 + $0x220] sm:$0xf]
    %v6846 = vld [vmem:[%s5 + $0x224] sm:$0xf]
    %v6847 = vld [vmem:[%s5 + $0x228] sm:$0xf]
    %v6848 = vld [vmem:[%s5 + $0x22c] sm:$0xf]
    %v6849 = vld [vmem:[%s6] sm:$0x1]
    %v6851 = vperm.slane %v6849, 0
    %v6993 = vunpack.c.l.b16 %v6709
    %v6994 = vunpack.c.l.b16 %v6710
    %v6995 = vunpack.c.l.b16 %v6711
    %v6996 = vunpack.c.l.b16 %v6712
    %v6997 = vunpack.c.l.b16 %v6713
    %v6998 = vunpack.c.l.b16 %v6714
    %v6999 = vunpack.c.l.b16 %v6715
    %v7000 = vunpack.c.l.b16 %v6716
    %v7001 = vunpack.c.l.b16 %v6717
    %v7002 = vunpack.c.l.b16 %v6718
    %v7003 = vunpack.c.l.b16 %v6719
    %v7004 = vunpack.c.l.b16 %v6720
    %v7005 = vunpack.c.l.b16 %v6721
    %v7006 = vunpack.c.l.b16 %v6722
    %v7007 = vunpack.c.l.b16 %v6723
    %v7008 = vunpack.c.l.b16 %v6724
    %v7009 = vunpack.c.l.b16 %v6725
    %v7010 = vunpack.c.l.b16 %v6726
    %v7011 = vunpack.c.l.b16 %v6727
    %v7012 = vunpack.c.l.b16 %v6728
    %v7013 = vunpack.c.l.b16 %v6729
    %v7014 = vunpack.c.l.b16 %v6730
    %v7015 = vunpack.c.l.b16 %v6731
    %v7016 = vunpack.c.l.b16 %v6732
    %v7017 = vunpack.c.l.b16 %v6733
    %v7018 = vunpack.c.l.b16 %v6734
    %v7019 = vunpack.c.l.b16 %v6735
    %v7020 = vunpack.c.l.b16 %v6736
    %v7021 = vunpack.c.l.b16 %v6737
    %v7022 = vunpack.c.l.b16 %v6738
    %v7023 = vunpack.c.l.b16 %v6739
    %v7024 = vunpack.c.l.b16 %v6740
    %v7025 = vunpack.c.l.b16 %v6741
    %v7026 = vunpack.c.l.b16 %v6742
    %v7027 = vunpack.c.l.b16 %v6743
    %v7028 = vunpack.c.l.b16 %v6744
    %v7029 = vunpack.c.l.b16 %v6745
    %v7030 = vunpack.c.l.b16 %v6746
    %v7031 = vunpack.c.l.b16 %v6747
    %v7032 = vunpack.c.l.b16 %v6748
    %v7033 = vunpack.c.l.b16 %v6749
    %v7034 = vunpack.c.l.b16 %v6750
    %v7035 = vunpack.c.l.b16 %v6751
    %v7036 = vunpack.c.l.b16 %v6752
    %v7037 = vunpack.c.l.b16 %v6753
    %v7038 = vunpack.c.l.b16 %v6754
    %v7039 = vunpack.c.l.b16 %v6755
    %v7040 = vunpack.c.l.b16 %v6756
    %v7041 = vunpack.c.l.b16 %v6757
    %v7042 = vunpack.c.l.b16 %v6758
    %v7043 = vunpack.c.l.b16 %v6759
    %v7044 = vunpack.c.l.b16 %v6760
    %v7045 = vunpack.c.l.b16 %v6761
    %v7046 = vunpack.c.l.b16 %v6762
    %v7047 = vunpack.c.l.b16 %v6763
    %v7048 = vunpack.c.l.b16 %v6764
    %v7049 = vunpack.c.l.b16 %v6765
    %v7050 = vunpack.c.l.b16 %v6766
    %v7051 = vunpack.c.l.b16 %v6767
    %v7052 = vunpack.c.l.b16 %v6768
    %v7053 = vunpack.c.l.b16 %v6769
    %v7054 = vunpack.c.l.b16 %v6770
    %v7055 = vunpack.c.l.b16 %v6771
    %v7056 = vunpack.c.l.b16 %v6772
    %v7057 = vunpack.c.l.b16 %v6773
    %v7058 = vunpack.c.l.b16 %v6774
    %v7059 = vunpack.c.l.b16 %v6775
    %v7060 = vunpack.c.l.b16 %v6776
    %v7061 = vunpack.c.l.b16 %v6777
    %v7062 = vunpack.c.l.b16 %v6778
    %v7063 = vunpack.c.l.b16 %v6779
    %v7064 = vunpack.c.l.b16 %v6780
    %v7065 = vunpack.c.l.b16 %v6781
    %v7066 = vunpack.c.l.b16 %v6782
    %v7067 = vunpack.c.l.b16 %v6783
    %v7068 = vunpack.c.l.b16 %v6784
    %v7069 = vunpack.c.l.b16 %v6785
    %v7070 = vunpack.c.l.b16 %v6786
    %v7071 = vunpack.c.l.b16 %v6787
    %v7072 = vunpack.c.l.b16 %v6788
    %v7073 = vunpack.c.l.b16 %v6789
    %v7074 = vunpack.c.l.b16 %v6790
    %v7075 = vunpack.c.l.b16 %v6791
    %v7076 = vunpack.c.l.b16 %v6792
    %v7077 = vunpack.c.l.b16 %v6793
    %v7078 = vunpack.c.l.b16 %v6794
    %v7079 = vunpack.c.l.b16 %v6795
    %v7080 = vunpack.c.l.b16 %v6796
    %v7081 = vunpack.c.l.b16 %v6797
    %v7082 = vunpack.c.l.b16 %v6798
    %v7083 = vunpack.c.l.b16 %v6799
    %v7084 = vunpack.c.l.b16 %v6800
    %v7085 = vunpack.c.l.b16 %v6801
    %v7086 = vunpack.c.l.b16 %v6802
    %v7087 = vunpack.c.l.b16 %v6803
    %v7088 = vunpack.c.l.b16 %v6804
    %v7089 = vunpack.c.l.b16 %v6805
    %v7090 = vunpack.c.l.b16 %v6806
    %v7091 = vunpack.c.l.b16 %v6807
    %v7092 = vunpack.c.l.b16 %v6808
    %v7093 = vunpack.c.l.b16 %v6809
    %v7094 = vunpack.c.l.b16 %v6810
    %v7095 = vunpack.c.l.b16 %v6811
    %v7096 = vunpack.c.l.b16 %v6812
    %v7097 = vunpack.c.l.b16 %v6813
    %v7098 = vunpack.c.l.b16 %v6814
    %v7099 = vunpack.c.l.b16 %v6815
    %v7100 = vunpack.c.l.b16 %v6816
    %v7101 = vunpack.c.l.b16 %v6817
    %v7102 = vunpack.c.l.b16 %v6818
    %v7103 = vunpack.c.l.b16 %v6819
    %v7104 = vunpack.c.l.b16 %v6820
    %v7105 = vunpack.c.l.b16 %v6821
    %v7106 = vunpack.c.l.b16 %v6822
    %v7107 = vunpack.c.l.b16 %v6823
    %v7108 = vunpack.c.l.b16 %v6824
    %v7109 = vunpack.c.l.b16 %v6825
    %v7110 = vunpack.c.l.b16 %v6826
    %v7111 = vunpack.c.l.b16 %v6827
    %v7112 = vunpack.c.l.b16 %v6828
    %v7113 = vunpack.c.l.b16 %v6829
    %v7114 = vunpack.c.l.b16 %v6830
    %v7115 = vunpack.c.l.b16 %v6831
    %v7116 = vunpack.c.l.b16 %v6832
    %v7117 = vunpack.c.l.b16 %v6833
    %v7118 = vunpack.c.l.b16 %v6834
    %v7119 = vunpack.c.l.b16 %v6835
    %v7120 = vunpack.c.l.b16 %v6836
    %v7121 = vunpack.c.l.b16 %v6837
    %v7122 = vunpack.c.l.b16 %v6838
    %v7123 = vunpack.c.l.b16 %v6839
    %v7124 = vunpack.c.l.b16 %v6840
    %v7125 = vunpack.c.l.b16 %v6841
    %v7126 = vunpack.c.l.b16 %v6842
    %v7127 = vunpack.c.l.b16 %v6843
    %v7128 = vunpack.c.l.b16 %v6844
    %v7129 = vunpack.c.l.b16 %v6845
    %v7130 = vunpack.c.l.b16 %v6846
    %v7131 = vunpack.c.l.b16 %v6847
    %v7132 = vunpack.c.l.b16 %v6848
    %v7133 = vpack.c.b16 %v6994, %v6993
    %v7134 = vpack.c.b16 %v6996, %v6995
    %v7135 = vpack.c.b16 %v6998, %v6997
    %v7136 = vpack.c.b16 %v7000, %v6999
    %v7137 = vpack.c.b16 %v7002, %v7001
    %v7138 = vpack.c.b16 %v7004, %v7003
    %v7139 = vpack.c.b16 %v7006, %v7005
    %v7140 = vpack.c.b16 %v7008, %v7007
    %v7141 = vpack.c.b16 %v7010, %v7009
    %v7142 = vpack.c.b16 %v7012, %v7011
    %v7143 = vpack.c.b16 %v7014, %v7013
    %v7144 = vpack.c.b16 %v7016, %v7015
    %v7145 = vpack.c.b16 %v7018, %v7017
    %v7146 = vpack.c.b16 %v7020, %v7019
    %v7147 = vpack.c.b16 %v7022, %v7021
    %v7148 = vpack.c.b16 %v7024, %v7023
    %v7149 = vpack.c.b16 %v7026, %v7025
    %v7150 = vpack.c.b16 %v7028, %v7027
    %v7151 = vpack.c.b16 %v7030, %v7029
    %v7152 = vpack.c.b16 %v7032, %v7031
    %v7153 = vpack.c.b16 %v7034, %v7033
    %v7154 = vpack.c.b16 %v7036, %v7035
    %v7155 = vpack.c.b16 %v7038, %v7037
    %v7156 = vpack.c.b16 %v7040, %v7039
    %v7157 = vpack.c.b16 %v7042, %v7041
    %v7158 = vpack.c.b16 %v7044, %v7043
    %v7159 = vpack.c.b16 %v7046, %v7045
    %v7160 = vpack.c.b16 %v7048, %v7047
    %v7161 = vpack.c.b16 %v7050, %v7049
    %v7162 = vpack.c.b16 %v7052, %v7051
    %v7163 = vpack.c.b16 %v7054, %v7053
    %v7164 = vpack.c.b16 %v7056, %v7055
    %v7165 = vpack.c.b16 %v7058, %v7057
    %v7166 = vpack.c.b16 %v7060, %v7059
    %v7167 = vpack.c.b16 %v7062, %v7061
    %v7168 = vpack.c.b16 %v7064, %v7063
    %v7169 = vpack.c.b16 %v7066, %v7065
    %v7170 = vpack.c.b16 %v7068, %v7067
    %v7171 = vpack.c.b16 %v7070, %v7069
    %v7172 = vpack.c.b16 %v7072, %v7071
    %v7173 = vpack.c.b16 %v7074, %v7073
    %v7174 = vpack.c.b16 %v7076, %v7075
    %v7175 = vpack.c.b16 %v7078, %v7077
    %v7176 = vpack.c.b16 %v7080, %v7079
    %v7177 = vpack.c.b16 %v7082, %v7081
    %v7178 = vpack.c.b16 %v7084, %v7083
    %v7179 = vpack.c.b16 %v7086, %v7085
    %v7180 = vpack.c.b16 %v7088, %v7087
    %v7181 = vpack.c.b16 %v7090, %v7089
    %v7182 = vpack.c.b16 %v7092, %v7091
    %v7183 = vpack.c.b16 %v7094, %v7093
    %v7184 = vpack.c.b16 %v7096, %v7095
    %v7185 = vpack.c.b16 %v7098, %v7097
    %v7186 = vpack.c.b16 %v7100, %v7099
    %v7187 = vpack.c.b16 %v7102, %v7101
    %v7188 = vpack.c.b16 %v7104, %v7103
    %v7189 = vpack.c.b16 %v7106, %v7105
    %v7190 = vpack.c.b16 %v7108, %v7107
    %v7191 = vpack.c.b16 %v7110, %v7109
    %v7192 = vpack.c.b16 %v7112, %v7111
    %v7193 = vpack.c.b16 %v7114, %v7113
    %v7194 = vpack.c.b16 %v7116, %v7115
    %v7195 = vpack.c.b16 %v7118, %v7117
    %v7196 = vpack.c.b16 %v7120, %v7119
    %v7197 = vpack.c.b16 %v7122, %v7121
    %v7198 = vpack.c.b16 %v7124, %v7123
    %v7199 = vpack.c.b16 %v7126, %v7125
    %v7200 = vpack.c.b16 %v7128, %v7127
    %v7201 = vpack.c.b16 %v7130, %v7129
    %v7202 = vpack.c.b16 %v7132, %v7131
    %v7274 = vsel %vm703, %v6693, 0
    %7276 = vmatpush.bf16.msra.mxu0 %v7140
    %7277 = vmatpush.bf16.msra.mxu0 %v7139
    %7278 = vmatpush.bf16.msra.mxu0 %v7138
    %7279 = vmatpush.bf16.msra.mxu0 %v7137
    %7280 = vmatpush.bf16.msra.mxu0 %v7136
    %7281 = vmatpush.bf16.msra.mxu0 %v7135
    %7282 = vmatpush.bf16.msra.mxu0 %v7134
    %7283 = vmatpush.bf16.msra.mxu0 %v7133
    %7284 = vmatmul.bf16.gmra.mxu0 %v6437
    %v7285 = vpop.f32.mrf.mxu0
    %v7286 = vadd.f32 %v6851, %v7285
    %v7287 = vpop.f32.mrf.mxu0
    %7288 = vdwg.mxu0
    %7289 = vmatpush.bf16.msra.mxu0 %v7148
    %7290 = vmatpush.bf16.msra.mxu0 %v7147
    %7291 = vmatpush.bf16.msra.mxu0 %v7146
    %7292 = vmatpush.bf16.msra.mxu0 %v7145
    %7293 = vmatpush.bf16.msra.mxu0 %v7144
    %7294 = vmatpush.bf16.msra.mxu0 %v7143
    %7295 = vmatpush.bf16.msra.mxu0 %v7142
    %7296 = vmatpush.bf16.msra.mxu0 %v7141
    %7297 = vmatmul.bf16.gmra.mxu0 %v6438
    %v7298 = vpop.f32.mrf.mxu0
    %v7299 = vadd.f32 %v7286, %v7298
    %v7300 = vpop.f32.mrf.mxu0
    %7301 = vdwg.mxu0
    %7302 = vmatpush.bf16.msra.mxu0 %v7156
    %7303 = vmatpush.bf16.msra.mxu0 %v7155
    %7304 = vmatpush.bf16.msra.mxu0 %v7154
    %7305 = vmatpush.bf16.msra.mxu0 %v7153
    %7306 = vmatpush.bf16.msra.mxu0 %v7152
    %7307 = vmatpush.bf16.msra.mxu0 %v7151
    %7308 = vmatpush.bf16.msra.mxu0 %v7150
    %7309 = vmatpush.bf16.msra.mxu0 %v7149
    %7310 = vmatmul.bf16.gmra.mxu0 %v6698
    %v7311 = vpop.f32.mrf.mxu0
    %v7312 = vadd.f32 %v7299, %v7311
    %v7313 = vpop.f32.mrf.mxu0
    %7314 = vdwg.mxu0
    %7315 = vmatpush.bf16.msra.mxu0 %v7164
    %7316 = vmatpush.bf16.msra.mxu0 %v7163
    %7317 = vmatpush.bf16.msra.mxu0 %v7162
    %7318 = vmatpush.bf16.msra.mxu0 %v7161
    %7319 = vmatpush.bf16.msra.mxu0 %v7160
    %7320 = vmatpush.bf16.msra.mxu0 %v7159
    %7321 = vmatpush.bf16.msra.mxu0 %v7158
    %7322 = vmatpush.bf16.msra.mxu0 %v7157
    %7323 = vmatmul.bf16.gmra.mxu0 %v6494
    %v7324 = vpop.f32.mrf.mxu0
    %v7325 = vadd.f32 %v7312, %v7324
    %v7326 = vpop.f32.mrf.mxu0
    %7327 = vdwg.mxu0
    %7328 = vmatpush.bf16.msra.mxu0 %v7172
    %7329 = vmatpush.bf16.msra.mxu0 %v7171
    %7330 = vmatpush.bf16.msra.mxu0 %v7170
    %7331 = vmatpush.bf16.msra.mxu0 %v7169
    %7332 = vmatpush.bf16.msra.mxu0 %v7168
    %7333 = vmatpush.bf16.msra.mxu0 %v7167
    %7334 = vmatpush.bf16.msra.mxu0 %v7166
    %7335 = vmatpush.bf16.msra.mxu0 %v7165
    %7336 = vmatmul.bf16.gmra.mxu0 %v6702
    %v7337 = vpop.f32.mrf.mxu0
    %v7338 = vadd.f32 %v7325, %v7337
    %v7339 = vpop.f32.mrf.mxu0
    %7340 = vdwg.mxu0
    %7341 = vmatpush.bf16.msra.mxu0 %v7180
    %7342 = vmatpush.bf16.msra.mxu0 %v7179
    %7343 = vmatpush.bf16.msra.mxu0 %v7178
    %7344 = vmatpush.bf16.msra.mxu0 %v7177
    %7345 = vmatpush.bf16.msra.mxu0 %v7176
    %7346 = vmatpush.bf16.msra.mxu0 %v7175
    %7347 = vmatpush.bf16.msra.mxu0 %v7174
    %7348 = vmatpush.bf16.msra.mxu0 %v7173
    %7349 = vmatmul.bf16.gmra.mxu0 %v6637
    %v7350 = vpop.f32.mrf.mxu0
    %v7351 = vadd.f32 %v7338, %v7350
    %v7352 = vpop.f32.mrf.mxu0
    %7353 = vdwg.mxu0
    %7354 = vmatpush.bf16.msra.mxu0 %v7188
    %7355 = vmatpush.bf16.msra.mxu0 %v7187
    %7356 = vmatpush.bf16.msra.mxu0 %v7186
    %7357 = vmatpush.bf16.msra.mxu0 %v7185
    %7358 = vmatpush.bf16.msra.mxu0 %v7184
    %7359 = vmatpush.bf16.msra.mxu0 %v7183
    %7360 = vmatpush.bf16.msra.mxu0 %v7182
    %7361 = vmatpush.bf16.msra.mxu0 %v7181
    %7362 = vmatmul.bf16.gmra.mxu0 %v6707
    %v7363 = vpop.f32.mrf.mxu0
    %v7364 = vadd.f32 %v7351, %v7363
    %v7365 = vpop.f32.mrf.mxu0
    %7366 = vdwg.mxu0
    %7367 = vmatpush.bf16.msra.mxu0 %v7196
    %7368 = vmatpush.bf16.msra.mxu0 %v7195
    %7369 = vmatpush.bf16.msra.mxu0 %v7194
    %7370 = vmatpush.bf16.msra.mxu0 %v7193
    %7371 = vmatpush.bf16.msra.mxu0 %v7192
    %7372 = vmatpush.bf16.msra.mxu0 %v7191
    %7373 = vmatpush.bf16.msra.mxu0 %v7190
    %7374 = vmatpush.bf16.msra.mxu0 %v7189
    %7375 = vmatmul.bf16.gmra.mxu0 %v6692
    %v7376 = vpop.f32.mrf.mxu0
    %v7377 = vadd.f32 %v7364, %v7376
    %v7378 = vpop.f32.mrf.mxu0
    %7379 = vdwg.mxu0
    %7380 = vmatpush.bf16.msra.mxu0 0
    %7381 = vmatpush.bf16.msra.mxu0 0
    %7382 = vmatpush.bf16.msra.mxu0 %v7202
    %7383 = vmatpush.bf16.msra.mxu0 %v7201
    %7384 = vmatpush.bf16.msra.mxu0 %v7200
    %7385 = vmatpush.bf16.msra.mxu0 %v7199
    %7386 = vmatpush.bf16.msra.mxu0 %v7198
    %7387 = vmatpush.bf16.msra.mxu0 %v7197
    %7388 = vmatmul.bf16.gmra.mxu0 %v7274
    %v7389 = vpop.f32.mrf.mxu0
    %v7390 = vadd.f32 %v7377, %v7389
    %v7391 = vpop.f32.mrf.mxu0
    %7392 = vdwg.mxu0
    %v7393 = vmax.f32 %v7390, 0.0
    %v7394 = vpack.c.bf16 %v7393, %v7393
    %v7395 = vld [vmem:[%s7] sm:$0xf]
    %v7396 = vld [vmem:[%s7 + $0x4] sm:$0xf]
    %v7397 = vld [vmem:[%s7 + $0x8] sm:$0xf]
    %v7398 = vld [vmem:[%s7 + $0xc] sm:$0xf]
    %v7399 = vld [vmem:[%s7 + $0x10] sm:$0xf]
    %v7400 = vld [vmem:[%s7 + $0x14] sm:$0xf]
    %v7401 = vld [vmem:[%s7 + $0x18] sm:$0x1]
    %v7402 = vld [vmem:[%s8] sm:$0x1]
    %v7404 = vperm.slane %v7402, 0
    %v7413 = vunpack.c.l.b16 %v7395
    %v7414 = vunpack.c.l.b16 %v7396
    %v7415 = vunpack.c.l.b16 %v7397
    %v7416 = vunpack.c.l.b16 %v7398
    %v7417 = vunpack.c.l.b16 %v7399
    %v7418 = vunpack.c.l.b16 %v7400
    %v7419 = vunpack.c.l.b16 %v7401
    %v7420 = vpack.c.b16 %v7414, %v7413
    %v7421 = vpack.c.b16 %v7416, %v7415
    %v7422 = vpack.c.b16 %v7418, %v7417
    %v7423 = vpack.c.b16 %v7419, %v7419
    %vm7427 = vcmask 408576
    %v7429 = vsel %vm7427, %v7394, 0
    %vm7431 = vcmask 1040384
    %v7433 = vsel %vm7431, %v7423, 0
    %7435 = vmatpush.bf16.msra.mxu0 0
    %7436 = vmatpush.bf16.msra.mxu0 0
    %7437 = vmatpush.bf16.msra.mxu0 0
    %7438 = vmatpush.bf16.msra.mxu0 0
    %7439 = vmatpush.bf16.msra.mxu0 %v7433
    %7440 = vmatpush.bf16.msra.mxu0 %v7422
    %7441 = vmatpush.bf16.msra.mxu0 %v7421
    %7442 = vmatpush.bf16.msra.mxu0 %v7420
    %7443 = vmatmul.bf16.gmra.mxu0 %v7429
    %v7444 = vpop.f32.mrf.mxu0
    %v7445 = vadd.f32 %v7404, %v7444
    %v7446 = vpop.f32.mrf.mxu0
    %7447 = vdwg.mxu0
    %7448 = vmax.xlane.f32.xlu0 %v7445
    %v7449 = vpop.xlane.xlu0 %7448
    %v7450 = vsub.f32 %v7445, %v7449
    %v7451 = vmul.f32 %v7450, 1.442695
    %v7452 = vpow.pop %v7451
    %7453 = vadd.xlane.f32.xlu0 %v7452
    %v7454 = vpop.xlane.xlu0 %7453
    %v7455 = vlog2.pop %v7454
    %v7456 = vmul.f32 %v7455, 0.6931472
    %v7457 = vsub.f32 %v7450, %v7456
    %7458 = vst [vmem:[%s9] sm:$0xff] %v7457
    // Predicated region
    $region42: #{net_forward.1} parent=1 // pred_check
      _
    $region43: #{net_forward.1} parent=1 // pred_check_branch
      %7460 = sbr.rel (0) target = $region45
    $region44: #{net_forward.1} parent=1 // pred_region
      _
    $region45: #{net_forward.1} parent=1 // pred_fallthru
      _
    // Predicated region
    $region46: #{net_forward.1} parent=1 // pred_check
      _
    $region47: #{net_forward.1} parent=1 // pred_check_branch
      %7462 = sbr.rel (0) target = $region49
    $region48: #{net_forward.1} parent=1 // pred_region
      _
    $region49: #{net_forward.1} parent=1 // pred_fallthru
      _
    %7463 = vsyncpa [#allocation3], 1

</llo_original>
